<compile_context>
chip_gen: v7x
topology: tpu7x:2x2x1
jax: 0.10.0
libtpu: 0.0.40
codegen_flags: <defaults>
</compile_context>

<pallas_src>
import math
import functools

import jax
import jax.numpy as jnp
import numpy as np
from jax.experimental import pallas as pl
from jax.experimental.pallas import tpu as pltpu


# ---------------------------------------------------------------------------
# Pallas kernel
# ---------------------------------------------------------------------------
def _nodeformer_kernel(z_ref, zT_ref, wbig_ref, bbig_ref, wbigT_ref, bbigT_ref,
                       gum_ref, e_ref, f_ref, ftwo_ref, bo_ref, out_ref,
                       *, B, N, H, D, M, K, eps=1e-6):
    HD = H * D
    Cout = out_ref.shape[-1]
    ratio = 1.0 / math.sqrt(float(M))

    # Two fused projection matmuls give every linear quantity the layer needs.
    #   big  = [ q_scaled | v | q_random_features ]   (BN, 2HD + HM)
    #   bigT = [ k_scaled ; k_random_features ]^T     (HD + HM, BN)
    big = jnp.dot(z_ref[...], wbig_ref[...],
                  preferred_element_type=jnp.float32) + bbig_ref[...]
    bigT = jnp.dot(wbigT_ref[...], zT_ref[...],
                   preferred_element_type=jnp.float32) + bbigT_ref[...]

    q_all = big[:, :HD]                 # (BN, HD)  already scaled by 1/sqrt(tau)*D^-1/4
    v_all = big[:, HD:2 * HD]           # (BN, HD)
    qd_all = big[:, 2 * HD:]            # (BN, HM)  random-feature projection of q
    k_allT = bigT[:HD, :]               # (HD, BN)
    kd_allT = bigT[HD:, :]              # (HM, BN)  random-feature projection of k (transposed)

    E = e_ref[...]      # (K, K*D): expands a per-sample scalar across that sample's D lanes
    Fm = f_ref[...]     # (D, K*D): tiles v across the K samples

    # B*H = 4 tiny iterations at these shapes -> static unroll is fine.
    # (Use lax.fori_loop(..., unroll=True) if B or H grow.)
    for b in range(B):
        r0 = b * N
        acc = jnp.zeros((N, Cout), jnp.float32)
        for h in range(H):
            c0 = h * D
            m0 = h * M
            qh = q_all[r0:r0 + N, c0:c0 + D]          # (N, D)
            vh = v_all[r0:r0 + N, c0:c0 + D]          # (N, D)
            khT = k_allT[c0:c0 + D, r0:r0 + N]        # (D, N)
            qd = qd_all[r0:r0 + N, m0:m0 + M]         # (N, M)
            kdT = kd_allT[m0:m0 + M, r0:r0 + N]       # (M, N)

            q_diag = 0.5 * jnp.sum(qh * qh, axis=-1, keepdims=True)        # (N, 1)
            k_diagT = 0.5 * jnp.sum(khT * khT, axis=0, keepdims=True)      # (1, N)

            # performer softmax-kernel random features
            q_prime = ratio * (jnp.exp(qd - q_diag
                                       - jnp.max(qd, axis=-1, keepdims=True)) + eps)   # (N, M)
            k_primeT = ratio * (jnp.exp(kdT - k_diagT
                                        - jnp.max(kdT, keepdims=True)) + eps)          # (M, N)

            eg = jnp.exp(gum_ref[b, h])                                    # (N, K)

            # Fused over all K gumbel samples:
            # egv[n, k*D+d] = exp(g[n,k]) * v[n,d]
            egv = (jnp.dot(eg, E, preferred_element_type=jnp.float32) *
                   jnp.dot(vh, Fm, preferred_element_type=jnp.float32))    # (N, K*D)

            kv = jnp.dot(k_primeT, egv, preferred_element_type=jnp.float32)   # (M, K*D)
            ksT = jnp.dot(k_primeT, eg, preferred_element_type=jnp.float32)   # (M, K)
            num = jnp.dot(q_prime, kv, preferred_element_type=jnp.float32)    # (N, K*D)
            den = jnp.dot(q_prime, ksT, preferred_element_type=jnp.float32)   # (N, K)

            inv_den = pl.reciprocal(den, approx=False)                     # (N, K)
            numsc = num * jnp.dot(inv_den, E,
                                  preferred_element_type=jnp.float32)      # (N, K*D)
            # mean over samples + Wo (per-head slice) folded into one matmul, accumulate
            acc = acc + jnp.dot(numsc, ftwo_ref[h],
                                preferred_element_type=jnp.float32)        # (N, Cout)

        out_ref[r0:r0 + N, :] = (acc + bo_ref[...]).astype(out_ref.dtype)


# ---------------------------------------------------------------------------
# Wrapper: host-side weight folding + pallas_call
# ---------------------------------------------------------------------------
def nodeformer_conv(z, params, proj, gumbels, *, num_heads, tau):
    """z: (B, N, Cin); proj: (M, D); gumbels: (B, H, N, K) already divided by tau."""
    B, N, Cin = z.shape
    Wq, bq, Wk, bk, Wv, bv, Wo, bo = params
    H = num_heads
    HD = Wq.shape[1]
    D = HD // H
    Cout = Wo.shape[1]
    M = proj.shape[0]
    K = gumbels.shape[-1]
    f32 = jnp.float32

    # combined scaling: 1/sqrt(tau) (gumbel temperature) * D**-0.25 (performer)
    scale = (1.0 / math.sqrt(tau)) * (float(D) ** -0.25)

    projM = proj.astype(f32)             # (M, D)
    projT = projM.T                      # (D, M)

    Wq_s = (Wq * scale).astype(f32)      # (Cin, HD)
    bq_s = (bq * scale).astype(f32)      # (HD,)
    Wk_s = (Wk * scale).astype(f32)      # (Cin, HD)
    bk_s = (bk * scale).astype(f32)      # (HD,)

    # Random-feature projection folded into the Q weights (block-diagonal per head).
    Wqp = jnp.concatenate([Wq_s[:, h * D:(h + 1) * D] @ projT for h in range(H)],
                          axis=1)                                           # (Cin, HM)
    bqp = jnp.concatenate([bq_s[h * D:(h + 1) * D] @ projT for h in range(H)],
                          axis=0)                                           # (HM,)

    # K branch kept in transposed layout; random-feature projection folded too.
    WkT_s = Wk_s.T                                                          # (HD, Cin)
    bkT_s = bk_s[:, None]                                                   # (HD, 1)
    WkpT = jnp.concatenate([projM @ WkT_s[h * D:(h + 1) * D, :] for h in range(H)],
                           axis=0)                                          # (HM, Cin)
    bkpT = jnp.concatenate([projM @ bkT_s[h * D:(h + 1) * D, :] for h in range(H)],
                           axis=0)                                          # (HM, 1)

    wbig = jnp.concatenate([Wq_s, Wv.astype(f32), Wqp], axis=1)             # (Cin, 2HD+HM)
    bbig = jnp.concatenate([bq_s, bv.astype(f32), bqp])[None, :]            # (1, 2HD+HM)
    wbigT = jnp.concatenate([WkT_s, WkpT], axis=0)                          # (HD+HM, Cin)
    bbigT = jnp.concatenate([bkT_s, bkpT], axis=0)                          # (HD+HM, 1)

    # constant expansion / reduction matrices for the fused gumbel-sample math
    E = jnp.asarray(np.kron(np.eye(K, dtype=np.float32),
                            np.ones((1, D), np.float32)))                   # (K, K*D)
    Fm = jnp.asarray(np.kron(np.ones((1, K), np.float32),
                             np.eye(D, dtype=np.float32)))                  # (D, K*D)

    # per-head (F^T / K) @ Wo_h  == tile(Wo_h, K)/K : mean-over-samples + Wo fused
    Wo_f = Wo.astype(f32)
    ftwo = jnp.stack([jnp.tile(Wo_f[h * D:(h + 1) * D, :], (K, 1)) / float(K)
                      for h in range(H)], axis=0)                           # (H, K*D, Cout)

    z2 = z.reshape(B * N, Cin).astype(f32)
    z2T = z2.T

    kernel = functools.partial(_nodeformer_kernel, B=B, N=N, H=H, D=D, M=M, K=K)

    args = (z2, z2T, wbig, bbig, wbigT, bbigT, gumbels.astype(f32),
            E, Fm, ftwo, bo[None, :].astype(f32))

    out2 = pl.pallas_call(
        kernel,
        out_shape=jax.ShapeDtypeStruct((B * N, Cout), f32),
        in_specs=[pl.BlockSpec(memory_space=pltpu.MemorySpace.VMEM) for _ in args],
        out_specs=pl.BlockSpec(memory_space=pltpu.MemorySpace.VMEM),
    )(*args)
    return out2.reshape(B, N, Cout)


# ---------------------------------------------------------------------------
# Parameter / projection-matrix construction (plain JAX glue, deterministic).
# ---------------------------------------------------------------------------
def init_params(key, Cin, D, H, Cout):
    """nn.Linear-style init: U(-1/sqrt(fan_in), 1/sqrt(fan_in))."""
    ks = jax.random.split(key, 4)

    def lin(k, fan_in, fan_out):
        bound = 1.0 / math.sqrt(fan_in)
        kw, kb = jax.random.split(k)
        W = jax.random.uniform(kw, (fan_in, fan_out), minval=-bound, maxval=bound,
                               dtype=jnp.float32)
        b = jax.random.uniform(kb, (fan_out,), minval=-bound, maxval=bound,
                               dtype=jnp.float32)
        return W, b

    Wq, bq = lin(ks[0], Cin, H * D)
    Wk, bk = lin(ks[1], Cin, H * D)
    Wv, bv = lin(ks[2], Cin, H * D)
    Wo, bo = lin(ks[3], H * D, Cout)
    return Wq, bq, Wk, bk, Wv, bv, Wo, bo


def create_projection_matrix(m, d, key):
    """JAX port of create_projection_matrix (scaling=0, struct_mode=False).
    # TODO(synk): the torch version seeds this from ceil(|sum(query)|*BIG_CONSTANT)
    # (data-dependent randomness); here a fixed PRNGKey is used instead."""
    nb_full = m // d
    keys = jax.random.split(key, nb_full + 2)
    blocks = []
    for i in range(nb_full):
        blk = jax.random.normal(keys[i], (d, d), dtype=jnp.float32)
        qm, _ = jnp.linalg.qr(blk)
        blocks.append(qm.T)
    rem = m - nb_full * d
    if rem > 0:
        blk = jax.random.normal(keys[nb_full], (d, d), dtype=jnp.float32)
        qm, _ = jnp.linalg.qr(blk)
        blocks.append(qm.T[:rem])
    final = jnp.vstack(blocks)
    multiplier = jnp.linalg.norm(
        jax.random.normal(keys[-1], (m, d), dtype=jnp.float32), axis=1)
    return multiplier[:, None] * final                                # (m, d)


# ---------------------------------------------------------------------------
# Pure-JAX reference (mirrors the torch forward) for correctness checking.
# ---------------------------------------------------------------------------
def _softmax_kernel_ref(data, is_query, proj, eps=1e-6):
    dn = 1.0 / jnp.sqrt(jnp.sqrt(jnp.float32(data.shape[-1])))
    data = dn * data
    ratio = 1.0 / jnp.sqrt(jnp.float32(proj.shape[0]))
    dd = jnp.einsum('bnhd,md->bnhm', data, proj)
    diag = jnp.sum(data * data, axis=-1, keepdims=True) / 2.0
    if is_query:
        return ratio * (jnp.exp(dd - diag - jnp.max(dd, axis=-1, keepdims=True)) + eps)
    mx = jnp.max(jnp.max(dd, axis=-1, keepdims=True), axis=1, keepdims=True)
    return ratio * (jnp.exp(dd - diag - mx) + eps)


def reference_forward(z, Wq, bq, Wk, bk, Wv, bv, Wo, bo, proj, gumbels, tau, H):
    B, N, _ = z.shape
    HD = Wq.shape[1]
    D = HD // H
    q = (z @ Wq + bq).reshape(B, N, H, D) / math.sqrt(tau)
    k = (z @ Wk + bk).reshape(B, N, H, D) / math.sqrt(tau)
    v = (z @ Wv + bv).reshape(B, N, H, D)
    qp = _softmax_kernel_ref(q, True, proj).transpose(1, 0, 2, 3)     # (N,B,H,M)
    kp = _softmax_kernel_ref(k, False, proj).transpose(1, 0, 2, 3)    # (N,B,H,M)
    vv = v.transpose(1, 0, 2, 3)                                       # (N,B,H,D)
    g = jnp.transpose(gumbels, (2, 0, 1, 3))                           # (N,B,H,K)
    ktg = kp[:, :, :, None, :] * jnp.exp(g)[:, :, :, :, None]          # (N,B,H,K,M)
    kvs = jnp.einsum('nbhkm,nbhd->bhkmd', ktg, vv)
    z_num = jnp.einsum('nbhm,bhkmd->nbhkd', qp, kvs)
    ks_sum = jnp.sum(ktg, axis=0)
    z_den = jnp.einsum('nbhm,bhkm->nbhk', qp, ks_sum)
    z_num = z_num.transpose(1, 0, 2, 3, 4)                             # (B,N,H,K,D)
    z_den = z_den.transpose(1, 0, 2, 3)[..., None]                     # (B,N,H,K,1)
    z_out = jnp.mean(z_num / z_den, axis=3)                            # (B,N,H,D)
    return z_out.reshape(B, N, HD) @ Wo + bo


if __name__ == "__main__":
    # Small shapes consistent with the module's forward.
    B, N, Cin = 2, 16, 16
    H = 2                      # num_heads
    D = 8                      # out_channels (head dim)
    Cout = 8                   # Wo output = out_channels
    M = 16                     # nb_random_features
    K = 8                      # nb_gumbel_sample
    tau = 0.25
    # rb_order = 0  -> relational-bias branch is not exercised.
    # TODO(synk): rb_order>=1 sparse relational bias (edge_index scatter matmul)
    # has no clean dense-Pallas equivalent and is not implemented.

    key = jax.random.PRNGKey(0)
    kz, kp, kproj, kg = jax.random.split(key, 4)

    z = jax.random.normal(kz, (B, N, Cin), dtype=jnp.float32)
    # u, i node-index inputs: with rb_order=0 / graph_type='full' they do not
    # affect the output of kernelized_gumbel_softmax, so they are only dummies.
    u = jnp.arange(N, dtype=jnp.int32)
    i_idx = jnp.arange(N, dtype=jnp.int32)
    del u, i_idx

    params = init_params(kp, Cin, D, H, Cout)
    proj = create_projection_matrix(M, D, kproj)                       # (M, D)
    # torch: gumbels = -log(Exp(1)) / tau  ==  standard Gumbel / tau
    gumbels = jax.random.gumbel(kg, (B, H, N, K), dtype=jnp.float32) / tau

    out = nodeformer_conv(z, params, proj, gumbels, num_heads=H, tau=tau)
    out = jax.block_until_ready(out)

    Wq, bq, Wk, bk, Wv, bv, Wo, bo = params
    ref = reference_forward(z, Wq, bq, Wk, bk, Wv, bv, Wo, bo, proj, gumbels, tau, H)
    np.testing.assert_allclose(np.asarray(out), np.asarray(ref), rtol=5e-4, atol=5e-4)
    print("KERNEL_OK")
</pallas_src>

<mosaic_0001>
module attributes {stable_mosaic.version = 11 : i64} {
  func.func @_nodeformer_kernel(%arg0: memref<32x16xf32, #tpu.memory_space<vmem>>, %arg1: memref<16x32xf32, #tpu.memory_space<vmem>>, %arg2: memref<16x64xf32, #tpu.memory_space<vmem>>, %arg3: memref<1x64xf32, #tpu.memory_space<vmem>>, %arg4: memref<48x16xf32, #tpu.memory_space<vmem>>, %arg5: memref<48x1xf32, #tpu.memory_space<vmem>>, %arg6: memref<2x2x16x8xf32, #tpu.memory_space<vmem>>, %arg7: memref<8x64xf32, #tpu.memory_space<vmem>>, %arg8: memref<8x64xf32, #tpu.memory_space<vmem>>, %arg9: memref<2x64x8xf32, #tpu.memory_space<vmem>>, %arg10: memref<1x8xf32, #tpu.memory_space<vmem>>, %arg11: memref<32x8xf32, #tpu.memory_space<vmem>>) attributes {dimension_semantics = [], scalar_prefetch = 0 : i64, scratch_operands = 0 : i64, tpu.core_type = #tpu.core_type<tc>} {
    %c0 = arith.constant 0 : index
    %c0_0 = arith.constant 0 : index
    %0 = vector.load %arg0[%c0, %c0_0] : memref<32x16xf32, #tpu.memory_space<vmem>>, vector<32x16xf32>
    %c0_1 = arith.constant 0 : index
    %c0_2 = arith.constant 0 : index
    %1 = vector.load %arg2[%c0_1, %c0_2] : memref<16x64xf32, #tpu.memory_space<vmem>>, vector<16x64xf32>
    %cst = arith.constant dense<0.000000e+00> : vector<32x64xf32>
    %2 = tpu.matmul %0, %1, %cst {dimension_numbers = #tpu.dot_dimension_numbers<[1], [0], [0], [1], [0, 0, 1, 1], [], []>} : vector<32x16xf32>, vector<16x64xf32>, vector<32x64xf32> -> vector<32x64xf32>
    %c0_3 = arith.constant 0 : index
    %c0_4 = arith.constant 0 : index
    %3 = vector.load %arg3[%c0_3, %c0_4] : memref<1x64xf32, #tpu.memory_space<vmem>>, vector<1x64xf32>
    %4 = vector.broadcast %3 : vector<1x64xf32> to vector<32x64xf32>
    %5 = arith.addf %2, %4 : vector<32x64xf32>
    %c0_5 = arith.constant 0 : index
    %c0_6 = arith.constant 0 : index
    %6 = vector.load %arg4[%c0_5, %c0_6] : memref<48x16xf32, #tpu.memory_space<vmem>>, vector<48x16xf32>
    %c0_7 = arith.constant 0 : index
    %c0_8 = arith.constant 0 : index
    %7 = vector.load %arg1[%c0_7, %c0_8] : memref<16x32xf32, #tpu.memory_space<vmem>>, vector<16x32xf32>
    %cst_9 = arith.constant dense<0.000000e+00> : vector<48x32xf32>
    %8 = tpu.matmul %6, %7, %cst_9 {dimension_numbers = #tpu.dot_dimension_numbers<[1], [0], [0], [1], [0, 0, 1, 1], [], []>} : vector<48x16xf32>, vector<16x32xf32>, vector<48x32xf32> -> vector<48x32xf32>
    %c0_10 = arith.constant 0 : index
    %c0_11 = arith.constant 0 : index
    %9 = vector.load %arg5[%c0_10, %c0_11] : memref<48x1xf32, #tpu.memory_space<vmem>>, vector<48x1xf32>
    %10 = vector.broadcast %9 : vector<48x1xf32> to vector<48x32xf32>
    %11 = arith.addf %8, %10 : vector<48x32xf32>
    %12 = vector.extract_strided_slice %5 {offsets = [0, 0], sizes = [32, 16], strides = [1, 1]} : vector<32x64xf32> to vector<32x16xf32>
    %13 = vector.extract_strided_slice %5 {offsets = [0, 16], sizes = [32, 16], strides = [1, 1]} : vector<32x64xf32> to vector<32x16xf32>
    %14 = vector.extract_strided_slice %5 {offsets = [0, 32], sizes = [32, 32], strides = [1, 1]} : vector<32x64xf32> to vector<32x32xf32>
    %15 = vector.extract_strided_slice %11 {offsets = [0, 0], sizes = [16, 32], strides = [1, 1]} : vector<48x32xf32> to vector<16x32xf32>
    %16 = vector.extract_strided_slice %11 {offsets = [16, 0], sizes = [32, 32], strides = [1, 1]} : vector<48x32xf32> to vector<32x32xf32>
    %c0_12 = arith.constant 0 : index
    %c0_13 = arith.constant 0 : index
    %17 = vector.load %arg7[%c0_12, %c0_13] : memref<8x64xf32, #tpu.memory_space<vmem>>, vector<8x64xf32>
    %c0_14 = arith.constant 0 : index
    %c0_15 = arith.constant 0 : index
    %18 = vector.load %arg8[%c0_14, %c0_15] : memref<8x64xf32, #tpu.memory_space<vmem>>, vector<8x64xf32>
    %cst_16 = arith.constant 0.000000e+00 : f32
    %19 = vector.broadcast %cst_16 : f32 to vector<16x8xf32>
    %20 = vector.extract_strided_slice %12 {offsets = [0, 0], sizes = [16, 8], strides = [1, 1]} : vector<32x16xf32> to vector<16x8xf32>
    %21 = vector.extract_strided_slice %13 {offsets = [0, 0], sizes = [16, 8], strides = [1, 1]} : vector<32x16xf32> to vector<16x8xf32>
    %22 = vector.extract_strided_slice %15 {offsets = [0, 0], sizes = [8, 16], strides = [1, 1]} : vector<16x32xf32> to vector<8x16xf32>
    %23 = vector.extract_strided_slice %14 {offsets = [0, 0], sizes = [16, 16], strides = [1, 1]} : vector<32x32xf32> to vector<16x16xf32>
    %24 = vector.extract_strided_slice %16 {offsets = [0, 0], sizes = [16, 16], strides = [1, 1]} : vector<32x32xf32> to vector<16x16xf32>
    %25 = arith.mulf %20, %20 : vector<16x8xf32>
    %cst_17 = arith.constant dense<0.000000e+00> : vector<16xf32>
    %26 = vector.multi_reduction <add>, %25, %cst_17 [1] : vector<16x8xf32> to vector<16xf32>
    %27 = vector.shape_cast %26 : vector<16xf32> to vector<16x1xf32>
    %cst_18 = arith.constant 5.000000e-01 : f32
    %28 = vector.broadcast %cst_18 : f32 to vector<16x1xf32>
    %29 = arith.mulf %28, %27 : vector<16x1xf32>
    %30 = arith.mulf %22, %22 : vector<8x16xf32>
    %cst_19 = arith.constant dense<0.000000e+00> : vector<16xf32>
    %31 = vector.multi_reduction <add>, %30, %cst_19 [0] : vector<8x16xf32> to vector<16xf32>
    %32 = vector.shape_cast %31 : vector<16xf32> to vector<1x16xf32>
    %cst_20 = arith.constant 5.000000e-01 : f32
    %33 = vector.broadcast %cst_20 : f32 to vector<1x16xf32>
    %34 = arith.mulf %33, %32 : vector<1x16xf32>
    %35 = vector.broadcast %29 : vector<16x1xf32> to vector<16x16xf32>
    %36 = arith.subf %23, %35 : vector<16x16xf32>
    %cst_21 = arith.constant dense<0xFF800000> : vector<16xf32>
    %37 = vector.multi_reduction <maximumf>, %23, %cst_21 [1] : vector<16x16xf32> to vector<16xf32>
    %38 = vector.shape_cast %37 : vector<16xf32> to vector<16x1xf32>
    %39 = vector.broadcast %38 : vector<16x1xf32> to vector<16x16xf32>
    %40 = arith.subf %36, %39 : vector<16x16xf32>
    %41 = math.exp %40 : vector<16x16xf32>
    %cst_22 = arith.constant 9.99999997E-7 : f32
    %42 = vector.broadcast %cst_22 : f32 to vector<16x16xf32>
    %43 = arith.addf %41, %42 : vector<16x16xf32>
    %cst_23 = arith.constant 2.500000e-01 : f32
    %44 = vector.broadcast %cst_23 : f32 to vector<16x16xf32>
    %45 = arith.mulf %44, %43 : vector<16x16xf32>
    %46 = vector.broadcast %34 : vector<1x16xf32> to vector<16x16xf32>
    %47 = arith.subf %24, %46 : vector<16x16xf32>
    %48 = vector.shape_cast %24 : vector<16x16xf32> to vector<1x16x16xf32>
    %cst_24 = arith.constant dense<0xFF800000> : vector<1xf32>
    %49 = vector.multi_reduction <maximumf>, %48, %cst_24 [1, 2] : vector<1x16x16xf32> to vector<1xf32>
    %50 = vector.shape_cast %49 : vector<1xf32> to vector<1x1x1xf32>
    %51 = vector.extract %50[0, 0, 0] : f32 from vector<1x1x1xf32>
    %52 = vector.broadcast %51 : f32 to vector<1x1xf32>
    %53 = vector.broadcast %52 : vector<1x1xf32> to vector<16x16xf32>
    %54 = arith.subf %47, %53 : vector<16x16xf32>
    %55 = math.exp %54 : vector<16x16xf32>
    %cst_25 = arith.constant 9.99999997E-7 : f32
    %56 = vector.broadcast %cst_25 : f32 to vector<16x16xf32>
    %57 = arith.addf %55, %56 : vector<16x16xf32>
    %cst_26 = arith.constant 2.500000e-01 : f32
    %58 = vector.broadcast %cst_26 : f32 to vector<16x16xf32>
    %59 = arith.mulf %58, %57 : vector<16x16xf32>
    %c0_27 = arith.constant 0 : index
    %c0_28 = arith.constant 0 : index
    %c0_29 = arith.constant 0 : index
    %c0_30 = arith.constant 0 : index
    %60 = vector.load %arg6[%c0_27, %c0_28, %c0_29, %c0_30] : memref<2x2x16x8xf32, #tpu.memory_space<vmem>>, vector<1x1x16x8xf32>
    %61 = vector.shape_cast %60 : vector<1x1x16x8xf32> to vector<16x8xf32>
    %62 = math.exp %61 : vector<16x8xf32>
    %cst_31 = arith.constant dense<0.000000e+00> : vector<16x64xf32>
    %63 = tpu.matmul %62, %17, %cst_31 {dimension_numbers = #tpu.dot_dimension_numbers<[1], [0], [0], [1], [0, 0, 1, 1], [], []>} : vector<16x8xf32>, vector<8x64xf32>, vector<16x64xf32> -> vector<16x64xf32>
    %cst_32 = arith.constant dense<0.000000e+00> : vector<16x64xf32>
    %64 = tpu.matmul %21, %18, %cst_32 {dimension_numbers = #tpu.dot_dimension_numbers<[1], [0], [0], [1], [0, 0, 1, 1], [], []>} : vector<16x8xf32>, vector<8x64xf32>, vector<16x64xf32> -> vector<16x64xf32>
    %65 = arith.mulf %63, %64 : vector<16x64xf32>
    %cst_33 = arith.constant dense<0.000000e+00> : vector<16x64xf32>
    %66 = tpu.matmul %59, %65, %cst_33 {dimension_numbers = #tpu.dot_dimension_numbers<[1], [0], [0], [1], [0, 0, 1, 1], [], []>} : vector<16x16xf32>, vector<16x64xf32>, vector<16x64xf32> -> vector<16x64xf32>
    %cst_34 = arith.constant dense<0.000000e+00> : vector<16x8xf32>
    %67 = tpu.matmul %59, %62, %cst_34 {dimension_numbers = #tpu.dot_dimension_numbers<[1], [0], [0], [1], [0, 0, 1, 1], [], []>} : vector<16x16xf32>, vector<16x8xf32>, vector<16x8xf32> -> vector<16x8xf32>
    %cst_35 = arith.constant dense<0.000000e+00> : vector<16x64xf32>
    %68 = tpu.matmul %45, %66, %cst_35 {dimension_numbers = #tpu.dot_dimension_numbers<[1], [0], [0], [1], [0, 0, 1, 1], [], []>} : vector<16x16xf32>, vector<16x64xf32>, vector<16x64xf32> -> vector<16x64xf32>
    %cst_36 = arith.constant dense<0.000000e+00> : vector<16x8xf32>
    %69 = tpu.matmul %45, %67, %cst_36 {dimension_numbers = #tpu.dot_dimension_numbers<[1], [0], [0], [1], [0, 0, 1, 1], [], []>} : vector<16x16xf32>, vector<16x8xf32>, vector<16x8xf32> -> vector<16x8xf32>
    %70 = tpu.reciprocal %69 : vector<16x8xf32> -> vector<16x8xf32>
    %cst_37 = arith.constant dense<0.000000e+00> : vector<16x64xf32>
    %71 = tpu.matmul %70, %17, %cst_37 {dimension_numbers = #tpu.dot_dimension_numbers<[1], [0], [0], [1], [0, 0, 1, 1], [], []>} : vector<16x8xf32>, vector<8x64xf32>, vector<16x64xf32> -> vector<16x64xf32>
    %72 = arith.mulf %68, %71 : vector<16x64xf32>
    %c0_38 = arith.constant 0 : index
    %c0_39 = arith.constant 0 : index
    %c0_40 = arith.constant 0 : index
    %73 = vector.load %arg9[%c0_38, %c0_39, %c0_40] : memref<2x64x8xf32, #tpu.memory_space<vmem>>, vector<1x64x8xf32>
    %74 = vector.shape_cast %73 : vector<1x64x8xf32> to vector<64x8xf32>
    %cst_41 = arith.constant dense<0.000000e+00> : vector<16x8xf32>
    %75 = tpu.matmul %72, %74, %cst_41 {dimension_numbers = #tpu.dot_dimension_numbers<[1], [0], [0], [1], [0, 0, 1, 1], [], []>} : vector<16x64xf32>, vector<64x8xf32>, vector<16x8xf32> -> vector<16x8xf32>
    %76 = arith.addf %19, %75 : vector<16x8xf32>
    %77 = vector.extract_strided_slice %12 {offsets = [0, 8], sizes = [16, 8], strides = [1, 1]} : vector<32x16xf32> to vector<16x8xf32>
    %78 = vector.extract_strided_slice %13 {offsets = [0, 8], sizes = [16, 8], strides = [1, 1]} : vector<32x16xf32> to vector<16x8xf32>
    %79 = vector.extract_strided_slice %15 {offsets = [8, 0], sizes = [8, 16], strides = [1, 1]} : vector<16x32xf32> to vector<8x16xf32>
    %80 = vector.extract_strided_slice %14 {offsets = [0, 16], sizes = [16, 16], strides = [1, 1]} : vector<32x32xf32> to vector<16x16xf32>
    %81 = vector.extract_strided_slice %16 {offsets = [16, 0], sizes = [16, 16], strides = [1, 1]} : vector<32x32xf32> to vector<16x16xf32>
    %82 = arith.mulf %77, %77 : vector<16x8xf32>
    %cst_42 = arith.constant dense<0.000000e+00> : vector<16xf32>
    %83 = vector.multi_reduction <add>, %82, %cst_42 [1] : vector<16x8xf32> to vector<16xf32>
    %84 = vector.shape_cast %83 : vector<16xf32> to vector<16x1xf32>
    %cst_43 = arith.constant 5.000000e-01 : f32
    %85 = vector.broadcast %cst_43 : f32 to vector<16x1xf32>
    %86 = arith.mulf %85, %84 : vector<16x1xf32>
    %87 = arith.mulf %79, %79 : vector<8x16xf32>
    %cst_44 = arith.constant dense<0.000000e+00> : vector<16xf32>
    %88 = vector.multi_reduction <add>, %87, %cst_44 [0] : vector<8x16xf32> to vector<16xf32>
    %89 = vector.shape_cast %88 : vector<16xf32> to vector<1x16xf32>
    %cst_45 = arith.constant 5.000000e-01 : f32
    %90 = vector.broadcast %cst_45 : f32 to vector<1x16xf32>
    %91 = arith.mulf %90, %89 : vector<1x16xf32>
    %92 = vector.broadcast %86 : vector<16x1xf32> to vector<16x16xf32>
    %93 = arith.subf %80, %92 : vector<16x16xf32>
    %cst_46 = arith.constant dense<0xFF800000> : vector<16xf32>
    %94 = vector.multi_reduction <maximumf>, %80, %cst_46 [1] : vector<16x16xf32> to vector<16xf32>
    %95 = vector.shape_cast %94 : vector<16xf32> to vector<16x1xf32>
    %96 = vector.broadcast %95 : vector<16x1xf32> to vector<16x16xf32>
    %97 = arith.subf %93, %96 : vector<16x16xf32>
    %98 = math.exp %97 : vector<16x16xf32>
    %cst_47 = arith.constant 9.99999997E-7 : f32
    %99 = vector.broadcast %cst_47 : f32 to vector<16x16xf32>
    %100 = arith.addf %98, %99 : vector<16x16xf32>
    %cst_48 = arith.constant 2.500000e-01 : f32
    %101 = vector.broadcast %cst_48 : f32 to vector<16x16xf32>
    %102 = arith.mulf %101, %100 : vector<16x16xf32>
    %103 = vector.broadcast %91 : vector<1x16xf32> to vector<16x16xf32>
    %104 = arith.subf %81, %103 : vector<16x16xf32>
    %105 = vector.shape_cast %81 : vector<16x16xf32> to vector<1x16x16xf32>
    %cst_49 = arith.constant dense<0xFF800000> : vector<1xf32>
    %106 = vector.multi_reduction <maximumf>, %105, %cst_49 [1, 2] : vector<1x16x16xf32> to vector<1xf32>
    %107 = vector.shape_cast %106 : vector<1xf32> to vector<1x1x1xf32>
    %108 = vector.extract %107[0, 0, 0] : f32 from vector<1x1x1xf32>
    %109 = vector.broadcast %108 : f32 to vector<1x1xf32>
    %110 = vector.broadcast %109 : vector<1x1xf32> to vector<16x16xf32>
    %111 = arith.subf %104, %110 : vector<16x16xf32>
    %112 = math.exp %111 : vector<16x16xf32>
    %cst_50 = arith.constant 9.99999997E-7 : f32
    %113 = vector.broadcast %cst_50 : f32 to vector<16x16xf32>
    %114 = arith.addf %112, %113 : vector<16x16xf32>
    %cst_51 = arith.constant 2.500000e-01 : f32
    %115 = vector.broadcast %cst_51 : f32 to vector<16x16xf32>
    %116 = arith.mulf %115, %114 : vector<16x16xf32>
    %c0_52 = arith.constant 0 : index
    %c1 = arith.constant 1 : index
    %c0_53 = arith.constant 0 : index
    %c0_54 = arith.constant 0 : index
    %117 = vector.load %arg6[%c0_52, %c1, %c0_53, %c0_54] : memref<2x2x16x8xf32, #tpu.memory_space<vmem>>, vector<1x1x16x8xf32>
    %118 = vector.shape_cast %117 : vector<1x1x16x8xf32> to vector<16x8xf32>
    %119 = math.exp %118 : vector<16x8xf32>
    %cst_55 = arith.constant dense<0.000000e+00> : vector<16x64xf32>
    %120 = tpu.matmul %119, %17, %cst_55 {dimension_numbers = #tpu.dot_dimension_numbers<[1], [0], [0], [1], [0, 0, 1, 1], [], []>} : vector<16x8xf32>, vector<8x64xf32>, vector<16x64xf32> -> vector<16x64xf32>
    %cst_56 = arith.constant dense<0.000000e+00> : vector<16x64xf32>
    %121 = tpu.matmul %78, %18, %cst_56 {dimension_numbers = #tpu.dot_dimension_numbers<[1], [0], [0], [1], [0, 0, 1, 1], [], []>} : vector<16x8xf32>, vector<8x64xf32>, vector<16x64xf32> -> vector<16x64xf32>
    %122 = arith.mulf %120, %121 : vector<16x64xf32>
    %cst_57 = arith.constant dense<0.000000e+00> : vector<16x64xf32>
    %123 = tpu.matmul %116, %122, %cst_57 {dimension_numbers = #tpu.dot_dimension_numbers<[1], [0], [0], [1], [0, 0, 1, 1], [], []>} : vector<16x16xf32>, vector<16x64xf32>, vector<16x64xf32> -> vector<16x64xf32>
    %cst_58 = arith.constant dense<0.000000e+00> : vector<16x8xf32>
    %124 = tpu.matmul %116, %119, %cst_58 {dimension_numbers = #tpu.dot_dimension_numbers<[1], [0], [0], [1], [0, 0, 1, 1], [], []>} : vector<16x16xf32>, vector<16x8xf32>, vector<16x8xf32> -> vector<16x8xf32>
    %cst_59 = arith.constant dense<0.000000e+00> : vector<16x64xf32>
    %125 = tpu.matmul %102, %123, %cst_59 {dimension_numbers = #tpu.dot_dimension_numbers<[1], [0], [0], [1], [0, 0, 1, 1], [], []>} : vector<16x16xf32>, vector<16x64xf32>, vector<16x64xf32> -> vector<16x64xf32>
    %cst_60 = arith.constant dense<0.000000e+00> : vector<16x8xf32>
    %126 = tpu.matmul %102, %124, %cst_60 {dimension_numbers = #tpu.dot_dimension_numbers<[1], [0], [0], [1], [0, 0, 1, 1], [], []>} : vector<16x16xf32>, vector<16x8xf32>, vector<16x8xf32> -> vector<16x8xf32>
    %127 = tpu.reciprocal %126 : vector<16x8xf32> -> vector<16x8xf32>
    %cst_61 = arith.constant dense<0.000000e+00> : vector<16x64xf32>
    %128 = tpu.matmul %127, %17, %cst_61 {dimension_numbers = #tpu.dot_dimension_numbers<[1], [0], [0], [1], [0, 0, 1, 1], [], []>} : vector<16x8xf32>, vector<8x64xf32>, vector<16x64xf32> -> vector<16x64xf32>
    %129 = arith.mulf %125, %128 : vector<16x64xf32>
    %c1_62 = arith.constant 1 : index
    %c0_63 = arith.constant 0 : index
    %c0_64 = arith.constant 0 : index
    %130 = vector.load %arg9[%c1_62, %c0_63, %c0_64] : memref<2x64x8xf32, #tpu.memory_space<vmem>>, vector<1x64x8xf32>
    %131 = vector.shape_cast %130 : vector<1x64x8xf32> to vector<64x8xf32>
    %cst_65 = arith.constant dense<0.000000e+00> : vector<16x8xf32>
    %132 = tpu.matmul %129, %131, %cst_65 {dimension_numbers = #tpu.dot_dimension_numbers<[1], [0], [0], [1], [0, 0, 1, 1], [], []>} : vector<16x64xf32>, vector<64x8xf32>, vector<16x8xf32> -> vector<16x8xf32>
    %133 = arith.addf %76, %132 : vector<16x8xf32>
    %c0_66 = arith.constant 0 : index
    %c0_67 = arith.constant 0 : index
    %134 = vector.load %arg10[%c0_66, %c0_67] : memref<1x8xf32, #tpu.memory_space<vmem>>, vector<1x8xf32>
    %135 = vector.broadcast %134 : vector<1x8xf32> to vector<16x8xf32>
    %136 = arith.addf %133, %135 : vector<16x8xf32>
    %c0_68 = arith.constant 0 : index
    %c0_69 = arith.constant 0 : index
    %137 = vector.load %arg11[%c0_68, %c0_69] : memref<32x8xf32, #tpu.memory_space<vmem>>, vector<16x8xf32>
    tpu.vector_store %arg11[%c0_68, %c0_69], %136 {strides = array<i32>} : memref<32x8xf32, #tpu.memory_space<vmem>>, vector<16x8xf32>,
    %cst_70 = arith.constant 0.000000e+00 : f32
    %138 = vector.broadcast %cst_70 : f32 to vector<16x8xf32>
    %139 = vector.extract_strided_slice %12 {offsets = [16, 0], sizes = [16, 8], strides = [1, 1]} : vector<32x16xf32> to vector<16x8xf32>
    %140 = vector.extract_strided_slice %13 {offsets = [16, 0], sizes = [16, 8], strides = [1, 1]} : vector<32x16xf32> to vector<16x8xf32>
    %141 = vector.extract_strided_slice %15 {offsets = [0, 16], sizes = [8, 16], strides = [1, 1]} : vector<16x32xf32> to vector<8x16xf32>
    %142 = vector.extract_strided_slice %14 {offsets = [16, 0], sizes = [16, 16], strides = [1, 1]} : vector<32x32xf32> to vector<16x16xf32>
    %143 = vector.extract_strided_slice %16 {offsets = [0, 16], sizes = [16, 16], strides = [1, 1]} : vector<32x32xf32> to vector<16x16xf32>
    %144 = arith.mulf %139, %139 : vector<16x8xf32>
    %cst_71 = arith.constant dense<0.000000e+00> : vector<16xf32>
    %145 = vector.multi_reduction <add>, %144, %cst_71 [1] : vector<16x8xf32> to vector<16xf32>
    %146 = vector.shape_cast %145 : vector<16xf32> to vector<16x1xf32>
    %cst_72 = arith.constant 5.000000e-01 : f32
    %147 = vector.broadcast %cst_72 : f32 to vector<16x1xf32>
    %148 = arith.mulf %147, %146 : vector<16x1xf32>
    %149 = arith.mulf %141, %141 : vector<8x16xf32>
    %cst_73 = arith.constant dense<0.000000e+00> : vector<16xf32>
    %150 = vector.multi_reduction <add>, %149, %cst_73 [0] : vector<8x16xf32> to vector<16xf32>
    %151 = vector.shape_cast %150 : vector<16xf32> to vector<1x16xf32>
    %cst_74 = arith.constant 5.000000e-01 : f32
    %152 = vector.broadcast %cst_74 : f32 to vector<1x16xf32>
    %153 = arith.mulf %152, %151 : vector<1x16xf32>
    %154 = vector.broadcast %148 : vector<16x1xf32> to vector<16x16xf32>
    %155 = arith.subf %142, %154 : vector<16x16xf32>
    %cst_75 = arith.constant dense<0xFF800000> : vector<16xf32>
    %156 = vector.multi_reduction <maximumf>, %142, %cst_75 [1] : vector<16x16xf32> to vector<16xf32>
    %157 = vector.shape_cast %156 : vector<16xf32> to vector<16x1xf32>
    %158 = vector.broadcast %157 : vector<16x1xf32> to vector<16x16xf32>
    %159 = arith.subf %155, %158 : vector<16x16xf32>
    %160 = math.exp %159 : vector<16x16xf32>
    %cst_76 = arith.constant 9.99999997E-7 : f32
    %161 = vector.broadcast %cst_76 : f32 to vector<16x16xf32>
    %162 = arith.addf %160, %161 : vector<16x16xf32>
    %cst_77 = arith.constant 2.500000e-01 : f32
    %163 = vector.broadcast %cst_77 : f32 to vector<16x16xf32>
    %164 = arith.mulf %163, %162 : vector<16x16xf32>
    %165 = vector.broadcast %153 : vector<1x16xf32> to vector<16x16xf32>
    %166 = arith.subf %143, %165 : vector<16x16xf32>
    %167 = vector.shape_cast %143 : vector<16x16xf32> to vector<1x16x16xf32>
    %cst_78 = arith.constant dense<0xFF800000> : vector<1xf32>
    %168 = vector.multi_reduction <maximumf>, %167, %cst_78 [1, 2] : vector<1x16x16xf32> to vector<1xf32>
    %169 = vector.shape_cast %168 : vector<1xf32> to vector<1x1x1xf32>
    %170 = vector.extract %169[0, 0, 0] : f32 from vector<1x1x1xf32>
    %171 = vector.broadcast %170 : f32 to vector<1x1xf32>
    %172 = vector.broadcast %171 : vector<1x1xf32> to vector<16x16xf32>
    %173 = arith.subf %166, %172 : vector<16x16xf32>
    %174 = math.exp %173 : vector<16x16xf32>
    %cst_79 = arith.constant 9.99999997E-7 : f32
    %175 = vector.broadcast %cst_79 : f32 to vector<16x16xf32>
    %176 = arith.addf %174, %175 : vector<16x16xf32>
    %cst_80 = arith.constant 2.500000e-01 : f32
    %177 = vector.broadcast %cst_80 : f32 to vector<16x16xf32>
    %178 = arith.mulf %177, %176 : vector<16x16xf32>
    %c1_81 = arith.constant 1 : index
    %c0_82 = arith.constant 0 : index
    %c0_83 = arith.constant 0 : index
    %c0_84 = arith.constant 0 : index
    %179 = vector.load %arg6[%c1_81, %c0_82, %c0_83, %c0_84] : memref<2x2x16x8xf32, #tpu.memory_space<vmem>>, vector<1x1x16x8xf32>
    %180 = vector.shape_cast %179 : vector<1x1x16x8xf32> to vector<16x8xf32>
    %181 = math.exp %180 : vector<16x8xf32>
    %cst_85 = arith.constant dense<0.000000e+00> : vector<16x64xf32>
    %182 = tpu.matmul %181, %17, %cst_85 {dimension_numbers = #tpu.dot_dimension_numbers<[1], [0], [0], [1], [0, 0, 1, 1], [], []>} : vector<16x8xf32>, vector<8x64xf32>, vector<16x64xf32> -> vector<16x64xf32>
    %cst_86 = arith.constant dense<0.000000e+00> : vector<16x64xf32>
    %183 = tpu.matmul %140, %18, %cst_86 {dimension_numbers = #tpu.dot_dimension_numbers<[1], [0], [0], [1], [0, 0, 1, 1], [], []>} : vector<16x8xf32>, vector<8x64xf32>, vector<16x64xf32> -> vector<16x64xf32>
    %184 = arith.mulf %182, %183 : vector<16x64xf32>
    %cst_87 = arith.constant dense<0.000000e+00> : vector<16x64xf32>
    %185 = tpu.matmul %178, %184, %cst_87 {dimension_numbers = #tpu.dot_dimension_numbers<[1], [0], [0], [1], [0, 0, 1, 1], [], []>} : vector<16x16xf32>, vector<16x64xf32>, vector<16x64xf32> -> vector<16x64xf32>
    %cst_88 = arith.constant dense<0.000000e+00> : vector<16x8xf32>
    %186 = tpu.matmul %178, %181, %cst_88 {dimension_numbers = #tpu.dot_dimension_numbers<[1], [0], [0], [1], [0, 0, 1, 1], [], []>} : vector<16x16xf32>, vector<16x8xf32>, vector<16x8xf32> -> vector<16x8xf32>
    %cst_89 = arith.constant dense<0.000000e+00> : vector<16x64xf32>
    %187 = tpu.matmul %164, %185, %cst_89 {dimension_numbers = #tpu.dot_dimension_numbers<[1], [0], [0], [1], [0, 0, 1, 1], [], []>} : vector<16x16xf32>, vector<16x64xf32>, vector<16x64xf32> -> vector<16x64xf32>
    %cst_90 = arith.constant dense<0.000000e+00> : vector<16x8xf32>
    %188 = tpu.matmul %164, %186, %cst_90 {dimension_numbers = #tpu.dot_dimension_numbers<[1], [0], [0], [1], [0, 0, 1, 1], [], []>} : vector<16x16xf32>, vector<16x8xf32>, vector<16x8xf32> -> vector<16x8xf32>
    %189 = tpu.reciprocal %188 : vector<16x8xf32> -> vector<16x8xf32>
    %cst_91 = arith.constant dense<0.000000e+00> : vector<16x64xf32>
    %190 = tpu.matmul %189, %17, %cst_91 {dimension_numbers = #tpu.dot_dimension_numbers<[1], [0], [0], [1], [0, 0, 1, 1], [], []>} : vector<16x8xf32>, vector<8x64xf32>, vector<16x64xf32> -> vector<16x64xf32>
    %191 = arith.mulf %187, %190 : vector<16x64xf32>
    %c0_92 = arith.constant 0 : index
    %c0_93 = arith.constant 0 : index
    %c0_94 = arith.constant 0 : index
    %192 = vector.load %arg9[%c0_92, %c0_93, %c0_94] : memref<2x64x8xf32, #tpu.memory_space<vmem>>, vector<1x64x8xf32>
    %193 = vector.shape_cast %192 : vector<1x64x8xf32> to vector<64x8xf32>
    %cst_95 = arith.constant dense<0.000000e+00> : vector<16x8xf32>
    %194 = tpu.matmul %191, %193, %cst_95 {dimension_numbers = #tpu.dot_dimension_numbers<[1], [0], [0], [1], [0, 0, 1, 1], [], []>} : vector<16x64xf32>, vector<64x8xf32>, vector<16x8xf32> -> vector<16x8xf32>
    %195 = arith.addf %138, %194 : vector<16x8xf32>
    %196 = vector.extract_strided_slice %12 {offsets = [16, 8], sizes = [16, 8], strides = [1, 1]} : vector<32x16xf32> to vector<16x8xf32>
    %197 = vector.extract_strided_slice %13 {offsets = [16, 8], sizes = [16, 8], strides = [1, 1]} : vector<32x16xf32> to vector<16x8xf32>
    %198 = vector.extract_strided_slice %15 {offsets = [8, 16], sizes = [8, 16], strides = [1, 1]} : vector<16x32xf32> to vector<8x16xf32>
    %199 = vector.extract_strided_slice %14 {offsets = [16, 16], sizes = [16, 16], strides = [1, 1]} : vector<32x32xf32> to vector<16x16xf32>
    %200 = vector.extract_strided_slice %16 {offsets = [16, 16], sizes = [16, 16], strides = [1, 1]} : vector<32x32xf32> to vector<16x16xf32>
    %201 = arith.mulf %196, %196 : vector<16x8xf32>
    %cst_96 = arith.constant dense<0.000000e+00> : vector<16xf32>
    %202 = vector.multi_reduction <add>, %201, %cst_96 [1] : vector<16x8xf32> to vector<16xf32>
    %203 = vector.shape_cast %202 : vector<16xf32> to vector<16x1xf32>
    %cst_97 = arith.constant 5.000000e-01 : f32
    %204 = vector.broadcast %cst_97 : f32 to vector<16x1xf32>
    %205 = arith.mulf %204, %203 : vector<16x1xf32>
    %206 = arith.mulf %198, %198 : vector<8x16xf32>
    %cst_98 = arith.constant dense<0.000000e+00> : vector<16xf32>
    %207 = vector.multi_reduction <add>, %206, %cst_98 [0] : vector<8x16xf32> to vector<16xf32>
    %208 = vector.shape_cast %207 : vector<16xf32> to vector<1x16xf32>
    %cst_99 = arith.constant 5.000000e-01 : f32
    %209 = vector.broadcast %cst_99 : f32 to vector<1x16xf32>
    %210 = arith.mulf %209, %208 : vector<1x16xf32>
    %211 = vector.broadcast %205 : vector<16x1xf32> to vector<16x16xf32>
    %212 = arith.subf %199, %211 : vector<16x16xf32>
    %cst_100 = arith.constant dense<0xFF800000> : vector<16xf32>
    %213 = vector.multi_reduction <maximumf>, %199, %cst_100 [1] : vector<16x16xf32> to vector<16xf32>
    %214 = vector.shape_cast %213 : vector<16xf32> to vector<16x1xf32>
    %215 = vector.broadcast %214 : vector<16x1xf32> to vector<16x16xf32>
    %216 = arith.subf %212, %215 : vector<16x16xf32>
    %217 = math.exp %216 : vector<16x16xf32>
    %cst_101 = arith.constant 9.99999997E-7 : f32
    %218 = vector.broadcast %cst_101 : f32 to vector<16x16xf32>
    %219 = arith.addf %217, %218 : vector<16x16xf32>
    %cst_102 = arith.constant 2.500000e-01 : f32
    %220 = vector.broadcast %cst_102 : f32 to vector<16x16xf32>
    %221 = arith.mulf %220, %219 : vector<16x16xf32>
    %222 = vector.broadcast %210 : vector<1x16xf32> to vector<16x16xf32>
    %223 = arith.subf %200, %222 : vector<16x16xf32>
    %224 = vector.shape_cast %200 : vector<16x16xf32> to vector<1x16x16xf32>
    %cst_103 = arith.constant dense<0xFF800000> : vector<1xf32>
    %225 = vector.multi_reduction <maximumf>, %224, %cst_103 [1, 2] : vector<1x16x16xf32> to vector<1xf32>
    %226 = vector.shape_cast %225 : vector<1xf32> to vector<1x1x1xf32>
    %227 = vector.extract %226[0, 0, 0] : f32 from vector<1x1x1xf32>
    %228 = vector.broadcast %227 : f32 to vector<1x1xf32>
    %229 = vector.broadcast %228 : vector<1x1xf32> to vector<16x16xf32>
    %230 = arith.subf %223, %229 : vector<16x16xf32>
    %231 = math.exp %230 : vector<16x16xf32>
    %cst_104 = arith.constant 9.99999997E-7 : f32
    %232 = vector.broadcast %cst_104 : f32 to vector<16x16xf32>
    %233 = arith.addf %231, %232 : vector<16x16xf32>
    %cst_105 = arith.constant 2.500000e-01 : f32
    %234 = vector.broadcast %cst_105 : f32 to vector<16x16xf32>
    %235 = arith.mulf %234, %233 : vector<16x16xf32>
    %c1_106 = arith.constant 1 : index
    %c1_107 = arith.constant 1 : index
    %c0_108 = arith.constant 0 : index
    %c0_109 = arith.constant 0 : index
    %236 = vector.load %arg6[%c1_106, %c1_107, %c0_108, %c0_109] : memref<2x2x16x8xf32, #tpu.memory_space<vmem>>, vector<1x1x16x8xf32>
    %237 = vector.shape_cast %236 : vector<1x1x16x8xf32> to vector<16x8xf32>
    %238 = math.exp %237 : vector<16x8xf32>
    %cst_110 = arith.constant dense<0.000000e+00> : vector<16x64xf32>
    %239 = tpu.matmul %238, %17, %cst_110 {dimension_numbers = #tpu.dot_dimension_numbers<[1], [0], [0], [1], [0, 0, 1, 1], [], []>} : vector<16x8xf32>, vector<8x64xf32>, vector<16x64xf32> -> vector<16x64xf32>
    %cst_111 = arith.constant dense<0.000000e+00> : vector<16x64xf32>
    %240 = tpu.matmul %197, %18, %cst_111 {dimension_numbers = #tpu.dot_dimension_numbers<[1], [0], [0], [1], [0, 0, 1, 1], [], []>} : vector<16x8xf32>, vector<8x64xf32>, vector<16x64xf32> -> vector<16x64xf32>
    %241 = arith.mulf %239, %240 : vector<16x64xf32>
    %cst_112 = arith.constant dense<0.000000e+00> : vector<16x64xf32>
    %242 = tpu.matmul %235, %241, %cst_112 {dimension_numbers = #tpu.dot_dimension_numbers<[1], [0], [0], [1], [0, 0, 1, 1], [], []>} : vector<16x16xf32>, vector<16x64xf32>, vector<16x64xf32> -> vector<16x64xf32>
    %cst_113 = arith.constant dense<0.000000e+00> : vector<16x8xf32>
    %243 = tpu.matmul %235, %238, %cst_113 {dimension_numbers = #tpu.dot_dimension_numbers<[1], [0], [0], [1], [0, 0, 1, 1], [], []>} : vector<16x16xf32>, vector<16x8xf32>, vector<16x8xf32> -> vector<16x8xf32>
    %cst_114 = arith.constant dense<0.000000e+00> : vector<16x64xf32>
    %244 = tpu.matmul %221, %242, %cst_114 {dimension_numbers = #tpu.dot_dimension_numbers<[1], [0], [0], [1], [0, 0, 1, 1], [], []>} : vector<16x16xf32>, vector<16x64xf32>, vector<16x64xf32> -> vector<16x64xf32>
    %cst_115 = arith.constant dense<0.000000e+00> : vector<16x8xf32>
    %245 = tpu.matmul %221, %243, %cst_115 {dimension_numbers = #tpu.dot_dimension_numbers<[1], [0], [0], [1], [0, 0, 1, 1], [], []>} : vector<16x16xf32>, vector<16x8xf32>, vector<16x8xf32> -> vector<16x8xf32>
    %246 = tpu.reciprocal %245 : vector<16x8xf32> -> vector<16x8xf32>
    %cst_116 = arith.constant dense<0.000000e+00> : vector<16x64xf32>
    %247 = tpu.matmul %246, %17, %cst_116 {dimension_numbers = #tpu.dot_dimension_numbers<[1], [0], [0], [1], [0, 0, 1, 1], [], []>} : vector<16x8xf32>, vector<8x64xf32>, vector<16x64xf32> -> vector<16x64xf32>
    %248 = arith.mulf %244, %247 : vector<16x64xf32>
    %c1_117 = arith.constant 1 : index
    %c0_118 = arith.constant 0 : index
    %c0_119 = arith.constant 0 : index
    %249 = vector.load %arg9[%c1_117, %c0_118, %c0_119] : memref<2x64x8xf32, #tpu.memory_space<vmem>>, vector<1x64x8xf32>
    %250 = vector.shape_cast %249 : vector<1x64x8xf32> to vector<64x8xf32>
    %cst_120 = arith.constant dense<0.000000e+00> : vector<16x8xf32>
    %251 = tpu.matmul %248, %250, %cst_120 {dimension_numbers = #tpu.dot_dimension_numbers<[1], [0], [0], [1], [0, 0, 1, 1], [], []>} : vector<16x64xf32>, vector<64x8xf32>, vector<16x8xf32> -> vector<16x8xf32>
    %252 = arith.addf %195, %251 : vector<16x8xf32>
    %c0_121 = arith.constant 0 : index
    %c0_122 = arith.constant 0 : index
    %253 = vector.load %arg10[%c0_121, %c0_122] : memref<1x8xf32, #tpu.memory_space<vmem>>, vector<1x8xf32>
    %254 = vector.broadcast %253 : vector<1x8xf32> to vector<16x8xf32>
    %255 = arith.addf %252, %254 : vector<16x8xf32>
    %c16 = arith.constant 16 : index
    %c0_123 = arith.constant 0 : index
    %256 = vector.load %arg11[%c16, %c0_123] : memref<32x8xf32, #tpu.memory_space<vmem>>, vector<16x8xf32>
    tpu.vector_store %arg11[%c16, %c0_123], %255 {strides = array<i32>} : memref<32x8xf32, #tpu.memory_space<vmem>>, vector<16x8xf32>,
    return
  }
}

</mosaic_0001>

<llo_original>
// kernel: tpu_custom_call.1
$region0: #{tpu_custom_call.1}
  #allocation0 [shape = 'u32[]', space=smem, size = 0x4, offset = 0x4, fixed_abs, tag = 'smem constant byte address 0x4 - core index']
  #allocation1 [shape = 'u32[144,128]{1,0:T(1,128)}', space=vmem, size = 0x12000, scoped, tag = 'internal scratch']
  %s0 = inlined_call_operand.vmem [shape: f32[32,16], index: 0, kind: input, shape index: {}]
  %s1 = inlined_call_operand.vmem [shape: f32[16,32], index: 1, kind: input, shape index: {}]
  %s2 = inlined_call_operand.vmem [shape: f32[16,64], index: 2, kind: input, shape index: {}]
  %s3 = inlined_call_operand.vmem [shape: f32[1,64], index: 3, kind: input, shape index: {}]
  %s4 = inlined_call_operand.vmem [shape: f32[48,16], index: 4, kind: input, shape index: {}]
  %s5 = inlined_call_operand.vmem [shape: f32[48,1], index: 5, kind: input, shape index: {}]
  %s6 = inlined_call_operand.vmem [shape: f32[2,2,16,8], index: 6, kind: input, shape index: {}]
  %s7 = inlined_call_operand.vmem [shape: f32[8,64], index: 7, kind: input, shape index: {}]
  %s8 = inlined_call_operand.vmem [shape: f32[8,64], index: 8, kind: input, shape index: {}]
  %s9 = inlined_call_operand.vmem [shape: f32[2,64,8], index: 9, kind: input, shape index: {}]
  %s10 = inlined_call_operand.vmem [shape: f32[1,8], index: 10, kind: input, shape index: {}]
  %s11 = inlined_call_operand.vmem [shape: f32[32,8], index: 11, kind: output, shape index: {}]
  %s12 = sld [smem:[#allocation0]]
  $region54: #{tpu_custom_call.1} parent=0
    _
  %s14 = ssub.s32 1, %s12
  %s15 = scalar_select 0, %s14, %s12
  // Predicated region
  $region2: #{tpu_custom_call.1} parent=0 // pred_check
    _
  $region3: #{tpu_custom_call.1} parent=0 // pred_check_branch
    %17 = sbr.rel (0) target = $region5
  $region4: #{tpu_custom_call.1} parent=0 // pred_region
    _
  $region5: #{tpu_custom_call.1} parent=0 // pred_fallthru
    _
  // Predicated region
  $region6: #{tpu_custom_call.1} parent=0 // pred_check
    _
  $region7: #{tpu_custom_call.1} parent=0 // pred_check_branch
    %19 = sbr.rel (0) target = $region9
  $region8: #{tpu_custom_call.1} parent=0 // pred_region
    _
  $region9: #{tpu_custom_call.1} parent=0 // pred_fallthru
    _
  // Predicated region
  $region10: #{tpu_custom_call.1} parent=0 // pred_check
    _
  $region11: #{tpu_custom_call.1} parent=0 // pred_check_branch
    %21 = sbr.rel (0) target = $region13
  $region12: #{tpu_custom_call.1} parent=0 // pred_region
    _
  $region13: #{tpu_custom_call.1} parent=0 // pred_fallthru
    _
  // Predicated region
  $region14: #{tpu_custom_call.1} parent=0 // pred_check
    _
  $region15: #{tpu_custom_call.1} parent=0 // pred_check_branch
    %23 = sbr.rel (0) target = $region17
  $region16: #{tpu_custom_call.1} parent=0 // pred_region
    _
  $region17: #{tpu_custom_call.1} parent=0 // pred_fallthru
    _
  // Predicated region
  $region18: #{tpu_custom_call.1} parent=0 // pred_check
    _
  $region19: #{tpu_custom_call.1} parent=0 // pred_check_branch
    %25 = sbr.rel (0) target = $region21
  $region20: #{tpu_custom_call.1} parent=0 // pred_region
    _
  $region21: #{tpu_custom_call.1} parent=0 // pred_fallthru
    _
  // Predicated region
  $region22: #{tpu_custom_call.1} parent=0 // pred_check
    _
  $region23: #{tpu_custom_call.1} parent=0 // pred_check_branch
    %27 = sbr.rel (0) target = $region25
  $region24: #{tpu_custom_call.1} parent=0 // pred_region
    _
  $region25: #{tpu_custom_call.1} parent=0 // pred_fallthru
    _
  // Predicated region
  $region26: #{tpu_custom_call.1} parent=0 // pred_check
    _
  $region27: #{tpu_custom_call.1} parent=0 // pred_check_branch
    %29 = sbr.rel (0) target = $region29
  $region28: #{tpu_custom_call.1} parent=0 // pred_region
    _
  $region29: #{tpu_custom_call.1} parent=0 // pred_fallthru
    _
  // Predicated region
  $region30: #{tpu_custom_call.1} parent=0 // pred_check
    _
  $region31: #{tpu_custom_call.1} parent=0 // pred_check_branch
    %31 = sbr.rel (0) target = $region33
  $region32: #{tpu_custom_call.1} parent=0 // pred_region
    _
  $region33: #{tpu_custom_call.1} parent=0 // pred_fallthru
    _
  // Predicated region
  $region34: #{tpu_custom_call.1} parent=0 // pred_check
    _
  $region35: #{tpu_custom_call.1} parent=0 // pred_check_branch
    %33 = sbr.rel (0) target = $region37
  $region36: #{tpu_custom_call.1} parent=0 // pred_region
    _
  $region37: #{tpu_custom_call.1} parent=0 // pred_fallthru
    _
  // Predicated region
  $region38: #{tpu_custom_call.1} parent=0 // pred_check
    _
  $region39: #{tpu_custom_call.1} parent=0 // pred_check_branch
    %35 = sbr.rel (0) target = $region41
  $region40: #{tpu_custom_call.1} parent=0 // pred_region
    _
  $region41: #{tpu_custom_call.1} parent=0 // pred_fallthru
    _
  // Predicated region
  $region42: #{tpu_custom_call.1} parent=0 // pred_check
    _
  $region43: #{tpu_custom_call.1} parent=0 // pred_check_branch
    %37 = sbr.rel (0) target = $region45
  $region44: #{tpu_custom_call.1} parent=0 // pred_region
    _
  $region45: #{tpu_custom_call.1} parent=0 // pred_fallthru
    _
  %v38 = vld [vmem:[%s0] sm:$0xff]
  %v39 = vld [vmem:[%s0 + $0x8] sm:$0xff]
  %v40 = vld [vmem:[%s0 + $0x10] sm:$0xff]
  %v41 = vld [vmem:[%s0 + $0x18] sm:$0xff]
  %v42 = vld [vmem:[%s2] sm:$0xff]
  %v43 = vld [vmem:[%s2 + $0x8] sm:$0xff]
  %v44 = vld [vmem:[%s3] sm:$0x1]
  %v46 = vlaneseq
  %v47 = vshrl.u32 %v46, 7
  %v48 = vsub.s32 0, %v47
  %v49 = vrot.slane %v44, %v48
  %vm51 = vcmask 130048
  %v53 = vsel %vm51, %v38, 0
  %v56 = vsel %vm51, %v39, 0
  %v59 = vsel %vm51, %v40, 0
  %v62 = vsel %vm51, %v41, 0
  %64 = vmatprep.subr.mxu0 0.0
  %65 = vmatpush1.msra.mxu0 %v42
  %66 = vmatprep.subr.mxu0 0.0
  %67 = vmatpush1.msra.mxu0 %v43
  %68 = vmatprep.subr.mxu0 0.0
  %69 = vmatpush1.msra.mxu0 0.0
  %70 = vmatprep.subr.mxu0 0.0
  %71 = vmatpush1.msra.mxu0 0.0
  %72 = vmatprep.subr.mxu0 0.0
  %73 = vmatpush1.msra.mxu0 0.0
  %74 = vmatprep.subr.mxu0 0.0
  %75 = vmatpush1.msra.mxu0 0.0
  %76 = vmatprep.subr.mxu0 0.0
  %77 = vmatpush1.msra.mxu0 0.0
  %78 = vmatprep.subr.mxu0 0.0
  %79 = vmatpush1.msra.mxu0 0.0
  %80 = vmatprep.subr.mxu0 0.0
  %81 = vmatpush1.msra.mxu0 0.0
  %82 = vmatprep.subr.mxu0 0.0
  %83 = vmatpush1.msra.mxu0 0.0
  %84 = vmatprep.subr.mxu0 0.0
  %85 = vmatpush1.msra.mxu0 0.0
  %86 = vmatprep.subr.mxu0 0.0
  %87 = vmatpush1.msra.mxu0 0.0
  %88 = vmatprep.subr.mxu0 0.0
  %89 = vmatpush1.msra.mxu0 0.0
  %90 = vmatprep.subr.mxu0 0.0
  %91 = vmatpush1.msra.mxu0 0.0
  %92 = vmatprep.subr.mxu0 0.0
  %93 = vmatpush1.msra.mxu0 0.0
  %94 = vmatprep.subr.mxu0 0.0
  %95 = vmatpush1.msra.mxu0 0.0
  %96 = vmatprep.subr.mxu0 0.0
  %97 = vmatpush1.msra.mxu0 0.0
  %98 = vmatprep.subr.mxu0 0.0
  %99 = vmatpush1.msra.mxu0 0.0
  %100 = vmatprep.subr.mxu0 0.0
  %101 = vmatpush1.msra.mxu0 0.0
  %102 = vmatprep.subr.mxu0 0.0
  %103 = vmatpush1.msra.mxu0 0.0
  %104 = vmatprep.subr.mxu0 0.0
  %105 = vmatpush1.msra.mxu0 0.0
  %106 = vmatprep.subr.mxu0 0.0
  %107 = vmatpush1.msra.mxu0 0.0
  %108 = vmatprep.subr.mxu0 0.0
  %109 = vmatpush1.msra.mxu0 0.0
  %110 = vmatprep.subr.mxu0 0.0
  %111 = vmatpush1.msra.mxu0 0.0
  %112 = vmatprep.subr.mxu0 0.0
  %113 = vmatpush1.msra.mxu0 0.0
  %114 = vmatprep.subr.mxu0 0.0
  %115 = vmatpush1.msra.mxu0 0.0
  %116 = vmatprep.subr.mxu0 0.0
  %117 = vmatpush1.msra.mxu0 0.0
  %118 = vmatprep.subr.mxu0 0.0
  %119 = vmatpush1.msra.mxu0 0.0
  %120 = vmatprep.subr.mxu0 0.0
  %121 = vmatpush1.msra.mxu0 0.0
  %122 = vmatprep.subr.mxu0 0.0
  %123 = vmatpush1.msra.mxu0 0.0
  %124 = vmatprep.subr.mxu0 0.0
  %125 = vmatpush1.msra.mxu0 0.0
  %126 = vmatprep.subr.mxu0 0.0
  %127 = vmatpush1.msra.mxu0 0.0
  %128 = vmatprep.mubr.f32.mxu0 0.0
  %129 = vmatmul.mubr.f32.gmra.mrb[0].mxu0 %v53
  %v130 = vpop.f32.mrb[0].mxu0
  %v131 = vadd.f32 %v49, %v130
  %v132 = vpop.f32.mrb[0].mxu0
  %133 = vmatprep.mubr.f32.mxu0 0.0
  %134 = vmatmul.mubr.f32.gmra.mrb[0].mxu0 %v56
  %v135 = vpop.f32.mrb[0].mxu0
  %v136 = vadd.f32 %v49, %v135
  %v137 = vpop.f32.mrb[0].mxu0
  %138 = vmatprep.mubr.f32.mxu0 0.0
  %139 = vmatmul.mubr.f32.gmra.mrb[0].mxu0 %v59
  %v140 = vpop.f32.mrb[0].mxu0
  %v141 = vadd.f32 %v49, %v140
  %v142 = vpop.f32.mrb[0].mxu0
  %143 = vmatprep.mubr.f32.mxu0 0.0
  %144 = vmatmul.mubr.f32.gmra.mrb[0].mxu0 %v62
  %v145 = vpop.f32.mrb[0].mxu0
  %v146 = vadd.f32 %v49, %v145
  %v147 = vpop.f32.mrb[0].mxu0
  %148 = vdwg.mxu0
  %v149 = vld [vmem:[%s4] sm:$0xff]
  %v150 = vld [vmem:[%s4 + $0x8] sm:$0xff]
  %v151 = vld [vmem:[%s4 + $0x10] sm:$0xff]
  %v152 = vld [vmem:[%s4 + $0x18] sm:$0xff]
  %v153 = vld [vmem:[%s4 + $0x20] sm:$0xff]
  %v154 = vld [vmem:[%s4 + $0x28] sm:$0xff]
  %v155 = vld [vmem:[%s1] sm:$0xff]
  %v156 = vld [vmem:[%s1 + $0x8] sm:$0xff]
  %v157 = vld [vmem:[%s5] sm:$0xff]
  %v158 = vld [vmem:[%s5 + $0x8] sm:$0xff]
  %v159 = vld [vmem:[%s5 + $0x10] sm:$0xff]
  %v160 = vld [vmem:[%s5 + $0x18] sm:$0xff]
  %v161 = vld [vmem:[%s5 + $0x20] sm:$0xff]
  %v162 = vld [vmem:[%s5 + $0x28] sm:$0xff]
  %164 = vset.pattern.permute.xlu0 0
  %165 = vperm.xlu0 %164, %v157
  %v166 = vpop.permute.xlu0 %165
  %169 = vset.pattern.permute.xlu0 0
  %170 = vperm.xlu0 %169, %v158
  %v171 = vpop.permute.xlu0 %170
  %174 = vset.pattern.permute.xlu0 0
  %175 = vperm.xlu0 %174, %v159
  %v176 = vpop.permute.xlu0 %175
  %179 = vset.pattern.permute.xlu0 0
  %180 = vperm.xlu0 %179, %v160
  %v181 = vpop.permute.xlu0 %180
  %184 = vset.pattern.permute.xlu0 0
  %185 = vperm.xlu0 %184, %v161
  %v186 = vpop.permute.xlu0 %185
  %189 = vset.pattern.permute.xlu0 0
  %190 = vperm.xlu0 %189, %v162
  %v191 = vpop.permute.xlu0 %190
  %v194 = vsel %vm51, %v149, 0
  %v197 = vsel %vm51, %v150, 0
  %v200 = vsel %vm51, %v151, 0
  %v203 = vsel %vm51, %v152, 0
  %v206 = vsel %vm51, %v153, 0
  %v209 = vsel %vm51, %v154, 0
  %211 = vmatprep.subr.mxu0 0.0
  %212 = vmatpush1.msra.mxu0 %v155
  %213 = vmatprep.subr.mxu0 0.0
  %214 = vmatpush1.msra.mxu0 %v156
  %215 = vmatprep.subr.mxu0 0.0
  %216 = vmatpush1.msra.mxu0 0.0
  %217 = vmatprep.subr.mxu0 0.0
  %218 = vmatpush1.msra.mxu0 0.0
  %219 = vmatprep.subr.mxu0 0.0
  %220 = vmatpush1.msra.mxu0 0.0
  %221 = vmatprep.subr.mxu0 0.0
  %222 = vmatpush1.msra.mxu0 0.0
  %223 = vmatprep.subr.mxu0 0.0
  %224 = vmatpush1.msra.mxu0 0.0
  %225 = vmatprep.subr.mxu0 0.0
  %226 = vmatpush1.msra.mxu0 0.0
  %227 = vmatprep.subr.mxu0 0.0
  %228 = vmatpush1.msra.mxu0 0.0
  %229 = vmatprep.subr.mxu0 0.0
  %230 = vmatpush1.msra.mxu0 0.0
  %231 = vmatprep.subr.mxu0 0.0
  %232 = vmatpush1.msra.mxu0 0.0
  %233 = vmatprep.subr.mxu0 0.0
  %234 = vmatpush1.msra.mxu0 0.0
  %235 = vmatprep.subr.mxu0 0.0
  %236 = vmatpush1.msra.mxu0 0.0
  %237 = vmatprep.subr.mxu0 0.0
  %238 = vmatpush1.msra.mxu0 0.0
  %239 = vmatprep.subr.mxu0 0.0
  %240 = vmatpush1.msra.mxu0 0.0
  %241 = vmatprep.subr.mxu0 0.0
  %242 = vmatpush1.msra.mxu0 0.0
  %243 = vmatprep.subr.mxu0 0.0
  %244 = vmatpush1.msra.mxu0 0.0
  %245 = vmatprep.subr.mxu0 0.0
  %246 = vmatpush1.msra.mxu0 0.0
  %247 = vmatprep.subr.mxu0 0.0
  %248 = vmatpush1.msra.mxu0 0.0
  %249 = vmatprep.subr.mxu0 0.0
  %250 = vmatpush1.msra.mxu0 0.0
  %251 = vmatprep.subr.mxu0 0.0
  %252 = vmatpush1.msra.mxu0 0.0
  %253 = vmatprep.subr.mxu0 0.0
  %254 = vmatpush1.msra.mxu0 0.0
  %255 = vmatprep.subr.mxu0 0.0
  %256 = vmatpush1.msra.mxu0 0.0
  %257 = vmatprep.subr.mxu0 0.0
  %258 = vmatpush1.msra.mxu0 0.0
  %259 = vmatprep.subr.mxu0 0.0
  %260 = vmatpush1.msra.mxu0 0.0
  %261 = vmatprep.subr.mxu0 0.0
  %262 = vmatpush1.msra.mxu0 0.0
  %263 = vmatprep.subr.mxu0 0.0
  %264 = vmatpush1.msra.mxu0 0.0
  %265 = vmatprep.subr.mxu0 0.0
  %266 = vmatpush1.msra.mxu0 0.0
  %267 = vmatprep.subr.mxu0 0.0
  %268 = vmatpush1.msra.mxu0 0.0
  %269 = vmatprep.subr.mxu0 0.0
  %270 = vmatpush1.msra.mxu0 0.0
  %271 = vmatprep.subr.mxu0 0.0
  %272 = vmatpush1.msra.mxu0 0.0
  %273 = vmatprep.subr.mxu0 0.0
  %274 = vmatpush1.msra.mxu0 0.0
  %275 = vmatprep.mubr.f32.mxu0 0.0
  %276 = vmatmul.mubr.f32.gmra.mrb[0].mxu0 %v194
  %v277 = vpop.f32.mrb[0].mxu0
  %v278 = vadd.f32 %v166, %v277
  %v279 = vpop.f32.mrb[0].mxu0
  %280 = vmatprep.mubr.f32.mxu0 0.0
  %281 = vmatmul.mubr.f32.gmra.mrb[0].mxu0 %v197
  %v282 = vpop.f32.mrb[0].mxu0
  %v283 = vadd.f32 %v171, %v282
  %v284 = vpop.f32.mrb[0].mxu0
  %285 = vmatprep.mubr.f32.mxu0 0.0
  %286 = vmatmul.mubr.f32.gmra.mrb[0].mxu0 %v200
  %v287 = vpop.f32.mrb[0].mxu0
  %v288 = vadd.f32 %v176, %v287
  %v289 = vpop.f32.mrb[0].mxu0
  %290 = vmatprep.mubr.f32.mxu0 0.0
  %291 = vmatmul.mubr.f32.gmra.mrb[0].mxu0 %v203
  %v292 = vpop.f32.mrb[0].mxu0
  %v293 = vadd.f32 %v181, %v292
  %v294 = vpop.f32.mrb[0].mxu0
  %295 = vmatprep.mubr.f32.mxu0 0.0
  %296 = vmatmul.mubr.f32.gmra.mrb[0].mxu0 %v206
  %v297 = vpop.f32.mrb[0].mxu0
  %v298 = vadd.f32 %v186, %v297
  %v299 = vpop.f32.mrb[0].mxu0
  %300 = vmatprep.mubr.f32.mxu0 0.0
  %301 = vmatmul.mubr.f32.gmra.mrb[0].mxu0 %v209
  %v302 = vpop.f32.mrb[0].mxu0
  %v303 = vadd.f32 %v191, %v302
  %v304 = vpop.f32.mrb[0].mxu0
  %305 = vdwg.mxu0
  %v306 = vld [vmem:[%s7] sm:$0xff]
  %v307 = vld [vmem:[%s8] sm:$0xff]
  %v308 = vmul.f32 %v131, %v131
  %v309 = vmul.f32 %v136, %v136
  %vm310 = vcmask 64512
  %v311 = vsel %vm310, %v308, 0.0
  %312 = vadd.xlane.f32.xlu0 %v311
  %v313 = vpop.xlane.xlu0 %312
  %v314 = vsel %vm310, %v309, 0.0
  %315 = vadd.xlane.f32.xlu0 %v314
  %v316 = vpop.xlane.xlu0 %315
  %v317 = vmul.f32 %v313, 0.5
  %v318 = vmul.f32 %v316, 0.5
  %v319 = vmul.f32 %v278, %v278
  %v320 = vsel %vm51, %v319, 0.0
  %v321 = vrot.slane %v320, 4
  %v322 = vadd.f32 %v320, %v321
  %v323 = vrot.slane %v322, 2
  %v324 = vadd.f32 %v322, %v323
  %v325 = vrot.slane %v324, 1
  %v326 = vadd.f32 %v324, %v325
  %v327 = vmul.f32 %v326, 0.5
  %v328 = vsub.f32 %v131, %v317
  %v329 = vsub.f32 %v136, %v318
  %vm330 = vcmask 392448
  %v331 = vsel %vm330, %v131, -inf
  %332 = vmax.xlane.f32.xlu0 %v331
  %v333 = vpop.xlane.xlu0 %332
  %v334 = vsel %vm330, %v136, -inf
  %335 = vmax.xlane.f32.xlu0 %v334
  %v336 = vpop.xlane.xlu0 %335
  %v337 = vsub.f32 %v328, %v333
  %v338 = vsub.f32 %v329, %v336
  %v339 = vmul.f32 %v337, 1.442695
  %v340 = vpow.pop %v339
  %v341 = vmul.f32 %v338, 1.442695
  %v342 = vpow.pop %v341
  %v343 = vadd.f32 %v340, 1e-06
  %v344 = vadd.f32 %v342, 1e-06
  %v345 = vmul.f32 %v343, 0.25
  %v346 = vmul.f32 %v344, 0.25
  %v347 = vsub.f32 %v288, %v327
  %v348 = vsub.f32 %v293, %v327
  %v349 = vsel %vm51, %v288, -inf
  %v350 = vsel %vm51, %v293, -inf
  %v351 = vmax.f32 %v349, %v350
  %352 = vmax.xlane.f32.xlu0 %v351
  %v353 = vpop.xlane.xlu0 %352
  %v354 = vrot.slane %v353, 4
  %v355 = vmax.f32 %v353, %v354
  %v356 = vrot.slane %v355, 2
  %v357 = vmax.f32 %v355, %v356
  %v358 = vrot.slane %v357, 1
  %v359 = vmax.f32 %v357, %v358
  %s360 = vtos %v359
  %v361 = vstv %s360
  %v362 = vsub.f32 %v347, %v361
  %v363 = vsub.f32 %v348, %v361
  %v364 = vmul.f32 %v362, 1.442695
  %v365 = vpow.pop %v364
  %v366 = vmul.f32 %v363, 1.442695
  %v367 = vpow.pop %v366
  %v368 = vadd.f32 %v365, 1e-06
  %v369 = vadd.f32 %v367, 1e-06
  %v370 = vmul.f32 %v368, 0.25
  %v371 = vmul.f32 %v369, 0.25
  %v372 = vld [vmem:[%s6] sm:$0xff]
  %v373 = vld [vmem:[%s6 + $0x8] sm:$0xff]
  %v374 = vmul.f32 %v372, 1.442695
  %v375 = vpow.pop %v374
  %v376 = vmul.f32 %v373, 1.442695
  %v377 = vpow.pop %v376
  %v379 = vsel %vm310, %v375, 0
  %v382 = vsel %vm310, %v377, 0
  %384 = vmatprep.subr.mxu0 0.0
  %385 = vmatpush1.msra.mxu0 %v306
  %386 = vmatprep.subr.mxu0 0.0
  %387 = vmatpush1.msra.mxu0 0.0
  %388 = vmatprep.subr.mxu0 0.0
  %389 = vmatpush1.msra.mxu0 0.0
  %390 = vmatprep.subr.mxu0 0.0
  %391 = vmatpush1.msra.mxu0 0.0
  %392 = vmatprep.subr.mxu0 0.0
  %393 = vmatpush1.msra.mxu0 0.0
  %394 = vmatprep.subr.mxu0 0.0
  %395 = vmatpush1.msra.mxu0 0.0
  %396 = vmatprep.subr.mxu0 0.0
  %397 = vmatpush1.msra.mxu0 0.0
  %398 = vmatprep.subr.mxu0 0.0
  %399 = vmatpush1.msra.mxu0 0.0
  %400 = vmatprep.subr.mxu0 0.0
  %401 = vmatpush1.msra.mxu0 0.0
  %402 = vmatprep.subr.mxu0 0.0
  %403 = vmatpush1.msra.mxu0 0.0
  %404 = vmatprep.subr.mxu0 0.0
  %405 = vmatpush1.msra.mxu0 0.0
  %406 = vmatprep.subr.mxu0 0.0
  %407 = vmatpush1.msra.mxu0 0.0
  %408 = vmatprep.subr.mxu0 0.0
  %409 = vmatpush1.msra.mxu0 0.0
  %410 = vmatprep.subr.mxu0 0.0
  %411 = vmatpush1.msra.mxu0 0.0
  %412 = vmatprep.subr.mxu0 0.0
  %413 = vmatpush1.msra.mxu0 0.0
  %414 = vmatprep.subr.mxu0 0.0
  %415 = vmatpush1.msra.mxu0 0.0
  %416 = vmatprep.subr.mxu0 0.0
  %417 = vmatpush1.msra.mxu0 0.0
  %418 = vmatprep.subr.mxu0 0.0
  %419 = vmatpush1.msra.mxu0 0.0
  %420 = vmatprep.subr.mxu0 0.0
  %421 = vmatpush1.msra.mxu0 0.0
  %422 = vmatprep.subr.mxu0 0.0
  %423 = vmatpush1.msra.mxu0 0.0
  %424 = vmatprep.subr.mxu0 0.0
  %425 = vmatpush1.msra.mxu0 0.0
  %426 = vmatprep.subr.mxu0 0.0
  %427 = vmatpush1.msra.mxu0 0.0
  %428 = vmatprep.subr.mxu0 0.0
  %429 = vmatpush1.msra.mxu0 0.0
  %430 = vmatprep.subr.mxu0 0.0
  %431 = vmatpush1.msra.mxu0 0.0
  %432 = vmatprep.subr.mxu0 0.0
  %433 = vmatpush1.msra.mxu0 0.0
  %434 = vmatprep.subr.mxu0 0.0
  %435 = vmatpush1.msra.mxu0 0.0
  %436 = vmatprep.subr.mxu0 0.0
  %437 = vmatpush1.msra.mxu0 0.0
  %438 = vmatprep.subr.mxu0 0.0
  %439 = vmatpush1.msra.mxu0 0.0
  %440 = vmatprep.subr.mxu0 0.0
  %441 = vmatpush1.msra.mxu0 0.0
  %442 = vmatprep.subr.mxu0 0.0
  %443 = vmatpush1.msra.mxu0 0.0
  %444 = vmatprep.subr.mxu0 0.0
  %445 = vmatpush1.msra.mxu0 0.0
  %446 = vmatprep.subr.mxu0 0.0
  %447 = vmatpush1.msra.mxu0 0.0
  %448 = vmatprep.mubr.f32.mxu0 0.0
  %449 = vmatmul.mubr.f32.gmra.mrb[0].mxu0 %v379
  %v450 = vpop.f32.mrb[0].mxu0
  %v451 = vadd.f32 0.0, %v450
  %v452 = vpop.f32.mrb[0].mxu0
  %453 = vmatprep.mubr.f32.mxu0 0.0
  %454 = vmatmul.mubr.f32.gmra.mrb[0].mxu0 %v382
  %v455 = vpop.f32.mrb[0].mxu0
  %v456 = vadd.f32 0.0, %v455
  %v457 = vpop.f32.mrb[0].mxu0
  %458 = vdwg.mxu0
  %461 = vrot.lane.b32.xlu0 %v131, 112
  %v462 = vpop.permute.xlu0 %461
  %463 = vrot.lane.b32.xlu0 %v136, 112
  %v464 = vpop.permute.xlu0 %463
  %v465 = vsel %vm310, %v462, 0
  %v467 = vsel %vm310, %v464, 0
  %469 = vmatprep.subr.mxu0 0.0
  %470 = vmatpush1.msra.mxu0 %v307
  %471 = vmatprep.subr.mxu0 0.0
  %472 = vmatpush1.msra.mxu0 0.0
  %473 = vmatprep.subr.mxu0 0.0
  %474 = vmatpush1.msra.mxu0 0.0
  %475 = vmatprep.subr.mxu0 0.0
  %476 = vmatpush1.msra.mxu0 0.0
  %477 = vmatprep.subr.mxu0 0.0
  %478 = vmatpush1.msra.mxu0 0.0
  %479 = vmatprep.subr.mxu0 0.0
  %480 = vmatpush1.msra.mxu0 0.0
  %481 = vmatprep.subr.mxu0 0.0
  %482 = vmatpush1.msra.mxu0 0.0
  %483 = vmatprep.subr.mxu0 0.0
  %484 = vmatpush1.msra.mxu0 0.0
  %485 = vmatprep.subr.mxu0 0.0
  %486 = vmatpush1.msra.mxu0 0.0
  %487 = vmatprep.subr.mxu0 0.0
  %488 = vmatpush1.msra.mxu0 0.0
  %489 = vmatprep.subr.mxu0 0.0
  %490 = vmatpush1.msra.mxu0 0.0
  %491 = vmatprep.subr.mxu0 0.0
  %492 = vmatpush1.msra.mxu0 0.0
  %493 = vmatprep.subr.mxu0 0.0
  %494 = vmatpush1.msra.mxu0 0.0
  %495 = vmatprep.subr.mxu0 0.0
  %496 = vmatpush1.msra.mxu0 0.0
  %497 = vmatprep.subr.mxu0 0.0
  %498 = vmatpush1.msra.mxu0 0.0
  %499 = vmatprep.subr.mxu0 0.0
  %500 = vmatpush1.msra.mxu0 0.0
  %501 = vmatprep.subr.mxu0 0.0
  %502 = vmatpush1.msra.mxu0 0.0
  %503 = vmatprep.subr.mxu0 0.0
  %504 = vmatpush1.msra.mxu0 0.0
  %505 = vmatprep.subr.mxu0 0.0
  %506 = vmatpush1.msra.mxu0 0.0
  %507 = vmatprep.subr.mxu0 0.0
  %508 = vmatpush1.msra.mxu0 0.0
  %509 = vmatprep.subr.mxu0 0.0
  %510 = vmatpush1.msra.mxu0 0.0
  %511 = vmatprep.subr.mxu0 0.0
  %512 = vmatpush1.msra.mxu0 0.0
  %513 = vmatprep.subr.mxu0 0.0
  %514 = vmatpush1.msra.mxu0 0.0
  %515 = vmatprep.subr.mxu0 0.0
  %516 = vmatpush1.msra.mxu0 0.0
  %517 = vmatprep.subr.mxu0 0.0
  %518 = vmatpush1.msra.mxu0 0.0
  %519 = vmatprep.subr.mxu0 0.0
  %520 = vmatpush1.msra.mxu0 0.0
  %521 = vmatprep.subr.mxu0 0.0
  %522 = vmatpush1.msra.mxu0 0.0
  %523 = vmatprep.subr.mxu0 0.0
  %524 = vmatpush1.msra.mxu0 0.0
  %525 = vmatprep.subr.mxu0 0.0
  %526 = vmatpush1.msra.mxu0 0.0
  %527 = vmatprep.subr.mxu0 0.0
  %528 = vmatpush1.msra.mxu0 0.0
  %529 = vmatprep.subr.mxu0 0.0
  %530 = vmatpush1.msra.mxu0 0.0
  %531 = vmatprep.subr.mxu0 0.0
  %532 = vmatpush1.msra.mxu0 0.0
  %533 = vmatprep.mubr.f32.mxu0 0.0
  %534 = vmatmul.mubr.f32.gmra.mrb[0].mxu0 %v465
  %v535 = vpop.f32.mrb[0].mxu0
  %v536 = vadd.f32 0.0, %v535
  %v537 = vpop.f32.mrb[0].mxu0
  %538 = vmatprep.mubr.f32.mxu0 0.0
  %539 = vmatmul.mubr.f32.gmra.mrb[0].mxu0 %v467
  %v540 = vpop.f32.mrb[0].mxu0
  %v541 = vadd.f32 0.0, %v540
  %v542 = vpop.f32.mrb[0].mxu0
  %543 = vdwg.mxu0
  %v544 = vmul.f32 %v451, %v536
  %v545 = vmul.f32 %v456, %v541
  %v547 = vsel %vm51, %v370, 0
  %v550 = vsel %vm51, %v371, 0
  %552 = vmatprep.subr.mxu0 0.0
  %553 = vmatpush1.msra.mxu0 %v544
  %554 = vmatprep.subr.mxu0 0.0
  %555 = vmatpush1.msra.mxu0 %v545
  %556 = vmatprep.subr.mxu0 0.0
  %557 = vmatpush1.msra.mxu0 0.0
  %558 = vmatprep.subr.mxu0 0.0
  %559 = vmatpush1.msra.mxu0 0.0
  %560 = vmatprep.subr.mxu0 0.0
  %561 = vmatpush1.msra.mxu0 0.0
  %562 = vmatprep.subr.mxu0 0.0
  %563 = vmatpush1.msra.mxu0 0.0
  %564 = vmatprep.subr.mxu0 0.0
  %565 = vmatpush1.msra.mxu0 0.0
  %566 = vmatprep.subr.mxu0 0.0
  %567 = vmatpush1.msra.mxu0 0.0
  %568 = vmatprep.subr.mxu0 0.0
  %569 = vmatpush1.msra.mxu0 0.0
  %570 = vmatprep.subr.mxu0 0.0
  %571 = vmatpush1.msra.mxu0 0.0
  %572 = vmatprep.subr.mxu0 0.0
  %573 = vmatpush1.msra.mxu0 0.0
  %574 = vmatprep.subr.mxu0 0.0
  %575 = vmatpush1.msra.mxu0 0.0
  %576 = vmatprep.subr.mxu0 0.0
  %577 = vmatpush1.msra.mxu0 0.0
  %578 = vmatprep.subr.mxu0 0.0
  %579 = vmatpush1.msra.mxu0 0.0
  %580 = vmatprep.subr.mxu0 0.0
  %581 = vmatpush1.msra.mxu0 0.0
  %582 = vmatprep.subr.mxu0 0.0
  %583 = vmatpush1.msra.mxu0 0.0
  %584 = vmatprep.subr.mxu0 0.0
  %585 = vmatpush1.msra.mxu0 0.0
  %586 = vmatprep.subr.mxu0 0.0
  %587 = vmatpush1.msra.mxu0 0.0
  %588 = vmatprep.subr.mxu0 0.0
  %589 = vmatpush1.msra.mxu0 0.0
  %590 = vmatprep.subr.mxu0 0.0
  %591 = vmatpush1.msra.mxu0 0.0
  %592 = vmatprep.subr.mxu0 0.0
  %593 = vmatpush1.msra.mxu0 0.0
  %594 = vmatprep.subr.mxu0 0.0
  %595 = vmatpush1.msra.mxu0 0.0
  %596 = vmatprep.subr.mxu0 0.0
  %597 = vmatpush1.msra.mxu0 0.0
  %598 = vmatprep.subr.mxu0 0.0
  %599 = vmatpush1.msra.mxu0 0.0
  %600 = vmatprep.subr.mxu0 0.0
  %601 = vmatpush1.msra.mxu0 0.0
  %602 = vmatprep.subr.mxu0 0.0
  %603 = vmatpush1.msra.mxu0 0.0
  %604 = vmatprep.subr.mxu0 0.0
  %605 = vmatpush1.msra.mxu0 0.0
  %606 = vmatprep.subr.mxu0 0.0
  %607 = vmatpush1.msra.mxu0 0.0
  %608 = vmatprep.subr.mxu0 0.0
  %609 = vmatpush1.msra.mxu0 0.0
  %610 = vmatprep.subr.mxu0 0.0
  %611 = vmatpush1.msra.mxu0 0.0
  %612 = vmatprep.subr.mxu0 0.0
  %613 = vmatpush1.msra.mxu0 0.0
  %614 = vmatprep.subr.mxu0 0.0
  %615 = vmatpush1.msra.mxu0 0.0
  %616 = vmatprep.mubr.f32.mxu0 0.0
  %617 = vmatmul.mubr.f32.gmra.mrb[0].mxu0 %v547
  %v618 = vpop.f32.mrb[0].mxu0
  %v619 = vadd.f32 0.0, %v618
  %v620 = vpop.f32.mrb[0].mxu0
  %621 = vmatprep.mubr.f32.mxu0 0.0
  %622 = vmatmul.mubr.f32.gmra.mrb[0].mxu0 %v550
  %v623 = vpop.f32.mrb[0].mxu0
  %v624 = vadd.f32 0.0, %v623
  %v625 = vpop.f32.mrb[0].mxu0
  %626 = vdwg.mxu0
  %627 = vmatprep.subr.mxu0 0.0
  %628 = vmatpush1.msra.mxu0 %v375
  %629 = vmatprep.subr.mxu0 0.0
  %630 = vmatpush1.msra.mxu0 %v377
  %631 = vmatprep.subr.mxu0 0.0
  %632 = vmatpush1.msra.mxu0 0.0
  %633 = vmatprep.subr.mxu0 0.0
  %634 = vmatpush1.msra.mxu0 0.0
  %635 = vmatprep.subr.mxu0 0.0
  %636 = vmatpush1.msra.mxu0 0.0
  %637 = vmatprep.subr.mxu0 0.0
  %638 = vmatpush1.msra.mxu0 0.0
  %639 = vmatprep.subr.mxu0 0.0
  %640 = vmatpush1.msra.mxu0 0.0
  %641 = vmatprep.subr.mxu0 0.0
  %642 = vmatpush1.msra.mxu0 0.0
  %643 = vmatprep.subr.mxu0 0.0
  %644 = vmatpush1.msra.mxu0 0.0
  %645 = vmatprep.subr.mxu0 0.0
  %646 = vmatpush1.msra.mxu0 0.0
  %647 = vmatprep.subr.mxu0 0.0
  %648 = vmatpush1.msra.mxu0 0.0
  %649 = vmatprep.subr.mxu0 0.0
  %650 = vmatpush1.msra.mxu0 0.0
  %651 = vmatprep.subr.mxu0 0.0
  %652 = vmatpush1.msra.mxu0 0.0
  %653 = vmatprep.subr.mxu0 0.0
  %654 = vmatpush1.msra.mxu0 0.0
  %655 = vmatprep.subr.mxu0 0.0
  %656 = vmatpush1.msra.mxu0 0.0
  %657 = vmatprep.subr.mxu0 0.0
  %658 = vmatpush1.msra.mxu0 0.0
  %659 = vmatprep.subr.mxu0 0.0
  %660 = vmatpush1.msra.mxu0 0.0
  %661 = vmatprep.subr.mxu0 0.0
  %662 = vmatpush1.msra.mxu0 0.0
  %663 = vmatprep.subr.mxu0 0.0
  %664 = vmatpush1.msra.mxu0 0.0
  %665 = vmatprep.subr.mxu0 0.0
  %666 = vmatpush1.msra.mxu0 0.0
  %667 = vmatprep.subr.mxu0 0.0
  %668 = vmatpush1.msra.mxu0 0.0
  %669 = vmatprep.subr.mxu0 0.0
  %670 = vmatpush1.msra.mxu0 0.0
  %671 = vmatprep.subr.mxu0 0.0
  %672 = vmatpush1.msra.mxu0 0.0
  %673 = vmatprep.subr.mxu0 0.0
  %674 = vmatpush1.msra.mxu0 0.0
  %675 = vmatprep.subr.mxu0 0.0
  %676 = vmatpush1.msra.mxu0 0.0
  %677 = vmatprep.subr.mxu0 0.0
  %678 = vmatpush1.msra.mxu0 0.0
  %679 = vmatprep.subr.mxu0 0.0
  %680 = vmatpush1.msra.mxu0 0.0
  %681 = vmatprep.subr.mxu0 0.0
  %682 = vmatpush1.msra.mxu0 0.0
  %683 = vmatprep.subr.mxu0 0.0
  %684 = vmatpush1.msra.mxu0 0.0
  %685 = vmatprep.subr.mxu0 0.0
  %686 = vmatpush1.msra.mxu0 0.0
  %687 = vmatprep.subr.mxu0 0.0
  %688 = vmatpush1.msra.mxu0 0.0
  %689 = vmatprep.subr.mxu0 0.0
  %690 = vmatpush1.msra.mxu0 0.0
  %691 = vmatprep.mubr.f32.mxu0 0.0
  %692 = vmatmul.mubr.f32.gmra.mrb[0].mxu0 %v547
  %v693 = vpop.f32.mrb[0].mxu0
  %v694 = vadd.f32 0.0, %v693
  %v695 = vpop.f32.mrb[0].mxu0
  %696 = vmatprep.mubr.f32.mxu0 0.0
  %697 = vmatmul.mubr.f32.gmra.mrb[0].mxu0 %v550
  %v698 = vpop.f32.mrb[0].mxu0
  %v699 = vadd.f32 0.0, %v698
  %v700 = vpop.f32.mrb[0].mxu0
  %701 = vdwg.mxu0
  %704 = vrot.lane.b32.xlu0 %v345, 96
  %v705 = vpop.permute.xlu0 %704
  %706 = vrot.lane.b32.xlu0 %v346, 96
  %v707 = vpop.permute.xlu0 %706
  %v708 = vsel %vm51, %v705, 0
  %v710 = vsel %vm51, %v707, 0
  %712 = vmatprep.subr.mxu0 0.0
  %713 = vmatpush1.msra.mxu0 %v619
  %714 = vmatprep.subr.mxu0 0.0
  %715 = vmatpush1.msra.mxu0 %v624
  %716 = vmatprep.subr.mxu0 0.0
  %717 = vmatpush1.msra.mxu0 0.0
  %718 = vmatprep.subr.mxu0 0.0
  %719 = vmatpush1.msra.mxu0 0.0
  %720 = vmatprep.subr.mxu0 0.0
  %721 = vmatpush1.msra.mxu0 0.0
  %722 = vmatprep.subr.mxu0 0.0
  %723 = vmatpush1.msra.mxu0 0.0
  %724 = vmatprep.subr.mxu0 0.0
  %725 = vmatpush1.msra.mxu0 0.0
  %726 = vmatprep.subr.mxu0 0.0
  %727 = vmatpush1.msra.mxu0 0.0
  %728 = vmatprep.subr.mxu0 0.0
  %729 = vmatpush1.msra.mxu0 0.0
  %730 = vmatprep.subr.mxu0 0.0
  %731 = vmatpush1.msra.mxu0 0.0
  %732 = vmatprep.subr.mxu0 0.0
  %733 = vmatpush1.msra.mxu0 0.0
  %734 = vmatprep.subr.mxu0 0.0
  %735 = vmatpush1.msra.mxu0 0.0
  %736 = vmatprep.subr.mxu0 0.0
  %737 = vmatpush1.msra.mxu0 0.0
  %738 = vmatprep.subr.mxu0 0.0
  %739 = vmatpush1.msra.mxu0 0.0
  %740 = vmatprep.subr.mxu0 0.0
  %741 = vmatpush1.msra.mxu0 0.0
  %742 = vmatprep.subr.mxu0 0.0
  %743 = vmatpush1.msra.mxu0 0.0
  %744 = vmatprep.subr.mxu0 0.0
  %745 = vmatpush1.msra.mxu0 0.0
  %746 = vmatprep.subr.mxu0 0.0
  %747 = vmatpush1.msra.mxu0 0.0
  %748 = vmatprep.subr.mxu0 0.0
  %749 = vmatpush1.msra.mxu0 0.0
  %750 = vmatprep.subr.mxu0 0.0
  %751 = vmatpush1.msra.mxu0 0.0
  %752 = vmatprep.subr.mxu0 0.0
  %753 = vmatpush1.msra.mxu0 0.0
  %754 = vmatprep.subr.mxu0 0.0
  %755 = vmatpush1.msra.mxu0 0.0
  %756 = vmatprep.subr.mxu0 0.0
  %757 = vmatpush1.msra.mxu0 0.0
  %758 = vmatprep.subr.mxu0 0.0
  %759 = vmatpush1.msra.mxu0 0.0
  %760 = vmatprep.subr.mxu0 0.0
  %761 = vmatpush1.msra.mxu0 0.0
  %762 = vmatprep.subr.mxu0 0.0
  %763 = vmatpush1.msra.mxu0 0.0
  %764 = vmatprep.subr.mxu0 0.0
  %765 = vmatpush1.msra.mxu0 0.0
  %766 = vmatprep.subr.mxu0 0.0
  %767 = vmatpush1.msra.mxu0 0.0
  %768 = vmatprep.subr.mxu0 0.0
  %769 = vmatpush1.msra.mxu0 0.0
  %770 = vmatprep.subr.mxu0 0.0
  %771 = vmatpush1.msra.mxu0 0.0
  %772 = vmatprep.subr.mxu0 0.0
  %773 = vmatpush1.msra.mxu0 0.0
  %774 = vmatprep.subr.mxu0 0.0
  %775 = vmatpush1.msra.mxu0 0.0
  %776 = vmatprep.mubr.f32.mxu0 0.0
  %777 = vmatmul.mubr.f32.gmra.mrb[0].mxu0 %v708
  %v778 = vpop.f32.mrb[0].mxu0
  %v779 = vadd.f32 0.0, %v778
  %v780 = vpop.f32.mrb[0].mxu0
  %781 = vmatprep.mubr.f32.mxu0 0.0
  %782 = vmatmul.mubr.f32.gmra.mrb[0].mxu0 %v710
  %v783 = vpop.f32.mrb[0].mxu0
  %v784 = vadd.f32 0.0, %v783
  %v785 = vpop.f32.mrb[0].mxu0
  %786 = vdwg.mxu0
  %787 = vmatprep.subr.mxu0 0.0
  %788 = vmatpush1.msra.mxu0 %v694
  %789 = vmatprep.subr.mxu0 0.0
  %790 = vmatpush1.msra.mxu0 %v699
  %791 = vmatprep.subr.mxu0 0.0
  %792 = vmatpush1.msra.mxu0 0.0
  %793 = vmatprep.subr.mxu0 0.0
  %794 = vmatpush1.msra.mxu0 0.0
  %795 = vmatprep.subr.mxu0 0.0
  %796 = vmatpush1.msra.mxu0 0.0
  %797 = vmatprep.subr.mxu0 0.0
  %798 = vmatpush1.msra.mxu0 0.0
  %799 = vmatprep.subr.mxu0 0.0
  %800 = vmatpush1.msra.mxu0 0.0
  %801 = vmatprep.subr.mxu0 0.0
  %802 = vmatpush1.msra.mxu0 0.0
  %803 = vmatprep.subr.mxu0 0.0
  %804 = vmatpush1.msra.mxu0 0.0
  %805 = vmatprep.subr.mxu0 0.0
  %806 = vmatpush1.msra.mxu0 0.0
  %807 = vmatprep.subr.mxu0 0.0
  %808 = vmatpush1.msra.mxu0 0.0
  %809 = vmatprep.subr.mxu0 0.0
  %810 = vmatpush1.msra.mxu0 0.0
  %811 = vmatprep.subr.mxu0 0.0
  %812 = vmatpush1.msra.mxu0 0.0
  %813 = vmatprep.subr.mxu0 0.0
  %814 = vmatpush1.msra.mxu0 0.0
  %815 = vmatprep.subr.mxu0 0.0
  %816 = vmatpush1.msra.mxu0 0.0
  %817 = vmatprep.subr.mxu0 0.0
  %818 = vmatpush1.msra.mxu0 0.0
  %819 = vmatprep.subr.mxu0 0.0
  %820 = vmatpush1.msra.mxu0 0.0
  %821 = vmatprep.subr.mxu0 0.0
  %822 = vmatpush1.msra.mxu0 0.0
  %823 = vmatprep.subr.mxu0 0.0
  %824 = vmatpush1.msra.mxu0 0.0
  %825 = vmatprep.subr.mxu0 0.0
  %826 = vmatpush1.msra.mxu0 0.0
  %827 = vmatprep.subr.mxu0 0.0
  %828 = vmatpush1.msra.mxu0 0.0
  %829 = vmatprep.subr.mxu0 0.0
  %830 = vmatpush1.msra.mxu0 0.0
  %831 = vmatprep.subr.mxu0 0.0
  %832 = vmatpush1.msra.mxu0 0.0
  %833 = vmatprep.subr.mxu0 0.0
  %834 = vmatpush1.msra.mxu0 0.0
  %835 = vmatprep.subr.mxu0 0.0
  %836 = vmatpush1.msra.mxu0 0.0
  %837 = vmatprep.subr.mxu0 0.0
  %838 = vmatpush1.msra.mxu0 0.0
  %839 = vmatprep.subr.mxu0 0.0
  %840 = vmatpush1.msra.mxu0 0.0
  %841 = vmatprep.subr.mxu0 0.0
  %842 = vmatpush1.msra.mxu0 0.0
  %843 = vmatprep.subr.mxu0 0.0
  %844 = vmatpush1.msra.mxu0 0.0
  %845 = vmatprep.subr.mxu0 0.0
  %846 = vmatpush1.msra.mxu0 0.0
  %847 = vmatprep.subr.mxu0 0.0
  %848 = vmatpush1.msra.mxu0 0.0
  %849 = vmatprep.subr.mxu0 0.0
  %850 = vmatpush1.msra.mxu0 0.0
  %851 = vmatprep.mubr.f32.mxu0 0.0
  %852 = vmatmul.mubr.f32.gmra.mrb[0].mxu0 %v708
  %v853 = vpop.f32.mrb[0].mxu0
  %v854 = vadd.f32 0.0, %v853
  %v855 = vpop.f32.mrb[0].mxu0
  %856 = vmatprep.mubr.f32.mxu0 0.0
  %857 = vmatmul.mubr.f32.gmra.mrb[0].mxu0 %v710
  %v858 = vpop.f32.mrb[0].mxu0
  %v859 = vadd.f32 0.0, %v858
  %v860 = vpop.f32.mrb[0].mxu0
  %861 = vdwg.mxu0
  %v862 = vrcp.pop %v854
  %v863 = vrcp.pop %v859
  %v865 = vsel %vm310, %v862, 0
  %v868 = vsel %vm310, %v863, 0
  %870 = vmatprep.subr.mxu0 0.0
  %871 = vmatpush1.msra.mxu0 %v306
  %872 = vmatprep.subr.mxu0 0.0
  %873 = vmatpush1.msra.mxu0 0.0
  %874 = vmatprep.subr.mxu0 0.0
  %875 = vmatpush1.msra.mxu0 0.0
  %876 = vmatprep.subr.mxu0 0.0
  %877 = vmatpush1.msra.mxu0 0.0
  %878 = vmatprep.subr.mxu0 0.0
  %879 = vmatpush1.msra.mxu0 0.0
  %880 = vmatprep.subr.mxu0 0.0
  %881 = vmatpush1.msra.mxu0 0.0
  %882 = vmatprep.subr.mxu0 0.0
  %883 = vmatpush1.msra.mxu0 0.0
  %884 = vmatprep.subr.mxu0 0.0
  %885 = vmatpush1.msra.mxu0 0.0
  %886 = vmatprep.subr.mxu0 0.0
  %887 = vmatpush1.msra.mxu0 0.0
  %888 = vmatprep.subr.mxu0 0.0
  %889 = vmatpush1.msra.mxu0 0.0
  %890 = vmatprep.subr.mxu0 0.0
  %891 = vmatpush1.msra.mxu0 0.0
  %892 = vmatprep.subr.mxu0 0.0
  %893 = vmatpush1.msra.mxu0 0.0
  %894 = vmatprep.subr.mxu0 0.0
  %895 = vmatpush1.msra.mxu0 0.0
  %896 = vmatprep.subr.mxu0 0.0
  %897 = vmatpush1.msra.mxu0 0.0
  %898 = vmatprep.subr.mxu0 0.0
  %899 = vmatpush1.msra.mxu0 0.0
  %900 = vmatprep.subr.mxu0 0.0
  %901 = vmatpush1.msra.mxu0 0.0
  %902 = vmatprep.subr.mxu0 0.0
  %903 = vmatpush1.msra.mxu0 0.0
  %904 = vmatprep.subr.mxu0 0.0
  %905 = vmatpush1.msra.mxu0 0.0
  %906 = vmatprep.subr.mxu0 0.0
  %907 = vmatpush1.msra.mxu0 0.0
  %908 = vmatprep.subr.mxu0 0.0
  %909 = vmatpush1.msra.mxu0 0.0
  %910 = vmatprep.subr.mxu0 0.0
  %911 = vmatpush1.msra.mxu0 0.0
  %912 = vmatprep.subr.mxu0 0.0
  %913 = vmatpush1.msra.mxu0 0.0
  %914 = vmatprep.subr.mxu0 0.0
  %915 = vmatpush1.msra.mxu0 0.0
  %916 = vmatprep.subr.mxu0 0.0
  %917 = vmatpush1.msra.mxu0 0.0
  %918 = vmatprep.subr.mxu0 0.0
  %919 = vmatpush1.msra.mxu0 0.0
  %920 = vmatprep.subr.mxu0 0.0
  %921 = vmatpush1.msra.mxu0 0.0
  %922 = vmatprep.subr.mxu0 0.0
  %923 = vmatpush1.msra.mxu0 0.0
  %924 = vmatprep.subr.mxu0 0.0
  %925 = vmatpush1.msra.mxu0 0.0
  %926 = vmatprep.subr.mxu0 0.0
  %927 = vmatpush1.msra.mxu0 0.0
  %928 = vmatprep.subr.mxu0 0.0
  %929 = vmatpush1.msra.mxu0 0.0
  %930 = vmatprep.subr.mxu0 0.0
  %931 = vmatpush1.msra.mxu0 0.0
  %932 = vmatprep.subr.mxu0 0.0
  %933 = vmatpush1.msra.mxu0 0.0
  %934 = vmatprep.mubr.f32.mxu0 0.0
  %935 = vmatmul.mubr.f32.gmra.mrb[0].mxu0 %v865
  %v936 = vpop.f32.mrb[0].mxu0
  %v937 = vadd.f32 0.0, %v936
  %v938 = vpop.f32.mrb[0].mxu0
  %939 = vmatprep.mubr.f32.mxu0 0.0
  %940 = vmatmul.mubr.f32.gmra.mrb[0].mxu0 %v868
  %v941 = vpop.f32.mrb[0].mxu0
  %v942 = vadd.f32 0.0, %v941
  %v943 = vpop.f32.mrb[0].mxu0
  %944 = vdwg.mxu0
  %v945 = vmul.f32 %v779, %v937
  %v946 = vmul.f32 %v784, %v942
  %v947 = vld [vmem:[%s9] sm:$0xff]
  %v948 = vld [vmem:[%s9 + $0x8] sm:$0xff]
  %v949 = vld [vmem:[%s9 + $0x10] sm:$0xff]
  %v950 = vld [vmem:[%s9 + $0x18] sm:$0xff]
  %v951 = vld [vmem:[%s9 + $0x20] sm:$0xff]
  %v952 = vld [vmem:[%s9 + $0x28] sm:$0xff]
  %v953 = vld [vmem:[%s9 + $0x30] sm:$0xff]
  %v954 = vld [vmem:[%s9 + $0x38] sm:$0xff]
  %957 = vrot.lane.b32.xlu0 %v308, 120
  %v958 = vpop.permute.xlu0 %957
  %959 = vrot.lane.b32.xlu0 %v309, 120
  %v960 = vpop.permute.xlu0 %959
  %v963 = vsel %vm310, %v958, 0.0
  %964 = vadd.xlane.f32.xlu0 %v963
  %v965 = vpop.xlane.xlu0 %964
  %v966 = vsel %vm310, %v960, 0.0
  %967 = vadd.xlane.f32.xlu0 %v966
  %v968 = vpop.xlane.xlu0 %967
  %v969 = vmul.f32 %v965, 0.5
  %v970 = vmul.f32 %v968, 0.5
  %v971 = vmul.f32 %v283, %v283
  %v972 = vsel %vm51, %v971, 0.0
  %v973 = vrot.slane %v972, 4
  %v974 = vadd.f32 %v972, %v973
  %v975 = vrot.slane %v974, 2
  %v976 = vadd.f32 %v974, %v975
  %v977 = vrot.slane %v976, 1
  %v978 = vadd.f32 %v976, %v977
  %v979 = vmul.f32 %v978, 0.5
  %v980 = vsub.f32 %v131, %v969
  %v981 = vsub.f32 %v136, %v970
  %vm982 = vcmask 523648
  %v983 = vsel %vm982, %v131, -inf
  %984 = vmax.xlane.f32.xlu0 %v983
  %v985 = vpop.xlane.xlu0 %984
  %v986 = vsel %vm982, %v136, -inf
  %987 = vmax.xlane.f32.xlu0 %v986
  %v988 = vpop.xlane.xlu0 %987
  %v989 = vsub.f32 %v980, %v985
  %v990 = vsub.f32 %v981, %v988
  %v991 = vmul.f32 %v989, 1.442695
  %v992 = vpow.pop %v991
  %v993 = vmul.f32 %v990, 1.442695
  %v994 = vpow.pop %v993
  %v995 = vadd.f32 %v992, 1e-06
  %v996 = vadd.f32 %v994, 1e-06
  %v997 = vmul.f32 %v995, 0.25
  %v998 = vmul.f32 %v996, 0.25
  %v999 = vsub.f32 %v298, %v979
  %v1000 = vsub.f32 %v303, %v979
  %v1001 = vsel %vm51, %v298, -inf
  %v1002 = vsel %vm51, %v303, -inf
  %v1003 = vmax.f32 %v1001, %v1002
  %1004 = vmax.xlane.f32.xlu0 %v1003
  %v1005 = vpop.xlane.xlu0 %1004
  %v1006 = vrot.slane %v1005, 4
  %v1007 = vmax.f32 %v1005, %v1006
  %v1008 = vrot.slane %v1007, 2
  %v1009 = vmax.f32 %v1007, %v1008
  %v1010 = vrot.slane %v1009, 1
  %v1011 = vmax.f32 %v1009, %v1010
  %s1012 = vtos %v1011
  %v1013 = vstv %s1012
  %v1014 = vsub.f32 %v999, %v1013
  %v1015 = vsub.f32 %v1000, %v1013
  %v1016 = vmul.f32 %v1014, 1.442695
  %v1017 = vpow.pop %v1016
  %v1018 = vmul.f32 %v1015, 1.442695
  %v1019 = vpow.pop %v1018
  %v1020 = vadd.f32 %v1017, 1e-06
  %v1021 = vadd.f32 %v1019, 1e-06
  %v1022 = vmul.f32 %v1020, 0.25
  %v1023 = vmul.f32 %v1021, 0.25
  %s1024 = scalar_lea.vmem %s6, 16
  %v1025 = vld [vmem:[%s1024] sm:$0xff]
  %v1026 = vld [vmem:[%s1024 + $0x8] sm:$0xff]
  %v1027 = vmul.f32 %v1025, 1.442695
  %v1028 = vpow.pop %v1027
  %v1029 = vmul.f32 %v1026, 1.442695
  %v1030 = vpow.pop %v1029
  %v1032 = vsel %vm310, %v1028, 0
  %v1035 = vsel %vm310, %v1030, 0
  %1037 = vmatprep.subr.mxu0 0.0
  %1038 = vmatpush1.msra.mxu0 %v306
  %1039 = vmatprep.subr.mxu0 0.0
  %1040 = vmatpush1.msra.mxu0 0.0
  %1041 = vmatprep.subr.mxu0 0.0
  %1042 = vmatpush1.msra.mxu0 0.0
  %1043 = vmatprep.subr.mxu0 0.0
  %1044 = vmatpush1.msra.mxu0 0.0
  %1045 = vmatprep.subr.mxu0 0.0
  %1046 = vmatpush1.msra.mxu0 0.0
  %1047 = vmatprep.subr.mxu0 0.0
  %1048 = vmatpush1.msra.mxu0 0.0
  %1049 = vmatprep.subr.mxu0 0.0
  %1050 = vmatpush1.msra.mxu0 0.0
  %1051 = vmatprep.subr.mxu0 0.0
  %1052 = vmatpush1.msra.mxu0 0.0
  %1053 = vmatprep.subr.mxu0 0.0
  %1054 = vmatpush1.msra.mxu0 0.0
  %1055 = vmatprep.subr.mxu0 0.0
  %1056 = vmatpush1.msra.mxu0 0.0
  %1057 = vmatprep.subr.mxu0 0.0
  %1058 = vmatpush1.msra.mxu0 0.0
  %1059 = vmatprep.subr.mxu0 0.0
  %1060 = vmatpush1.msra.mxu0 0.0
  %1061 = vmatprep.subr.mxu0 0.0
  %1062 = vmatpush1.msra.mxu0 0.0
  %1063 = vmatprep.subr.mxu0 0.0
  %1064 = vmatpush1.msra.mxu0 0.0
  %1065 = vmatprep.subr.mxu0 0.0
  %1066 = vmatpush1.msra.mxu0 0.0
  %1067 = vmatprep.subr.mxu0 0.0
  %1068 = vmatpush1.msra.mxu0 0.0
  %1069 = vmatprep.subr.mxu0 0.0
  %1070 = vmatpush1.msra.mxu0 0.0
  %1071 = vmatprep.subr.mxu0 0.0
  %1072 = vmatpush1.msra.mxu0 0.0
  %1073 = vmatprep.subr.mxu0 0.0
  %1074 = vmatpush1.msra.mxu0 0.0
  %1075 = vmatprep.subr.mxu0 0.0
  %1076 = vmatpush1.msra.mxu0 0.0
  %1077 = vmatprep.subr.mxu0 0.0
  %1078 = vmatpush1.msra.mxu0 0.0
  %1079 = vmatprep.subr.mxu0 0.0
  %1080 = vmatpush1.msra.mxu0 0.0
  %1081 = vmatprep.subr.mxu0 0.0
  %1082 = vmatpush1.msra.mxu0 0.0
  %1083 = vmatprep.subr.mxu0 0.0
  %1084 = vmatpush1.msra.mxu0 0.0
  %1085 = vmatprep.subr.mxu0 0.0
  %1086 = vmatpush1.msra.mxu0 0.0
  %1087 = vmatprep.subr.mxu0 0.0
  %1088 = vmatpush1.msra.mxu0 0.0
  %1089 = vmatprep.subr.mxu0 0.0
  %1090 = vmatpush1.msra.mxu0 0.0
  %1091 = vmatprep.subr.mxu0 0.0
  %1092 = vmatpush1.msra.mxu0 0.0
  %1093 = vmatprep.subr.mxu0 0.0
  %1094 = vmatpush1.msra.mxu0 0.0
  %1095 = vmatprep.subr.mxu0 0.0
  %1096 = vmatpush1.msra.mxu0 0.0
  %1097 = vmatprep.subr.mxu0 0.0
  %1098 = vmatpush1.msra.mxu0 0.0
  %1099 = vmatprep.subr.mxu0 0.0
  %1100 = vmatpush1.msra.mxu0 0.0
  %1101 = vmatprep.mubr.f32.mxu0 0.0
  %1102 = vmatmul.mubr.f32.gmra.mrb[0].mxu0 %v1032
  %v1103 = vpop.f32.mrb[0].mxu0
  %v1104 = vadd.f32 0.0, %v1103
  %v1105 = vpop.f32.mrb[0].mxu0
  %1106 = vmatprep.mubr.f32.mxu0 0.0
  %1107 = vmatmul.mubr.f32.gmra.mrb[0].mxu0 %v1035
  %v1108 = vpop.f32.mrb[0].mxu0
  %v1109 = vadd.f32 0.0, %v1108
  %v1110 = vpop.f32.mrb[0].mxu0
  %1111 = vdwg.mxu0
  %1112 = vrot.lane.b32.xlu0 %v131, 104
  %v1113 = vpop.permute.xlu0 %1112
  %1114 = vrot.lane.b32.xlu0 %v136, 104
  %v1115 = vpop.permute.xlu0 %1114
  %v1116 = vsel %vm310, %v1113, 0
  %v1118 = vsel %vm310, %v1115, 0
  %1120 = vmatprep.subr.mxu0 0.0
  %1121 = vmatpush1.msra.mxu0 %v307
  %1122 = vmatprep.subr.mxu0 0.0
  %1123 = vmatpush1.msra.mxu0 0.0
  %1124 = vmatprep.subr.mxu0 0.0
  %1125 = vmatpush1.msra.mxu0 0.0
  %1126 = vmatprep.subr.mxu0 0.0
  %1127 = vmatpush1.msra.mxu0 0.0
  %1128 = vmatprep.subr.mxu0 0.0
  %1129 = vmatpush1.msra.mxu0 0.0
  %1130 = vmatprep.subr.mxu0 0.0
  %1131 = vmatpush1.msra.mxu0 0.0
  %1132 = vmatprep.subr.mxu0 0.0
  %1133 = vmatpush1.msra.mxu0 0.0
  %1134 = vmatprep.subr.mxu0 0.0
  %1135 = vmatpush1.msra.mxu0 0.0
  %1136 = vmatprep.subr.mxu0 0.0
  %1137 = vmatpush1.msra.mxu0 0.0
  %1138 = vmatprep.subr.mxu0 0.0
  %1139 = vmatpush1.msra.mxu0 0.0
  %1140 = vmatprep.subr.mxu0 0.0
  %1141 = vmatpush1.msra.mxu0 0.0
  %1142 = vmatprep.subr.mxu0 0.0
  %1143 = vmatpush1.msra.mxu0 0.0
  %1144 = vmatprep.subr.mxu0 0.0
  %1145 = vmatpush1.msra.mxu0 0.0
  %1146 = vmatprep.subr.mxu0 0.0
  %1147 = vmatpush1.msra.mxu0 0.0
  %1148 = vmatprep.subr.mxu0 0.0
  %1149 = vmatpush1.msra.mxu0 0.0
  %1150 = vmatprep.subr.mxu0 0.0
  %1151 = vmatpush1.msra.mxu0 0.0
  %1152 = vmatprep.subr.mxu0 0.0
  %1153 = vmatpush1.msra.mxu0 0.0
  %1154 = vmatprep.subr.mxu0 0.0
  %1155 = vmatpush1.msra.mxu0 0.0
  %1156 = vmatprep.subr.mxu0 0.0
  %1157 = vmatpush1.msra.mxu0 0.0
  %1158 = vmatprep.subr.mxu0 0.0
  %1159 = vmatpush1.msra.mxu0 0.0
  %1160 = vmatprep.subr.mxu0 0.0
  %1161 = vmatpush1.msra.mxu0 0.0
  %1162 = vmatprep.subr.mxu0 0.0
  %1163 = vmatpush1.msra.mxu0 0.0
  %1164 = vmatprep.subr.mxu0 0.0
  %1165 = vmatpush1.msra.mxu0 0.0
  %1166 = vmatprep.subr.mxu0 0.0
  %1167 = vmatpush1.msra.mxu0 0.0
  %1168 = vmatprep.subr.mxu0 0.0
  %1169 = vmatpush1.msra.mxu0 0.0
  %1170 = vmatprep.subr.mxu0 0.0
  %1171 = vmatpush1.msra.mxu0 0.0
  %1172 = vmatprep.subr.mxu0 0.0
  %1173 = vmatpush1.msra.mxu0 0.0
  %1174 = vmatprep.subr.mxu0 0.0
  %1175 = vmatpush1.msra.mxu0 0.0
  %1176 = vmatprep.subr.mxu0 0.0
  %1177 = vmatpush1.msra.mxu0 0.0
  %1178 = vmatprep.subr.mxu0 0.0
  %1179 = vmatpush1.msra.mxu0 0.0
  %1180 = vmatprep.subr.mxu0 0.0
  %1181 = vmatpush1.msra.mxu0 0.0
  %1182 = vmatprep.subr.mxu0 0.0
  %1183 = vmatpush1.msra.mxu0 0.0
  %1184 = vmatprep.mubr.f32.mxu0 0.0
  %1185 = vmatmul.mubr.f32.gmra.mrb[0].mxu0 %v1116
  %v1186 = vpop.f32.mrb[0].mxu0
  %v1187 = vadd.f32 0.0, %v1186
  %v1188 = vpop.f32.mrb[0].mxu0
  %1189 = vmatprep.mubr.f32.mxu0 0.0
  %1190 = vmatmul.mubr.f32.gmra.mrb[0].mxu0 %v1118
  %v1191 = vpop.f32.mrb[0].mxu0
  %v1192 = vadd.f32 0.0, %v1191
  %v1193 = vpop.f32.mrb[0].mxu0
  %1194 = vdwg.mxu0
  %v1195 = vmul.f32 %v1104, %v1187
  %v1196 = vmul.f32 %v1109, %v1192
  %v1198 = vsel %vm51, %v1022, 0
  %v1201 = vsel %vm51, %v1023, 0
  %1203 = vmatprep.subr.mxu0 0.0
  %1204 = vmatpush1.msra.mxu0 %v1195
  %1205 = vmatprep.subr.mxu0 0.0
  %1206 = vmatpush1.msra.mxu0 %v1196
  %1207 = vmatprep.subr.mxu0 0.0
  %1208 = vmatpush1.msra.mxu0 0.0
  %1209 = vmatprep.subr.mxu0 0.0
  %1210 = vmatpush1.msra.mxu0 0.0
  %1211 = vmatprep.subr.mxu0 0.0
  %1212 = vmatpush1.msra.mxu0 0.0
  %1213 = vmatprep.subr.mxu0 0.0
  %1214 = vmatpush1.msra.mxu0 0.0
  %1215 = vmatprep.subr.mxu0 0.0
  %1216 = vmatpush1.msra.mxu0 0.0
  %1217 = vmatprep.subr.mxu0 0.0
  %1218 = vmatpush1.msra.mxu0 0.0
  %1219 = vmatprep.subr.mxu0 0.0
  %1220 = vmatpush1.msra.mxu0 0.0
  %1221 = vmatprep.subr.mxu0 0.0
  %1222 = vmatpush1.msra.mxu0 0.0
  %1223 = vmatprep.subr.mxu0 0.0
  %1224 = vmatpush1.msra.mxu0 0.0
  %1225 = vmatprep.subr.mxu0 0.0
  %1226 = vmatpush1.msra.mxu0 0.0
  %1227 = vmatprep.subr.mxu0 0.0
  %1228 = vmatpush1.msra.mxu0 0.0
  %1229 = vmatprep.subr.mxu0 0.0
  %1230 = vmatpush1.msra.mxu0 0.0
  %1231 = vmatprep.subr.mxu0 0.0
  %1232 = vmatpush1.msra.mxu0 0.0
  %1233 = vmatprep.subr.mxu0 0.0
  %1234 = vmatpush1.msra.mxu0 0.0
  %1235 = vmatprep.subr.mxu0 0.0
  %1236 = vmatpush1.msra.mxu0 0.0
  %1237 = vmatprep.subr.mxu0 0.0
  %1238 = vmatpush1.msra.mxu0 0.0
  %1239 = vmatprep.subr.mxu0 0.0
  %1240 = vmatpush1.msra.mxu0 0.0
  %1241 = vmatprep.subr.mxu0 0.0
  %1242 = vmatpush1.msra.mxu0 0.0
  %1243 = vmatprep.subr.mxu0 0.0
  %1244 = vmatpush1.msra.mxu0 0.0
  %1245 = vmatprep.subr.mxu0 0.0
  %1246 = vmatpush1.msra.mxu0 0.0
  %1247 = vmatprep.subr.mxu0 0.0
  %1248 = vmatpush1.msra.mxu0 0.0
  %1249 = vmatprep.subr.mxu0 0.0
  %1250 = vmatpush1.msra.mxu0 0.0
  %1251 = vmatprep.subr.mxu0 0.0
  %1252 = vmatpush1.msra.mxu0 0.0
  %1253 = vmatprep.subr.mxu0 0.0
  %1254 = vmatpush1.msra.mxu0 0.0
  %1255 = vmatprep.subr.mxu0 0.0
  %1256 = vmatpush1.msra.mxu0 0.0
  %1257 = vmatprep.subr.mxu0 0.0
  %1258 = vmatpush1.msra.mxu0 0.0
  %1259 = vmatprep.subr.mxu0 0.0
  %1260 = vmatpush1.msra.mxu0 0.0
  %1261 = vmatprep.subr.mxu0 0.0
  %1262 = vmatpush1.msra.mxu0 0.0
  %1263 = vmatprep.subr.mxu0 0.0
  %1264 = vmatpush1.msra.mxu0 0.0
  %1265 = vmatprep.subr.mxu0 0.0
  %1266 = vmatpush1.msra.mxu0 0.0
  %1267 = vmatprep.mubr.f32.mxu0 0.0
  %1268 = vmatmul.mubr.f32.gmra.mrb[0].mxu0 %v1198
  %v1269 = vpop.f32.mrb[0].mxu0
  %v1270 = vadd.f32 0.0, %v1269
  %v1271 = vpop.f32.mrb[0].mxu0
  %1272 = vmatprep.mubr.f32.mxu0 0.0
  %1273 = vmatmul.mubr.f32.gmra.mrb[0].mxu0 %v1201
  %v1274 = vpop.f32.mrb[0].mxu0
  %v1275 = vadd.f32 0.0, %v1274
  %v1276 = vpop.f32.mrb[0].mxu0
  %1277 = vdwg.mxu0
  %1278 = vmatprep.subr.mxu0 0.0
  %1279 = vmatpush1.msra.mxu0 %v1028
  %1280 = vmatprep.subr.mxu0 0.0
  %1281 = vmatpush1.msra.mxu0 %v1030
  %1282 = vmatprep.subr.mxu0 0.0
  %1283 = vmatpush1.msra.mxu0 0.0
  %1284 = vmatprep.subr.mxu0 0.0
  %1285 = vmatpush1.msra.mxu0 0.0
  %1286 = vmatprep.subr.mxu0 0.0
  %1287 = vmatpush1.msra.mxu0 0.0
  %1288 = vmatprep.subr.mxu0 0.0
  %1289 = vmatpush1.msra.mxu0 0.0
  %1290 = vmatprep.subr.mxu0 0.0
  %1291 = vmatpush1.msra.mxu0 0.0
  %1292 = vmatprep.subr.mxu0 0.0
  %1293 = vmatpush1.msra.mxu0 0.0
  %1294 = vmatprep.subr.mxu0 0.0
  %1295 = vmatpush1.msra.mxu0 0.0
  %1296 = vmatprep.subr.mxu0 0.0
  %1297 = vmatpush1.msra.mxu0 0.0
  %1298 = vmatprep.subr.mxu0 0.0
  %1299 = vmatpush1.msra.mxu0 0.0
  %1300 = vmatprep.subr.mxu0 0.0
  %1301 = vmatpush1.msra.mxu0 0.0
  %1302 = vmatprep.subr.mxu0 0.0
  %1303 = vmatpush1.msra.mxu0 0.0
  %1304 = vmatprep.subr.mxu0 0.0
  %1305 = vmatpush1.msra.mxu0 0.0
  %1306 = vmatprep.subr.mxu0 0.0
  %1307 = vmatpush1.msra.mxu0 0.0
  %1308 = vmatprep.subr.mxu0 0.0
  %1309 = vmatpush1.msra.mxu0 0.0
  %1310 = vmatprep.subr.mxu0 0.0
  %1311 = vmatpush1.msra.mxu0 0.0
  %1312 = vmatprep.subr.mxu0 0.0
  %1313 = vmatpush1.msra.mxu0 0.0
  %1314 = vmatprep.subr.mxu0 0.0
  %1315 = vmatpush1.msra.mxu0 0.0
  %1316 = vmatprep.subr.mxu0 0.0
  %1317 = vmatpush1.msra.mxu0 0.0
  %1318 = vmatprep.subr.mxu0 0.0
  %1319 = vmatpush1.msra.mxu0 0.0
  %1320 = vmatprep.subr.mxu0 0.0
  %1321 = vmatpush1.msra.mxu0 0.0
  %1322 = vmatprep.subr.mxu0 0.0
  %1323 = vmatpush1.msra.mxu0 0.0
  %1324 = vmatprep.subr.mxu0 0.0
  %1325 = vmatpush1.msra.mxu0 0.0
  %1326 = vmatprep.subr.mxu0 0.0
  %1327 = vmatpush1.msra.mxu0 0.0
  %1328 = vmatprep.subr.mxu0 0.0
  %1329 = vmatpush1.msra.mxu0 0.0
  %1330 = vmatprep.subr.mxu0 0.0
  %1331 = vmatpush1.msra.mxu0 0.0
  %1332 = vmatprep.subr.mxu0 0.0
  %1333 = vmatpush1.msra.mxu0 0.0
  %1334 = vmatprep.subr.mxu0 0.0
  %1335 = vmatpush1.msra.mxu0 0.0
  %1336 = vmatprep.subr.mxu0 0.0
  %1337 = vmatpush1.msra.mxu0 0.0
  %1338 = vmatprep.subr.mxu0 0.0
  %1339 = vmatpush1.msra.mxu0 0.0
  %1340 = vmatprep.subr.mxu0 0.0
  %1341 = vmatpush1.msra.mxu0 0.0
  %1342 = vmatprep.mubr.f32.mxu0 0.0
  %1343 = vmatmul.mubr.f32.gmra.mrb[0].mxu0 %v1198
  %v1344 = vpop.f32.mrb[0].mxu0
  %v1345 = vadd.f32 0.0, %v1344
  %v1346 = vpop.f32.mrb[0].mxu0
  %1347 = vmatprep.mubr.f32.mxu0 0.0
  %1348 = vmatmul.mubr.f32.gmra.mrb[0].mxu0 %v1201
  %v1349 = vpop.f32.mrb[0].mxu0
  %v1350 = vadd.f32 0.0, %v1349
  %v1351 = vpop.f32.mrb[0].mxu0
  %1352 = vdwg.mxu0
  %1355 = vrot.lane.b32.xlu0 %v997, 80
  %v1356 = vpop.permute.xlu0 %1355
  %1357 = vrot.lane.b32.xlu0 %v998, 80
  %v1358 = vpop.permute.xlu0 %1357
  %v1359 = vsel %vm51, %v1356, 0
  %v1361 = vsel %vm51, %v1358, 0
  %1363 = vmatprep.subr.mxu0 0.0
  %1364 = vmatpush1.msra.mxu0 %v1270
  %1365 = vmatprep.subr.mxu0 0.0
  %1366 = vmatpush1.msra.mxu0 %v1275
  %1367 = vmatprep.subr.mxu0 0.0
  %1368 = vmatpush1.msra.mxu0 0.0
  %1369 = vmatprep.subr.mxu0 0.0
  %1370 = vmatpush1.msra.mxu0 0.0
  %1371 = vmatprep.subr.mxu0 0.0
  %1372 = vmatpush1.msra.mxu0 0.0
  %1373 = vmatprep.subr.mxu0 0.0
  %1374 = vmatpush1.msra.mxu0 0.0
  %1375 = vmatprep.subr.mxu0 0.0
  %1376 = vmatpush1.msra.mxu0 0.0
  %1377 = vmatprep.subr.mxu0 0.0
  %1378 = vmatpush1.msra.mxu0 0.0
  %1379 = vmatprep.subr.mxu0 0.0
  %1380 = vmatpush1.msra.mxu0 0.0
  %1381 = vmatprep.subr.mxu0 0.0
  %1382 = vmatpush1.msra.mxu0 0.0
  %1383 = vmatprep.subr.mxu0 0.0
  %1384 = vmatpush1.msra.mxu0 0.0
  %1385 = vmatprep.subr.mxu0 0.0
  %1386 = vmatpush1.msra.mxu0 0.0
  %1387 = vmatprep.subr.mxu0 0.0
  %1388 = vmatpush1.msra.mxu0 0.0
  %1389 = vmatprep.subr.mxu0 0.0
  %1390 = vmatpush1.msra.mxu0 0.0
  %1391 = vmatprep.subr.mxu0 0.0
  %1392 = vmatpush1.msra.mxu0 0.0
  %1393 = vmatprep.subr.mxu0 0.0
  %1394 = vmatpush1.msra.mxu0 0.0
  %1395 = vmatprep.subr.mxu0 0.0
  %1396 = vmatpush1.msra.mxu0 0.0
  %1397 = vmatprep.subr.mxu0 0.0
  %1398 = vmatpush1.msra.mxu0 0.0
  %1399 = vmatprep.subr.mxu0 0.0
  %1400 = vmatpush1.msra.mxu0 0.0
  %1401 = vmatprep.subr.mxu0 0.0
  %1402 = vmatpush1.msra.mxu0 0.0
  %1403 = vmatprep.subr.mxu0 0.0
  %1404 = vmatpush1.msra.mxu0 0.0
  %1405 = vmatprep.subr.mxu0 0.0
  %1406 = vmatpush1.msra.mxu0 0.0
  %1407 = vmatprep.subr.mxu0 0.0
  %1408 = vmatpush1.msra.mxu0 0.0
  %1409 = vmatprep.subr.mxu0 0.0
  %1410 = vmatpush1.msra.mxu0 0.0
  %1411 = vmatprep.subr.mxu0 0.0
  %1412 = vmatpush1.msra.mxu0 0.0
  %1413 = vmatprep.subr.mxu0 0.0
  %1414 = vmatpush1.msra.mxu0 0.0
  %1415 = vmatprep.subr.mxu0 0.0
  %1416 = vmatpush1.msra.mxu0 0.0
  %1417 = vmatprep.subr.mxu0 0.0
  %1418 = vmatpush1.msra.mxu0 0.0
  %1419 = vmatprep.subr.mxu0 0.0
  %1420 = vmatpush1.msra.mxu0 0.0
  %1421 = vmatprep.subr.mxu0 0.0
  %1422 = vmatpush1.msra.mxu0 0.0
  %1423 = vmatprep.subr.mxu0 0.0
  %1424 = vmatpush1.msra.mxu0 0.0
  %1425 = vmatprep.subr.mxu0 0.0
  %1426 = vmatpush1.msra.mxu0 0.0
  %1427 = vmatprep.mubr.f32.mxu0 0.0
  %1428 = vmatmul.mubr.f32.gmra.mrb[0].mxu0 %v1359
  %v1429 = vpop.f32.mrb[0].mxu0
  %v1430 = vadd.f32 0.0, %v1429
  %v1431 = vpop.f32.mrb[0].mxu0
  %1432 = vmatprep.mubr.f32.mxu0 0.0
  %1433 = vmatmul.mubr.f32.gmra.mrb[0].mxu0 %v1361
  %v1434 = vpop.f32.mrb[0].mxu0
  %v1435 = vadd.f32 0.0, %v1434
  %v1436 = vpop.f32.mrb[0].mxu0
  %1437 = vdwg.mxu0
  %1438 = vmatprep.subr.mxu0 0.0
  %1439 = vmatpush1.msra.mxu0 %v1345
  %1440 = vmatprep.subr.mxu0 0.0
  %1441 = vmatpush1.msra.mxu0 %v1350
  %1442 = vmatprep.subr.mxu0 0.0
  %1443 = vmatpush1.msra.mxu0 0.0
  %1444 = vmatprep.subr.mxu0 0.0
  %1445 = vmatpush1.msra.mxu0 0.0
  %1446 = vmatprep.subr.mxu0 0.0
  %1447 = vmatpush1.msra.mxu0 0.0
  %1448 = vmatprep.subr.mxu0 0.0
  %1449 = vmatpush1.msra.mxu0 0.0
  %1450 = vmatprep.subr.mxu0 0.0
  %1451 = vmatpush1.msra.mxu0 0.0
  %1452 = vmatprep.subr.mxu0 0.0
  %1453 = vmatpush1.msra.mxu0 0.0
  %1454 = vmatprep.subr.mxu0 0.0
  %1455 = vmatpush1.msra.mxu0 0.0
  %1456 = vmatprep.subr.mxu0 0.0
  %1457 = vmatpush1.msra.mxu0 0.0
  %1458 = vmatprep.subr.mxu0 0.0
  %1459 = vmatpush1.msra.mxu0 0.0
  %1460 = vmatprep.subr.mxu0 0.0
  %1461 = vmatpush1.msra.mxu0 0.0
  %1462 = vmatprep.subr.mxu0 0.0
  %1463 = vmatpush1.msra.mxu0 0.0
  %1464 = vmatprep.subr.mxu0 0.0
  %1465 = vmatpush1.msra.mxu0 0.0
  %1466 = vmatprep.subr.mxu0 0.0
  %1467 = vmatpush1.msra.mxu0 0.0
  %1468 = vmatprep.subr.mxu0 0.0
  %1469 = vmatpush1.msra.mxu0 0.0
  %1470 = vmatprep.subr.mxu0 0.0
  %1471 = vmatpush1.msra.mxu0 0.0
  %1472 = vmatprep.subr.mxu0 0.0
  %1473 = vmatpush1.msra.mxu0 0.0
  %1474 = vmatprep.subr.mxu0 0.0
  %1475 = vmatpush1.msra.mxu0 0.0
  %1476 = vmatprep.subr.mxu0 0.0
  %1477 = vmatpush1.msra.mxu0 0.0
  %1478 = vmatprep.subr.mxu0 0.0
  %1479 = vmatpush1.msra.mxu0 0.0
  %1480 = vmatprep.subr.mxu0 0.0
  %1481 = vmatpush1.msra.mxu0 0.0
  %1482 = vmatprep.subr.mxu0 0.0
  %1483 = vmatpush1.msra.mxu0 0.0
  %1484 = vmatprep.subr.mxu0 0.0
  %1485 = vmatpush1.msra.mxu0 0.0
  %1486 = vmatprep.subr.mxu0 0.0
  %1487 = vmatpush1.msra.mxu0 0.0
  %1488 = vmatprep.subr.mxu0 0.0
  %1489 = vmatpush1.msra.mxu0 0.0
  %1490 = vmatprep.subr.mxu0 0.0
  %1491 = vmatpush1.msra.mxu0 0.0
  %1492 = vmatprep.subr.mxu0 0.0
  %1493 = vmatpush1.msra.mxu0 0.0
  %1494 = vmatprep.subr.mxu0 0.0
  %1495 = vmatpush1.msra.mxu0 0.0
  %1496 = vmatprep.subr.mxu0 0.0
  %1497 = vmatpush1.msra.mxu0 0.0
  %1498 = vmatprep.subr.mxu0 0.0
  %1499 = vmatpush1.msra.mxu0 0.0
  %1500 = vmatprep.subr.mxu0 0.0
  %1501 = vmatpush1.msra.mxu0 0.0
  %1502 = vmatprep.mubr.f32.mxu0 0.0
  %1503 = vmatmul.mubr.f32.gmra.mrb[0].mxu0 %v1359
  %v1504 = vpop.f32.mrb[0].mxu0
  %v1505 = vadd.f32 0.0, %v1504
  %v1506 = vpop.f32.mrb[0].mxu0
  %1507 = vmatprep.mubr.f32.mxu0 0.0
  %1508 = vmatmul.mubr.f32.gmra.mrb[0].mxu0 %v1361
  %v1509 = vpop.f32.mrb[0].mxu0
  %v1510 = vadd.f32 0.0, %v1509
  %v1511 = vpop.f32.mrb[0].mxu0
  %1512 = vdwg.mxu0
  %v1513 = vrcp.pop %v1505
  %v1514 = vrcp.pop %v1510
  %v1516 = vsel %vm310, %v1513, 0
  %v1519 = vsel %vm310, %v1514, 0
  %1521 = vmatprep.subr.mxu0 0.0
  %1522 = vmatpush1.msra.mxu0 %v306
  %1523 = vmatprep.subr.mxu0 0.0
  %1524 = vmatpush1.msra.mxu0 0.0
  %1525 = vmatprep.subr.mxu0 0.0
  %1526 = vmatpush1.msra.mxu0 0.0
  %1527 = vmatprep.subr.mxu0 0.0
  %1528 = vmatpush1.msra.mxu0 0.0
  %1529 = vmatprep.subr.mxu0 0.0
  %1530 = vmatpush1.msra.mxu0 0.0
  %1531 = vmatprep.subr.mxu0 0.0
  %1532 = vmatpush1.msra.mxu0 0.0
  %1533 = vmatprep.subr.mxu0 0.0
  %1534 = vmatpush1.msra.mxu0 0.0
  %1535 = vmatprep.subr.mxu0 0.0
  %1536 = vmatpush1.msra.mxu0 0.0
  %1537 = vmatprep.subr.mxu0 0.0
  %1538 = vmatpush1.msra.mxu0 0.0
  %1539 = vmatprep.subr.mxu0 0.0
  %1540 = vmatpush1.msra.mxu0 0.0
  %1541 = vmatprep.subr.mxu0 0.0
  %1542 = vmatpush1.msra.mxu0 0.0
  %1543 = vmatprep.subr.mxu0 0.0
  %1544 = vmatpush1.msra.mxu0 0.0
  %1545 = vmatprep.subr.mxu0 0.0
  %1546 = vmatpush1.msra.mxu0 0.0
  %1547 = vmatprep.subr.mxu0 0.0
  %1548 = vmatpush1.msra.mxu0 0.0
  %1549 = vmatprep.subr.mxu0 0.0
  %1550 = vmatpush1.msra.mxu0 0.0
  %1551 = vmatprep.subr.mxu0 0.0
  %1552 = vmatpush1.msra.mxu0 0.0
  %1553 = vmatprep.subr.mxu0 0.0
  %1554 = vmatpush1.msra.mxu0 0.0
  %1555 = vmatprep.subr.mxu0 0.0
  %1556 = vmatpush1.msra.mxu0 0.0
  %1557 = vmatprep.subr.mxu0 0.0
  %1558 = vmatpush1.msra.mxu0 0.0
  %1559 = vmatprep.subr.mxu0 0.0
  %1560 = vmatpush1.msra.mxu0 0.0
  %1561 = vmatprep.subr.mxu0 0.0
  %1562 = vmatpush1.msra.mxu0 0.0
  %1563 = vmatprep.subr.mxu0 0.0
  %1564 = vmatpush1.msra.mxu0 0.0
  %1565 = vmatprep.subr.mxu0 0.0
  %1566 = vmatpush1.msra.mxu0 0.0
  %1567 = vmatprep.subr.mxu0 0.0
  %1568 = vmatpush1.msra.mxu0 0.0
  %1569 = vmatprep.subr.mxu0 0.0
  %1570 = vmatpush1.msra.mxu0 0.0
  %1571 = vmatprep.subr.mxu0 0.0
  %1572 = vmatpush1.msra.mxu0 0.0
  %1573 = vmatprep.subr.mxu0 0.0
  %1574 = vmatpush1.msra.mxu0 0.0
  %1575 = vmatprep.subr.mxu0 0.0
  %1576 = vmatpush1.msra.mxu0 0.0
  %1577 = vmatprep.subr.mxu0 0.0
  %1578 = vmatpush1.msra.mxu0 0.0
  %1579 = vmatprep.subr.mxu0 0.0
  %1580 = vmatpush1.msra.mxu0 0.0
  %1581 = vmatprep.subr.mxu0 0.0
  %1582 = vmatpush1.msra.mxu0 0.0
  %1583 = vmatprep.subr.mxu0 0.0
  %1584 = vmatpush1.msra.mxu0 0.0
  %1585 = vmatprep.mubr.f32.mxu0 0.0
  %1586 = vmatmul.mubr.f32.gmra.mrb[0].mxu0 %v1516
  %v1587 = vpop.f32.mrb[0].mxu0
  %v1588 = vadd.f32 0.0, %v1587
  %v1589 = vpop.f32.mrb[0].mxu0
  %1590 = vmatprep.mubr.f32.mxu0 0.0
  %1591 = vmatmul.mubr.f32.gmra.mrb[0].mxu0 %v1519
  %v1592 = vpop.f32.mrb[0].mxu0
  %v1593 = vadd.f32 0.0, %v1592
  %v1594 = vpop.f32.mrb[0].mxu0
  %1595 = vdwg.mxu0
  %v1596 = vmul.f32 %v1430, %v1588
  %v1597 = vmul.f32 %v1435, %v1593
  %s1598 = scalar_lea.vmem %s9, 64
  %v1599 = vld [vmem:[%s1598] sm:$0xff]
  %v1600 = vld [vmem:[%s1598 + $0x8] sm:$0xff]
  %v1601 = vld [vmem:[%s1598 + $0x10] sm:$0xff]
  %v1602 = vld [vmem:[%s1598 + $0x18] sm:$0xff]
  %v1603 = vld [vmem:[%s1598 + $0x20] sm:$0xff]
  %v1604 = vld [vmem:[%s1598 + $0x28] sm:$0xff]
  %v1605 = vld [vmem:[%s1598 + $0x30] sm:$0xff]
  %v1606 = vld [vmem:[%s1598 + $0x38] sm:$0xff]
  %vm1607 = vcmask 523264
  %v1609 = vsel %vm1607, %v1596, 0
  %v1612 = vsel %vm1607, %v1597, 0
  %1614 = vmatprep.subr.mxu0 0.0
  %1615 = vmatpush1.msra.mxu0 %v1599
  %1616 = vmatprep.subr.mxu0 0.0
  %1617 = vmatpush1.msra.mxu0 %v1600
  %1618 = vmatprep.subr.mxu0 0.0
  %1619 = vmatpush1.msra.mxu0 %v1601
  %1620 = vmatprep.subr.mxu0 0.0
  %1621 = vmatpush1.msra.mxu0 %v1602
  %1622 = vmatprep.subr.mxu0 0.0
  %1623 = vmatpush1.msra.mxu0 %v1603
  %1624 = vmatprep.subr.mxu0 0.0
  %1625 = vmatpush1.msra.mxu0 %v1604
  %1626 = vmatprep.subr.mxu0 0.0
  %1627 = vmatpush1.msra.mxu0 %v1605
  %1628 = vmatprep.subr.mxu0 0.0
  %1629 = vmatpush1.msra.mxu0 %v1606
  %1630 = vmatprep.subr.mxu0 0.0
  %1631 = vmatpush1.msra.mxu0 0.0
  %1632 = vmatprep.subr.mxu0 0.0
  %1633 = vmatpush1.msra.mxu0 0.0
  %1634 = vmatprep.subr.mxu0 0.0
  %1635 = vmatpush1.msra.mxu0 0.0
  %1636 = vmatprep.subr.mxu0 0.0
  %1637 = vmatpush1.msra.mxu0 0.0
  %1638 = vmatprep.subr.mxu0 0.0
  %1639 = vmatpush1.msra.mxu0 0.0
  %1640 = vmatprep.subr.mxu0 0.0
  %1641 = vmatpush1.msra.mxu0 0.0
  %1642 = vmatprep.subr.mxu0 0.0
  %1643 = vmatpush1.msra.mxu0 0.0
  %1644 = vmatprep.subr.mxu0 0.0
  %1645 = vmatpush1.msra.mxu0 0.0
  %1646 = vmatprep.subr.mxu0 0.0
  %1647 = vmatpush1.msra.mxu0 0.0
  %1648 = vmatprep.subr.mxu0 0.0
  %1649 = vmatpush1.msra.mxu0 0.0
  %1650 = vmatprep.subr.mxu0 0.0
  %1651 = vmatpush1.msra.mxu0 0.0
  %1652 = vmatprep.subr.mxu0 0.0
  %1653 = vmatpush1.msra.mxu0 0.0
  %1654 = vmatprep.subr.mxu0 0.0
  %1655 = vmatpush1.msra.mxu0 0.0
  %1656 = vmatprep.subr.mxu0 0.0
  %1657 = vmatpush1.msra.mxu0 0.0
  %1658 = vmatprep.subr.mxu0 0.0
  %1659 = vmatpush1.msra.mxu0 0.0
  %1660 = vmatprep.subr.mxu0 0.0
  %1661 = vmatpush1.msra.mxu0 0.0
  %1662 = vmatprep.subr.mxu0 0.0
  %1663 = vmatpush1.msra.mxu0 0.0
  %1664 = vmatprep.subr.mxu0 0.0
  %1665 = vmatpush1.msra.mxu0 0.0
  %1666 = vmatprep.subr.mxu0 0.0
  %1667 = vmatpush1.msra.mxu0 0.0
  %1668 = vmatprep.subr.mxu0 0.0
  %1669 = vmatpush1.msra.mxu0 0.0
  %1670 = vmatprep.subr.mxu0 0.0
  %1671 = vmatpush1.msra.mxu0 0.0
  %1672 = vmatprep.subr.mxu0 0.0
  %1673 = vmatpush1.msra.mxu0 0.0
  %1674 = vmatprep.subr.mxu0 0.0
  %1675 = vmatpush1.msra.mxu0 0.0
  %1676 = vmatprep.subr.mxu0 0.0
  %1677 = vmatpush1.msra.mxu0 0.0
  %1678 = vmatprep.mubr.f32.mxu0 0.0
  %1679 = vmatmul.mubr.f32.gmra.mrb[0].mxu0 %v1609
  %v1680 = vpop.f32.mrb[0].mxu0
  %v1681 = vadd.f32 0.0, %v1680
  %v1682 = vpop.f32.mrb[0].mxu0
  %1683 = vmatprep.mubr.f32.mxu0 0.0
  %1684 = vmatmul.mubr.f32.gmra.mrb[0].mxu0 %v1612
  %v1685 = vpop.f32.mrb[0].mxu0
  %v1686 = vadd.f32 0.0, %v1685
  %v1687 = vpop.f32.mrb[0].mxu0
  %1688 = vdwg.mxu0
  %v1690 = vsel %vm1607, %v945, 0
  %v1693 = vsel %vm1607, %v946, 0
  %1695 = vmatprep.subr.mxu0 0.0
  %1696 = vmatpush1.msra.mxu0 %v947
  %1697 = vmatprep.subr.mxu0 0.0
  %1698 = vmatpush1.msra.mxu0 %v948
  %1699 = vmatprep.subr.mxu0 0.0
  %1700 = vmatpush1.msra.mxu0 %v949
  %1701 = vmatprep.subr.mxu0 0.0
  %1702 = vmatpush1.msra.mxu0 %v950
  %1703 = vmatprep.subr.mxu0 0.0
  %1704 = vmatpush1.msra.mxu0 %v951
  %1705 = vmatprep.subr.mxu0 0.0
  %1706 = vmatpush1.msra.mxu0 %v952
  %1707 = vmatprep.subr.mxu0 0.0
  %1708 = vmatpush1.msra.mxu0 %v953
  %1709 = vmatprep.subr.mxu0 0.0
  %1710 = vmatpush1.msra.mxu0 %v954
  %1711 = vmatprep.subr.mxu0 0.0
  %1712 = vmatpush1.msra.mxu0 0.0
  %1713 = vmatprep.subr.mxu0 0.0
  %1714 = vmatpush1.msra.mxu0 0.0
  %1715 = vmatprep.subr.mxu0 0.0
  %1716 = vmatpush1.msra.mxu0 0.0
  %1717 = vmatprep.subr.mxu0 0.0
  %1718 = vmatpush1.msra.mxu0 0.0
  %1719 = vmatprep.subr.mxu0 0.0
  %1720 = vmatpush1.msra.mxu0 0.0
  %1721 = vmatprep.subr.mxu0 0.0
  %1722 = vmatpush1.msra.mxu0 0.0
  %1723 = vmatprep.subr.mxu0 0.0
  %1724 = vmatpush1.msra.mxu0 0.0
  %1725 = vmatprep.subr.mxu0 0.0
  %1726 = vmatpush1.msra.mxu0 0.0
  %1727 = vmatprep.subr.mxu0 0.0
  %1728 = vmatpush1.msra.mxu0 0.0
  %1729 = vmatprep.subr.mxu0 0.0
  %1730 = vmatpush1.msra.mxu0 0.0
  %1731 = vmatprep.subr.mxu0 0.0
  %1732 = vmatpush1.msra.mxu0 0.0
  %1733 = vmatprep.subr.mxu0 0.0
  %1734 = vmatpush1.msra.mxu0 0.0
  %1735 = vmatprep.subr.mxu0 0.0
  %1736 = vmatpush1.msra.mxu0 0.0
  %1737 = vmatprep.subr.mxu0 0.0
  %1738 = vmatpush1.msra.mxu0 0.0
  %1739 = vmatprep.subr.mxu0 0.0
  %1740 = vmatpush1.msra.mxu0 0.0
  %1741 = vmatprep.subr.mxu0 0.0
  %1742 = vmatpush1.msra.mxu0 0.0
  %1743 = vmatprep.subr.mxu0 0.0
  %1744 = vmatpush1.msra.mxu0 0.0
  %1745 = vmatprep.subr.mxu0 0.0
  %1746 = vmatpush1.msra.mxu0 0.0
  %1747 = vmatprep.subr.mxu0 0.0
  %1748 = vmatpush1.msra.mxu0 0.0
  %1749 = vmatprep.subr.mxu0 0.0
  %1750 = vmatpush1.msra.mxu0 0.0
  %1751 = vmatprep.subr.mxu0 0.0
  %1752 = vmatpush1.msra.mxu0 0.0
  %1753 = vmatprep.subr.mxu0 0.0
  %1754 = vmatpush1.msra.mxu0 0.0
  %1755 = vmatprep.subr.mxu0 0.0
  %1756 = vmatpush1.msra.mxu0 0.0
  %1757 = vmatprep.subr.mxu0 0.0
  %1758 = vmatpush1.msra.mxu0 0.0
  %1759 = vmatprep.mubr.f32.mxu0 0.0
  %1760 = vmatmul.mubr.f32.gmra.mrb[0].mxu0 %v1690
  %v1761 = vpop.f32.mrb[0].mxu0
  %v1762 = vadd.f32 %v1681, %v1761
  %v1763 = vpop.f32.mrb[0].mxu0
  %1764 = vmatprep.mubr.f32.mxu0 0.0
  %1765 = vmatmul.mubr.f32.gmra.mrb[0].mxu0 %v1693
  %v1766 = vpop.f32.mrb[0].mxu0
  %v1767 = vadd.f32 %v1686, %v1766
  %v1768 = vpop.f32.mrb[0].mxu0
  %1769 = vdwg.mxu0
  %v1770 = vld [vmem:[%s10] sm:$0x1]
  %v1772 = vlaneseq
  %v1773 = vshrl.u32 %v1772, 7
  %v1774 = vsub.s32 0, %v1773
  %v1775 = vrot.slane %v1770, %v1774
  %v1777 = vadd.f32 %v1762, %v1775
  %v1778 = vadd.f32 %v1767, %v1775
  %1779 = vst.msk [vmem:[%s11] sm:$0xff] %vm310, %v1777
  %1780 = vst.msk [vmem:[%s11 + $0x8] sm:$0xff] %vm310, %v1778
  %v1781 = vmul.f32 %v141, %v141
  %v1782 = vmul.f32 %v146, %v146
  %v1783 = vsel %vm310, %v1781, 0.0
  %1784 = vadd.xlane.f32.xlu0 %v1783
  %v1785 = vpop.xlane.xlu0 %1784
  %v1786 = vsel %vm310, %v1782, 0.0
  %1787 = vadd.xlane.f32.xlu0 %v1786
  %v1788 = vpop.xlane.xlu0 %1787
  %v1789 = vmul.f32 %v1785, 0.5
  %v1790 = vmul.f32 %v1788, 0.5
  %vm1791 = vcmask 261248
  %v1792 = vsel %vm1791, %v319, 0.0
  %v1793 = vrot.slane %v1792, 4
  %v1794 = vadd.f32 %v1792, %v1793
  %v1795 = vrot.slane %v1794, 2
  %v1796 = vadd.f32 %v1794, %v1795
  %v1797 = vrot.slane %v1796, 1
  %v1798 = vadd.f32 %v1796, %v1797
  %v1799 = vmul.f32 %v1798, 0.5
  %v1800 = vsub.f32 %v141, %v1789
  %v1801 = vsub.f32 %v146, %v1790
  %v1802 = vsel %vm330, %v141, -inf
  %1803 = vmax.xlane.f32.xlu0 %v1802
  %v1804 = vpop.xlane.xlu0 %1803
  %v1805 = vsel %vm330, %v146, -inf
  %1806 = vmax.xlane.f32.xlu0 %v1805
  %v1807 = vpop.xlane.xlu0 %1806
  %v1808 = vsub.f32 %v1800, %v1804
  %v1809 = vsub.f32 %v1801, %v1807
  %v1810 = vmul.f32 %v1808, 1.442695
  %v1811 = vpow.pop %v1810
  %v1812 = vmul.f32 %v1809, 1.442695
  %v1813 = vpow.pop %v1812
  %v1814 = vadd.f32 %v1811, 1e-06
  %v1815 = vadd.f32 %v1813, 1e-06
  %v1816 = vmul.f32 %v1814, 0.25
  %v1817 = vmul.f32 %v1815, 0.25
  %v1818 = vsub.f32 %v288, %v1799
  %v1819 = vsub.f32 %v293, %v1799
  %v1820 = vsel %vm1791, %v288, -inf
  %v1821 = vsel %vm1791, %v293, -inf
  %v1822 = vmax.f32 %v1820, %v1821
  %1823 = vmax.xlane.f32.xlu0 %v1822
  %v1824 = vpop.xlane.xlu0 %1823
  %v1825 = vrot.slane %v1824, 4
  %v1826 = vmax.f32 %v1824, %v1825
  %v1827 = vrot.slane %v1826, 2
  %v1828 = vmax.f32 %v1826, %v1827
  %v1829 = vrot.slane %v1828, 1
  %v1830 = vmax.f32 %v1828, %v1829
  %s1831 = vtos %v1830
  %v1832 = vstv %s1831
  %v1833 = vsub.f32 %v1818, %v1832
  %v1834 = vsub.f32 %v1819, %v1832
  %v1835 = vmul.f32 %v1833, 1.442695
  %v1836 = vpow.pop %v1835
  %v1837 = vmul.f32 %v1834, 1.442695
  %v1838 = vpow.pop %v1837
  %v1839 = vadd.f32 %v1836, 1e-06
  %v1840 = vadd.f32 %v1838, 1e-06
  %v1841 = vmul.f32 %v1839, 0.25
  %v1842 = vmul.f32 %v1840, 0.25
  %s1843 = scalar_lea.vmem %s6, 32
  %v1844 = vld [vmem:[%s1843] sm:$0xff]
  %v1845 = vld [vmem:[%s1843 + $0x8] sm:$0xff]
  %v1846 = vmul.f32 %v1844, 1.442695
  %v1847 = vpow.pop %v1846
  %v1848 = vmul.f32 %v1845, 1.442695
  %v1849 = vpow.pop %v1848
  %v1851 = vsel %vm310, %v1847, 0
  %v1854 = vsel %vm310, %v1849, 0
  %1856 = vmatprep.subr.mxu0 0.0
  %1857 = vmatpush1.msra.mxu0 %v306
  %1858 = vmatprep.subr.mxu0 0.0
  %1859 = vmatpush1.msra.mxu0 0.0
  %1860 = vmatprep.subr.mxu0 0.0
  %1861 = vmatpush1.msra.mxu0 0.0
  %1862 = vmatprep.subr.mxu0 0.0
  %1863 = vmatpush1.msra.mxu0 0.0
  %1864 = vmatprep.subr.mxu0 0.0
  %1865 = vmatpush1.msra.mxu0 0.0
  %1866 = vmatprep.subr.mxu0 0.0
  %1867 = vmatpush1.msra.mxu0 0.0
  %1868 = vmatprep.subr.mxu0 0.0
  %1869 = vmatpush1.msra.mxu0 0.0
  %1870 = vmatprep.subr.mxu0 0.0
  %1871 = vmatpush1.msra.mxu0 0.0
  %1872 = vmatprep.subr.mxu0 0.0
  %1873 = vmatpush1.msra.mxu0 0.0
  %1874 = vmatprep.subr.mxu0 0.0
  %1875 = vmatpush1.msra.mxu0 0.0
  %1876 = vmatprep.subr.mxu0 0.0
  %1877 = vmatpush1.msra.mxu0 0.0
  %1878 = vmatprep.subr.mxu0 0.0
  %1879 = vmatpush1.msra.mxu0 0.0
  %1880 = vmatprep.subr.mxu0 0.0
  %1881 = vmatpush1.msra.mxu0 0.0
  %1882 = vmatprep.subr.mxu0 0.0
  %1883 = vmatpush1.msra.mxu0 0.0
  %1884 = vmatprep.subr.mxu0 0.0
  %1885 = vmatpush1.msra.mxu0 0.0
  %1886 = vmatprep.subr.mxu0 0.0
  %1887 = vmatpush1.msra.mxu0 0.0
  %1888 = vmatprep.subr.mxu0 0.0
  %1889 = vmatpush1.msra.mxu0 0.0
  %1890 = vmatprep.subr.mxu0 0.0
  %1891 = vmatpush1.msra.mxu0 0.0
  %1892 = vmatprep.subr.mxu0 0.0
  %1893 = vmatpush1.msra.mxu0 0.0
  %1894 = vmatprep.subr.mxu0 0.0
  %1895 = vmatpush1.msra.mxu0 0.0
  %1896 = vmatprep.subr.mxu0 0.0
  %1897 = vmatpush1.msra.mxu0 0.0
  %1898 = vmatprep.subr.mxu0 0.0
  %1899 = vmatpush1.msra.mxu0 0.0
  %1900 = vmatprep.subr.mxu0 0.0
  %1901 = vmatpush1.msra.mxu0 0.0
  %1902 = vmatprep.subr.mxu0 0.0
  %1903 = vmatpush1.msra.mxu0 0.0
  %1904 = vmatprep.subr.mxu0 0.0
  %1905 = vmatpush1.msra.mxu0 0.0
  %1906 = vmatprep.subr.mxu0 0.0
  %1907 = vmatpush1.msra.mxu0 0.0
  %1908 = vmatprep.subr.mxu0 0.0
  %1909 = vmatpush1.msra.mxu0 0.0
  %1910 = vmatprep.subr.mxu0 0.0
  %1911 = vmatpush1.msra.mxu0 0.0
  %1912 = vmatprep.subr.mxu0 0.0
  %1913 = vmatpush1.msra.mxu0 0.0
  %1914 = vmatprep.subr.mxu0 0.0
  %1915 = vmatpush1.msra.mxu0 0.0
  %1916 = vmatprep.subr.mxu0 0.0
  %1917 = vmatpush1.msra.mxu0 0.0
  %1918 = vmatprep.subr.mxu0 0.0
  %1919 = vmatpush1.msra.mxu0 0.0
  %1920 = vmatprep.mubr.f32.mxu0 0.0
  %1921 = vmatmul.mubr.f32.gmra.mrb[0].mxu0 %v1851
  %v1922 = vpop.f32.mrb[0].mxu0
  %v1923 = vadd.f32 0.0, %v1922
  %v1924 = vpop.f32.mrb[0].mxu0
  %1925 = vmatprep.mubr.f32.mxu0 0.0
  %1926 = vmatmul.mubr.f32.gmra.mrb[0].mxu0 %v1854
  %v1927 = vpop.f32.mrb[0].mxu0
  %v1928 = vadd.f32 0.0, %v1927
  %v1929 = vpop.f32.mrb[0].mxu0
  %1930 = vdwg.mxu0
  %1933 = vrot.lane.b32.xlu0 %v141, 112
  %v1934 = vpop.permute.xlu0 %1933
  %1935 = vrot.lane.b32.xlu0 %v146, 112
  %v1936 = vpop.permute.xlu0 %1935
  %v1937 = vsel %vm310, %v1934, 0
  %v1939 = vsel %vm310, %v1936, 0
  %1941 = vmatprep.subr.mxu0 0.0
  %1942 = vmatpush1.msra.mxu0 %v307
  %1943 = vmatprep.subr.mxu0 0.0
  %1944 = vmatpush1.msra.mxu0 0.0
  %1945 = vmatprep.subr.mxu0 0.0
  %1946 = vmatpush1.msra.mxu0 0.0
  %1947 = vmatprep.subr.mxu0 0.0
  %1948 = vmatpush1.msra.mxu0 0.0
  %1949 = vmatprep.subr.mxu0 0.0
  %1950 = vmatpush1.msra.mxu0 0.0
  %1951 = vmatprep.subr.mxu0 0.0
  %1952 = vmatpush1.msra.mxu0 0.0
  %1953 = vmatprep.subr.mxu0 0.0
  %1954 = vmatpush1.msra.mxu0 0.0
  %1955 = vmatprep.subr.mxu0 0.0
  %1956 = vmatpush1.msra.mxu0 0.0
  %1957 = vmatprep.subr.mxu0 0.0
  %1958 = vmatpush1.msra.mxu0 0.0
  %1959 = vmatprep.subr.mxu0 0.0
  %1960 = vmatpush1.msra.mxu0 0.0
  %1961 = vmatprep.subr.mxu0 0.0
  %1962 = vmatpush1.msra.mxu0 0.0
  %1963 = vmatprep.subr.mxu0 0.0
  %1964 = vmatpush1.msra.mxu0 0.0
  %1965 = vmatprep.subr.mxu0 0.0
  %1966 = vmatpush1.msra.mxu0 0.0
  %1967 = vmatprep.subr.mxu0 0.0
  %1968 = vmatpush1.msra.mxu0 0.0
  %1969 = vmatprep.subr.mxu0 0.0
  %1970 = vmatpush1.msra.mxu0 0.0
  %1971 = vmatprep.subr.mxu0 0.0
  %1972 = vmatpush1.msra.mxu0 0.0
  %1973 = vmatprep.subr.mxu0 0.0
  %1974 = vmatpush1.msra.mxu0 0.0
  %1975 = vmatprep.subr.mxu0 0.0
  %1976 = vmatpush1.msra.mxu0 0.0
  %1977 = vmatprep.subr.mxu0 0.0
  %1978 = vmatpush1.msra.mxu0 0.0
  %1979 = vmatprep.subr.mxu0 0.0
  %1980 = vmatpush1.msra.mxu0 0.0
  %1981 = vmatprep.subr.mxu0 0.0
  %1982 = vmatpush1.msra.mxu0 0.0
  %1983 = vmatprep.subr.mxu0 0.0
  %1984 = vmatpush1.msra.mxu0 0.0
  %1985 = vmatprep.subr.mxu0 0.0
  %1986 = vmatpush1.msra.mxu0 0.0
  %1987 = vmatprep.subr.mxu0 0.0
  %1988 = vmatpush1.msra.mxu0 0.0
  %1989 = vmatprep.subr.mxu0 0.0
  %1990 = vmatpush1.msra.mxu0 0.0
  %1991 = vmatprep.subr.mxu0 0.0
  %1992 = vmatpush1.msra.mxu0 0.0
  %1993 = vmatprep.subr.mxu0 0.0
  %1994 = vmatpush1.msra.mxu0 0.0
  %1995 = vmatprep.subr.mxu0 0.0
  %1996 = vmatpush1.msra.mxu0 0.0
  %1997 = vmatprep.subr.mxu0 0.0
  %1998 = vmatpush1.msra.mxu0 0.0
  %1999 = vmatprep.subr.mxu0 0.0
  %2000 = vmatpush1.msra.mxu0 0.0
  %2001 = vmatprep.subr.mxu0 0.0
  %2002 = vmatpush1.msra.mxu0 0.0
  %2003 = vmatprep.subr.mxu0 0.0
  %2004 = vmatpush1.msra.mxu0 0.0
  %2005 = vmatprep.mubr.f32.mxu0 0.0
  %2006 = vmatmul.mubr.f32.gmra.mrb[0].mxu0 %v1937
  %v2007 = vpop.f32.mrb[0].mxu0
  %v2008 = vadd.f32 0.0, %v2007
  %v2009 = vpop.f32.mrb[0].mxu0
  %2010 = vmatprep.mubr.f32.mxu0 0.0
  %2011 = vmatmul.mubr.f32.gmra.mrb[0].mxu0 %v1939
  %v2012 = vpop.f32.mrb[0].mxu0
  %v2013 = vadd.f32 0.0, %v2012
  %v2014 = vpop.f32.mrb[0].mxu0
  %2015 = vdwg.mxu0
  %v2016 = vmul.f32 %v1923, %v2008
  %v2017 = vmul.f32 %v1928, %v2013
  %2020 = vrot.lane.b32.xlu0 %v1841, 112
  %v2021 = vpop.permute.xlu0 %2020
  %2022 = vrot.lane.b32.xlu0 %v1842, 112
  %v2023 = vpop.permute.xlu0 %2022
  %v2024 = vsel %vm51, %v2021, 0
  %v2026 = vsel %vm51, %v2023, 0
  %2028 = vmatprep.subr.mxu0 0.0
  %2029 = vmatpush1.msra.mxu0 %v2016
  %2030 = vmatprep.subr.mxu0 0.0
  %2031 = vmatpush1.msra.mxu0 %v2017
  %2032 = vmatprep.subr.mxu0 0.0
  %2033 = vmatpush1.msra.mxu0 0.0
  %2034 = vmatprep.subr.mxu0 0.0
  %2035 = vmatpush1.msra.mxu0 0.0
  %2036 = vmatprep.subr.mxu0 0.0
  %2037 = vmatpush1.msra.mxu0 0.0
  %2038 = vmatprep.subr.mxu0 0.0
  %2039 = vmatpush1.msra.mxu0 0.0
  %2040 = vmatprep.subr.mxu0 0.0
  %2041 = vmatpush1.msra.mxu0 0.0
  %2042 = vmatprep.subr.mxu0 0.0
  %2043 = vmatpush1.msra.mxu0 0.0
  %2044 = vmatprep.subr.mxu0 0.0
  %2045 = vmatpush1.msra.mxu0 0.0
  %2046 = vmatprep.subr.mxu0 0.0
  %2047 = vmatpush1.msra.mxu0 0.0
  %2048 = vmatprep.subr.mxu0 0.0
  %2049 = vmatpush1.msra.mxu0 0.0
  %2050 = vmatprep.subr.mxu0 0.0
  %2051 = vmatpush1.msra.mxu0 0.0
  %2052 = vmatprep.subr.mxu0 0.0
  %2053 = vmatpush1.msra.mxu0 0.0
  %2054 = vmatprep.subr.mxu0 0.0
  %2055 = vmatpush1.msra.mxu0 0.0
  %2056 = vmatprep.subr.mxu0 0.0
  %2057 = vmatpush1.msra.mxu0 0.0
  %2058 = vmatprep.subr.mxu0 0.0
  %2059 = vmatpush1.msra.mxu0 0.0
  %2060 = vmatprep.subr.mxu0 0.0
  %2061 = vmatpush1.msra.mxu0 0.0
  %2062 = vmatprep.subr.mxu0 0.0
  %2063 = vmatpush1.msra.mxu0 0.0
  %2064 = vmatprep.subr.mxu0 0.0
  %2065 = vmatpush1.msra.mxu0 0.0
  %2066 = vmatprep.subr.mxu0 0.0
  %2067 = vmatpush1.msra.mxu0 0.0
  %2068 = vmatprep.subr.mxu0 0.0
  %2069 = vmatpush1.msra.mxu0 0.0
  %2070 = vmatprep.subr.mxu0 0.0
  %2071 = vmatpush1.msra.mxu0 0.0
  %2072 = vmatprep.subr.mxu0 0.0
  %2073 = vmatpush1.msra.mxu0 0.0
  %2074 = vmatprep.subr.mxu0 0.0
  %2075 = vmatpush1.msra.mxu0 0.0
  %2076 = vmatprep.subr.mxu0 0.0
  %2077 = vmatpush1.msra.mxu0 0.0
  %2078 = vmatprep.subr.mxu0 0.0
  %2079 = vmatpush1.msra.mxu0 0.0
  %2080 = vmatprep.subr.mxu0 0.0
  %2081 = vmatpush1.msra.mxu0 0.0
  %2082 = vmatprep.subr.mxu0 0.0
  %2083 = vmatpush1.msra.mxu0 0.0
  %2084 = vmatprep.subr.mxu0 0.0
  %2085 = vmatpush1.msra.mxu0 0.0
  %2086 = vmatprep.subr.mxu0 0.0
  %2087 = vmatpush1.msra.mxu0 0.0
  %2088 = vmatprep.subr.mxu0 0.0
  %2089 = vmatpush1.msra.mxu0 0.0
  %2090 = vmatprep.subr.mxu0 0.0
  %2091 = vmatpush1.msra.mxu0 0.0
  %2092 = vmatprep.mubr.f32.mxu0 0.0
  %2093 = vmatmul.mubr.f32.gmra.mrb[0].mxu0 %v2024
  %v2094 = vpop.f32.mrb[0].mxu0
  %v2095 = vadd.f32 0.0, %v2094
  %v2096 = vpop.f32.mrb[0].mxu0
  %2097 = vmatprep.mubr.f32.mxu0 0.0
  %2098 = vmatmul.mubr.f32.gmra.mrb[0].mxu0 %v2026
  %v2099 = vpop.f32.mrb[0].mxu0
  %v2100 = vadd.f32 0.0, %v2099
  %v2101 = vpop.f32.mrb[0].mxu0
  %2102 = vdwg.mxu0
  %2103 = vmatprep.subr.mxu0 0.0
  %2104 = vmatpush1.msra.mxu0 %v1847
  %2105 = vmatprep.subr.mxu0 0.0
  %2106 = vmatpush1.msra.mxu0 %v1849
  %2107 = vmatprep.subr.mxu0 0.0
  %2108 = vmatpush1.msra.mxu0 0.0
  %2109 = vmatprep.subr.mxu0 0.0
  %2110 = vmatpush1.msra.mxu0 0.0
  %2111 = vmatprep.subr.mxu0 0.0
  %2112 = vmatpush1.msra.mxu0 0.0
  %2113 = vmatprep.subr.mxu0 0.0
  %2114 = vmatpush1.msra.mxu0 0.0
  %2115 = vmatprep.subr.mxu0 0.0
  %2116 = vmatpush1.msra.mxu0 0.0
  %2117 = vmatprep.subr.mxu0 0.0
  %2118 = vmatpush1.msra.mxu0 0.0
  %2119 = vmatprep.subr.mxu0 0.0
  %2120 = vmatpush1.msra.mxu0 0.0
  %2121 = vmatprep.subr.mxu0 0.0
  %2122 = vmatpush1.msra.mxu0 0.0
  %2123 = vmatprep.subr.mxu0 0.0
  %2124 = vmatpush1.msra.mxu0 0.0
  %2125 = vmatprep.subr.mxu0 0.0
  %2126 = vmatpush1.msra.mxu0 0.0
  %2127 = vmatprep.subr.mxu0 0.0
  %2128 = vmatpush1.msra.mxu0 0.0
  %2129 = vmatprep.subr.mxu0 0.0
  %2130 = vmatpush1.msra.mxu0 0.0
  %2131 = vmatprep.subr.mxu0 0.0
  %2132 = vmatpush1.msra.mxu0 0.0
  %2133 = vmatprep.subr.mxu0 0.0
  %2134 = vmatpush1.msra.mxu0 0.0
  %2135 = vmatprep.subr.mxu0 0.0
  %2136 = vmatpush1.msra.mxu0 0.0
  %2137 = vmatprep.subr.mxu0 0.0
  %2138 = vmatpush1.msra.mxu0 0.0
  %2139 = vmatprep.subr.mxu0 0.0
  %2140 = vmatpush1.msra.mxu0 0.0
  %2141 = vmatprep.subr.mxu0 0.0
  %2142 = vmatpush1.msra.mxu0 0.0
  %2143 = vmatprep.subr.mxu0 0.0
  %2144 = vmatpush1.msra.mxu0 0.0
  %2145 = vmatprep.subr.mxu0 0.0
  %2146 = vmatpush1.msra.mxu0 0.0
  %2147 = vmatprep.subr.mxu0 0.0
  %2148 = vmatpush1.msra.mxu0 0.0
  %2149 = vmatprep.subr.mxu0 0.0
  %2150 = vmatpush1.msra.mxu0 0.0
  %2151 = vmatprep.subr.mxu0 0.0
  %2152 = vmatpush1.msra.mxu0 0.0
  %2153 = vmatprep.subr.mxu0 0.0
  %2154 = vmatpush1.msra.mxu0 0.0
  %2155 = vmatprep.subr.mxu0 0.0
  %2156 = vmatpush1.msra.mxu0 0.0
  %2157 = vmatprep.subr.mxu0 0.0
  %2158 = vmatpush1.msra.mxu0 0.0
  %2159 = vmatprep.subr.mxu0 0.0
  %2160 = vmatpush1.msra.mxu0 0.0
  %2161 = vmatprep.subr.mxu0 0.0
  %2162 = vmatpush1.msra.mxu0 0.0
  %2163 = vmatprep.subr.mxu0 0.0
  %2164 = vmatpush1.msra.mxu0 0.0
  %2165 = vmatprep.subr.mxu0 0.0
  %2166 = vmatpush1.msra.mxu0 0.0
  %2167 = vmatprep.mubr.f32.mxu0 0.0
  %2168 = vmatmul.mubr.f32.gmra.mrb[0].mxu0 %v2024
  %v2169 = vpop.f32.mrb[0].mxu0
  %v2170 = vadd.f32 0.0, %v2169
  %v2171 = vpop.f32.mrb[0].mxu0
  %2172 = vmatprep.mubr.f32.mxu0 0.0
  %2173 = vmatmul.mubr.f32.gmra.mrb[0].mxu0 %v2026
  %v2174 = vpop.f32.mrb[0].mxu0
  %v2175 = vadd.f32 0.0, %v2174
  %v2176 = vpop.f32.mrb[0].mxu0
  %2177 = vdwg.mxu0
  %2180 = vrot.lane.b32.xlu0 %v1816, 96
  %v2181 = vpop.permute.xlu0 %2180
  %2182 = vrot.lane.b32.xlu0 %v1817, 96
  %v2183 = vpop.permute.xlu0 %2182
  %v2184 = vsel %vm51, %v2181, 0
  %v2186 = vsel %vm51, %v2183, 0
  %2188 = vmatprep.subr.mxu0 0.0
  %2189 = vmatpush1.msra.mxu0 %v2095
  %2190 = vmatprep.subr.mxu0 0.0
  %2191 = vmatpush1.msra.mxu0 %v2100
  %2192 = vmatprep.subr.mxu0 0.0
  %2193 = vmatpush1.msra.mxu0 0.0
  %2194 = vmatprep.subr.mxu0 0.0
  %2195 = vmatpush1.msra.mxu0 0.0
  %2196 = vmatprep.subr.mxu0 0.0
  %2197 = vmatpush1.msra.mxu0 0.0
  %2198 = vmatprep.subr.mxu0 0.0
  %2199 = vmatpush1.msra.mxu0 0.0
  %2200 = vmatprep.subr.mxu0 0.0
  %2201 = vmatpush1.msra.mxu0 0.0
  %2202 = vmatprep.subr.mxu0 0.0
  %2203 = vmatpush1.msra.mxu0 0.0
  %2204 = vmatprep.subr.mxu0 0.0
  %2205 = vmatpush1.msra.mxu0 0.0
  %2206 = vmatprep.subr.mxu0 0.0
  %2207 = vmatpush1.msra.mxu0 0.0
  %2208 = vmatprep.subr.mxu0 0.0
  %2209 = vmatpush1.msra.mxu0 0.0
  %2210 = vmatprep.subr.mxu0 0.0
  %2211 = vmatpush1.msra.mxu0 0.0
  %2212 = vmatprep.subr.mxu0 0.0
  %2213 = vmatpush1.msra.mxu0 0.0
  %2214 = vmatprep.subr.mxu0 0.0
  %2215 = vmatpush1.msra.mxu0 0.0
  %2216 = vmatprep.subr.mxu0 0.0
  %2217 = vmatpush1.msra.mxu0 0.0
  %2218 = vmatprep.subr.mxu0 0.0
  %2219 = vmatpush1.msra.mxu0 0.0
  %2220 = vmatprep.subr.mxu0 0.0
  %2221 = vmatpush1.msra.mxu0 0.0
  %2222 = vmatprep.subr.mxu0 0.0
  %2223 = vmatpush1.msra.mxu0 0.0
  %2224 = vmatprep.subr.mxu0 0.0
  %2225 = vmatpush1.msra.mxu0 0.0
  %2226 = vmatprep.subr.mxu0 0.0
  %2227 = vmatpush1.msra.mxu0 0.0
  %2228 = vmatprep.subr.mxu0 0.0
  %2229 = vmatpush1.msra.mxu0 0.0
  %2230 = vmatprep.subr.mxu0 0.0
  %2231 = vmatpush1.msra.mxu0 0.0
  %2232 = vmatprep.subr.mxu0 0.0
  %2233 = vmatpush1.msra.mxu0 0.0
  %2234 = vmatprep.subr.mxu0 0.0
  %2235 = vmatpush1.msra.mxu0 0.0
  %2236 = vmatprep.subr.mxu0 0.0
  %2237 = vmatpush1.msra.mxu0 0.0
  %2238 = vmatprep.subr.mxu0 0.0
  %2239 = vmatpush1.msra.mxu0 0.0
  %2240 = vmatprep.subr.mxu0 0.0
  %2241 = vmatpush1.msra.mxu0 0.0
  %2242 = vmatprep.subr.mxu0 0.0
  %2243 = vmatpush1.msra.mxu0 0.0
  %2244 = vmatprep.subr.mxu0 0.0
  %2245 = vmatpush1.msra.mxu0 0.0
  %2246 = vmatprep.subr.mxu0 0.0
  %2247 = vmatpush1.msra.mxu0 0.0
  %2248 = vmatprep.subr.mxu0 0.0
  %2249 = vmatpush1.msra.mxu0 0.0
  %2250 = vmatprep.subr.mxu0 0.0
  %2251 = vmatpush1.msra.mxu0 0.0
  %2252 = vmatprep.mubr.f32.mxu0 0.0
  %2253 = vmatmul.mubr.f32.gmra.mrb[0].mxu0 %v2184
  %v2254 = vpop.f32.mrb[0].mxu0
  %v2255 = vadd.f32 0.0, %v2254
  %v2256 = vpop.f32.mrb[0].mxu0
  %2257 = vmatprep.mubr.f32.mxu0 0.0
  %2258 = vmatmul.mubr.f32.gmra.mrb[0].mxu0 %v2186
  %v2259 = vpop.f32.mrb[0].mxu0
  %v2260 = vadd.f32 0.0, %v2259
  %v2261 = vpop.f32.mrb[0].mxu0
  %2262 = vdwg.mxu0
  %2263 = vmatprep.subr.mxu0 0.0
  %2264 = vmatpush1.msra.mxu0 %v2170
  %2265 = vmatprep.subr.mxu0 0.0
  %2266 = vmatpush1.msra.mxu0 %v2175
  %2267 = vmatprep.subr.mxu0 0.0
  %2268 = vmatpush1.msra.mxu0 0.0
  %2269 = vmatprep.subr.mxu0 0.0
  %2270 = vmatpush1.msra.mxu0 0.0
  %2271 = vmatprep.subr.mxu0 0.0
  %2272 = vmatpush1.msra.mxu0 0.0
  %2273 = vmatprep.subr.mxu0 0.0
  %2274 = vmatpush1.msra.mxu0 0.0
  %2275 = vmatprep.subr.mxu0 0.0
  %2276 = vmatpush1.msra.mxu0 0.0
  %2277 = vmatprep.subr.mxu0 0.0
  %2278 = vmatpush1.msra.mxu0 0.0
  %2279 = vmatprep.subr.mxu0 0.0
  %2280 = vmatpush1.msra.mxu0 0.0
  %2281 = vmatprep.subr.mxu0 0.0
  %2282 = vmatpush1.msra.mxu0 0.0
  %2283 = vmatprep.subr.mxu0 0.0
  %2284 = vmatpush1.msra.mxu0 0.0
  %2285 = vmatprep.subr.mxu0 0.0
  %2286 = vmatpush1.msra.mxu0 0.0
  %2287 = vmatprep.subr.mxu0 0.0
  %2288 = vmatpush1.msra.mxu0 0.0
  %2289 = vmatprep.subr.mxu0 0.0
  %2290 = vmatpush1.msra.mxu0 0.0
  %2291 = vmatprep.subr.mxu0 0.0
  %2292 = vmatpush1.msra.mxu0 0.0
  %2293 = vmatprep.subr.mxu0 0.0
  %2294 = vmatpush1.msra.mxu0 0.0
  %2295 = vmatprep.subr.mxu0 0.0
  %2296 = vmatpush1.msra.mxu0 0.0
  %2297 = vmatprep.subr.mxu0 0.0
  %2298 = vmatpush1.msra.mxu0 0.0
  %2299 = vmatprep.subr.mxu0 0.0
  %2300 = vmatpush1.msra.mxu0 0.0
  %2301 = vmatprep.subr.mxu0 0.0
  %2302 = vmatpush1.msra.mxu0 0.0
  %2303 = vmatprep.subr.mxu0 0.0
  %2304 = vmatpush1.msra.mxu0 0.0
  %2305 = vmatprep.subr.mxu0 0.0
  %2306 = vmatpush1.msra.mxu0 0.0
  %2307 = vmatprep.subr.mxu0 0.0
  %2308 = vmatpush1.msra.mxu0 0.0
  %2309 = vmatprep.subr.mxu0 0.0
  %2310 = vmatpush1.msra.mxu0 0.0
  %2311 = vmatprep.subr.mxu0 0.0
  %2312 = vmatpush1.msra.mxu0 0.0
  %2313 = vmatprep.subr.mxu0 0.0
  %2314 = vmatpush1.msra.mxu0 0.0
  %2315 = vmatprep.subr.mxu0 0.0
  %2316 = vmatpush1.msra.mxu0 0.0
  %2317 = vmatprep.subr.mxu0 0.0
  %2318 = vmatpush1.msra.mxu0 0.0
  %2319 = vmatprep.subr.mxu0 0.0
  %2320 = vmatpush1.msra.mxu0 0.0
  %2321 = vmatprep.subr.mxu0 0.0
  %2322 = vmatpush1.msra.mxu0 0.0
  %2323 = vmatprep.subr.mxu0 0.0
  %2324 = vmatpush1.msra.mxu0 0.0
  %2325 = vmatprep.subr.mxu0 0.0
  %2326 = vmatpush1.msra.mxu0 0.0
  %2327 = vmatprep.mubr.f32.mxu0 0.0
  %2328 = vmatmul.mubr.f32.gmra.mrb[0].mxu0 %v2184
  %v2329 = vpop.f32.mrb[0].mxu0
  %v2330 = vadd.f32 0.0, %v2329
  %v2331 = vpop.f32.mrb[0].mxu0
  %2332 = vmatprep.mubr.f32.mxu0 0.0
  %2333 = vmatmul.mubr.f32.gmra.mrb[0].mxu0 %v2186
  %v2334 = vpop.f32.mrb[0].mxu0
  %v2335 = vadd.f32 0.0, %v2334
  %v2336 = vpop.f32.mrb[0].mxu0
  %2337 = vdwg.mxu0
  %v2338 = vrcp.pop %v2330
  %v2339 = vrcp.pop %v2335
  %v2341 = vsel %vm310, %v2338, 0
  %v2344 = vsel %vm310, %v2339, 0
  %2346 = vmatprep.subr.mxu0 0.0
  %2347 = vmatpush1.msra.mxu0 %v306
  %2348 = vmatprep.subr.mxu0 0.0
  %2349 = vmatpush1.msra.mxu0 0.0
  %2350 = vmatprep.subr.mxu0 0.0
  %2351 = vmatpush1.msra.mxu0 0.0
  %2352 = vmatprep.subr.mxu0 0.0
  %2353 = vmatpush1.msra.mxu0 0.0
  %2354 = vmatprep.subr.mxu0 0.0
  %2355 = vmatpush1.msra.mxu0 0.0
  %2356 = vmatprep.subr.mxu0 0.0
  %2357 = vmatpush1.msra.mxu0 0.0
  %2358 = vmatprep.subr.mxu0 0.0
  %2359 = vmatpush1.msra.mxu0 0.0
  %2360 = vmatprep.subr.mxu0 0.0
  %2361 = vmatpush1.msra.mxu0 0.0
  %2362 = vmatprep.subr.mxu0 0.0
  %2363 = vmatpush1.msra.mxu0 0.0
  %2364 = vmatprep.subr.mxu0 0.0
  %2365 = vmatpush1.msra.mxu0 0.0
  %2366 = vmatprep.subr.mxu0 0.0
  %2367 = vmatpush1.msra.mxu0 0.0
  %2368 = vmatprep.subr.mxu0 0.0
  %2369 = vmatpush1.msra.mxu0 0.0
  %2370 = vmatprep.subr.mxu0 0.0
  %2371 = vmatpush1.msra.mxu0 0.0
  %2372 = vmatprep.subr.mxu0 0.0
  %2373 = vmatpush1.msra.mxu0 0.0
  %2374 = vmatprep.subr.mxu0 0.0
  %2375 = vmatpush1.msra.mxu0 0.0
  %2376 = vmatprep.subr.mxu0 0.0
  %2377 = vmatpush1.msra.mxu0 0.0
  %2378 = vmatprep.subr.mxu0 0.0
  %2379 = vmatpush1.msra.mxu0 0.0
  %2380 = vmatprep.subr.mxu0 0.0
  %2381 = vmatpush1.msra.mxu0 0.0
  %2382 = vmatprep.subr.mxu0 0.0
  %2383 = vmatpush1.msra.mxu0 0.0
  %2384 = vmatprep.subr.mxu0 0.0
  %2385 = vmatpush1.msra.mxu0 0.0
  %2386 = vmatprep.subr.mxu0 0.0
  %2387 = vmatpush1.msra.mxu0 0.0
  %2388 = vmatprep.subr.mxu0 0.0
  %2389 = vmatpush1.msra.mxu0 0.0
  %2390 = vmatprep.subr.mxu0 0.0
  %2391 = vmatpush1.msra.mxu0 0.0
  %2392 = vmatprep.subr.mxu0 0.0
  %2393 = vmatpush1.msra.mxu0 0.0
  %2394 = vmatprep.subr.mxu0 0.0
  %2395 = vmatpush1.msra.mxu0 0.0
  %2396 = vmatprep.subr.mxu0 0.0
  %2397 = vmatpush1.msra.mxu0 0.0
  %2398 = vmatprep.subr.mxu0 0.0
  %2399 = vmatpush1.msra.mxu0 0.0
  %2400 = vmatprep.subr.mxu0 0.0
  %2401 = vmatpush1.msra.mxu0 0.0
  %2402 = vmatprep.subr.mxu0 0.0
  %2403 = vmatpush1.msra.mxu0 0.0
  %2404 = vmatprep.subr.mxu0 0.0
  %2405 = vmatpush1.msra.mxu0 0.0
  %2406 = vmatprep.subr.mxu0 0.0
  %2407 = vmatpush1.msra.mxu0 0.0
  %2408 = vmatprep.subr.mxu0 0.0
  %2409 = vmatpush1.msra.mxu0 0.0
  %2410 = vmatprep.mubr.f32.mxu0 0.0
  %2411 = vmatmul.mubr.f32.gmra.mrb[0].mxu0 %v2341
  %v2412 = vpop.f32.mrb[0].mxu0
  %v2413 = vadd.f32 0.0, %v2412
  %v2414 = vpop.f32.mrb[0].mxu0
  %2415 = vmatprep.mubr.f32.mxu0 0.0
  %2416 = vmatmul.mubr.f32.gmra.mrb[0].mxu0 %v2344
  %v2417 = vpop.f32.mrb[0].mxu0
  %v2418 = vadd.f32 0.0, %v2417
  %v2419 = vpop.f32.mrb[0].mxu0
  %2420 = vdwg.mxu0
  %v2421 = vmul.f32 %v2255, %v2413
  %v2422 = vmul.f32 %v2260, %v2418
  %v2423 = vld [vmem:[%s9] sm:$0xff]
  %v2424 = vld [vmem:[%s9 + $0x8] sm:$0xff]
  %v2425 = vld [vmem:[%s9 + $0x10] sm:$0xff]
  %v2426 = vld [vmem:[%s9 + $0x18] sm:$0xff]
  %v2427 = vld [vmem:[%s9 + $0x20] sm:$0xff]
  %v2428 = vld [vmem:[%s9 + $0x28] sm:$0xff]
  %v2429 = vld [vmem:[%s9 + $0x30] sm:$0xff]
  %v2430 = vld [vmem:[%s9 + $0x38] sm:$0xff]
  %2433 = vrot.lane.b32.xlu0 %v1781, 120
  %v2434 = vpop.permute.xlu0 %2433
  %2435 = vrot.lane.b32.xlu0 %v1782, 120
  %v2436 = vpop.permute.xlu0 %2435
  %v2439 = vsel %vm310, %v2434, 0.0
  %2440 = vadd.xlane.f32.xlu0 %v2439
  %v2441 = vpop.xlane.xlu0 %2440
  %v2442 = vsel %vm310, %v2436, 0.0
  %2443 = vadd.xlane.f32.xlu0 %v2442
  %v2444 = vpop.xlane.xlu0 %2443
  %v2445 = vmul.f32 %v2441, 0.5
  %v2446 = vmul.f32 %v2444, 0.5
  %v2447 = vsel %vm1791, %v971, 0.0
  %v2448 = vrot.slane %v2447, 4
  %v2449 = vadd.f32 %v2447, %v2448
  %v2450 = vrot.slane %v2449, 2
  %v2451 = vadd.f32 %v2449, %v2450
  %v2452 = vrot.slane %v2451, 1
  %v2453 = vadd.f32 %v2451, %v2452
  %v2454 = vmul.f32 %v2453, 0.5
  %v2455 = vsub.f32 %v141, %v2445
  %v2456 = vsub.f32 %v146, %v2446
  %v2457 = vsel %vm982, %v141, -inf
  %2458 = vmax.xlane.f32.xlu0 %v2457
  %v2459 = vpop.xlane.xlu0 %2458
  %v2460 = vsel %vm982, %v146, -inf
  %2461 = vmax.xlane.f32.xlu0 %v2460
  %v2462 = vpop.xlane.xlu0 %2461
  %v2463 = vsub.f32 %v2455, %v2459
  %v2464 = vsub.f32 %v2456, %v2462
  %v2465 = vmul.f32 %v2463, 1.442695
  %v2466 = vpow.pop %v2465
  %v2467 = vmul.f32 %v2464, 1.442695
  %v2468 = vpow.pop %v2467
  %v2469 = vadd.f32 %v2466, 1e-06
  %v2470 = vadd.f32 %v2468, 1e-06
  %v2471 = vmul.f32 %v2469, 0.25
  %v2472 = vmul.f32 %v2470, 0.25
  %v2473 = vsub.f32 %v298, %v2454
  %v2474 = vsub.f32 %v303, %v2454
  %v2475 = vsel %vm1791, %v298, -inf
  %v2476 = vsel %vm1791, %v303, -inf
  %v2477 = vmax.f32 %v2475, %v2476
  %2478 = vmax.xlane.f32.xlu0 %v2477
  %v2479 = vpop.xlane.xlu0 %2478
  %v2480 = vrot.slane %v2479, 4
  %v2481 = vmax.f32 %v2479, %v2480
  %v2482 = vrot.slane %v2481, 2
  %v2483 = vmax.f32 %v2481, %v2482
  %v2484 = vrot.slane %v2483, 1
  %v2485 = vmax.f32 %v2483, %v2484
  %s2486 = vtos %v2485
  %v2487 = vstv %s2486
  %v2488 = vsub.f32 %v2473, %v2487
  %v2489 = vsub.f32 %v2474, %v2487
  %v2490 = vmul.f32 %v2488, 1.442695
  %v2491 = vpow.pop %v2490
  %v2492 = vmul.f32 %v2489, 1.442695
  %v2493 = vpow.pop %v2492
  %v2494 = vadd.f32 %v2491, 1e-06
  %v2495 = vadd.f32 %v2493, 1e-06
  %v2496 = vmul.f32 %v2494, 0.25
  %v2497 = vmul.f32 %v2495, 0.25
  %s2498 = scalar_lea.vmem %s6, 48
  %v2499 = vld [vmem:[%s2498] sm:$0xff]
  %v2500 = vld [vmem:[%s2498 + $0x8] sm:$0xff]
  %v2501 = vmul.f32 %v2499, 1.442695
  %v2502 = vpow.pop %v2501
  %v2503 = vmul.f32 %v2500, 1.442695
  %v2504 = vpow.pop %v2503
  %v2506 = vsel %vm310, %v2502, 0
  %v2509 = vsel %vm310, %v2504, 0
  %2511 = vmatprep.subr.mxu0 0.0
  %2512 = vmatpush1.msra.mxu0 %v306
  %2513 = vmatprep.subr.mxu0 0.0
  %2514 = vmatpush1.msra.mxu0 0.0
  %2515 = vmatprep.subr.mxu0 0.0
  %2516 = vmatpush1.msra.mxu0 0.0
  %2517 = vmatprep.subr.mxu0 0.0
  %2518 = vmatpush1.msra.mxu0 0.0
  %2519 = vmatprep.subr.mxu0 0.0
  %2520 = vmatpush1.msra.mxu0 0.0
  %2521 = vmatprep.subr.mxu0 0.0
  %2522 = vmatpush1.msra.mxu0 0.0
  %2523 = vmatprep.subr.mxu0 0.0
  %2524 = vmatpush1.msra.mxu0 0.0
  %2525 = vmatprep.subr.mxu0 0.0
  %2526 = vmatpush1.msra.mxu0 0.0
  %2527 = vmatprep.subr.mxu0 0.0
  %2528 = vmatpush1.msra.mxu0 0.0
  %2529 = vmatprep.subr.mxu0 0.0
  %2530 = vmatpush1.msra.mxu0 0.0
  %2531 = vmatprep.subr.mxu0 0.0
  %2532 = vmatpush1.msra.mxu0 0.0
  %2533 = vmatprep.subr.mxu0 0.0
  %2534 = vmatpush1.msra.mxu0 0.0
  %2535 = vmatprep.subr.mxu0 0.0
  %2536 = vmatpush1.msra.mxu0 0.0
  %2537 = vmatprep.subr.mxu0 0.0
  %2538 = vmatpush1.msra.mxu0 0.0
  %2539 = vmatprep.subr.mxu0 0.0
  %2540 = vmatpush1.msra.mxu0 0.0
  %2541 = vmatprep.subr.mxu0 0.0
  %2542 = vmatpush1.msra.mxu0 0.0
  %2543 = vmatprep.subr.mxu0 0.0
  %2544 = vmatpush1.msra.mxu0 0.0
  %2545 = vmatprep.subr.mxu0 0.0
  %2546 = vmatpush1.msra.mxu0 0.0
  %2547 = vmatprep.subr.mxu0 0.0
  %2548 = vmatpush1.msra.mxu0 0.0
  %2549 = vmatprep.subr.mxu0 0.0
  %2550 = vmatpush1.msra.mxu0 0.0
  %2551 = vmatprep.subr.mxu0 0.0
  %2552 = vmatpush1.msra.mxu0 0.0
  %2553 = vmatprep.subr.mxu0 0.0
  %2554 = vmatpush1.msra.mxu0 0.0
  %2555 = vmatprep.subr.mxu0 0.0
  %2556 = vmatpush1.msra.mxu0 0.0
  %2557 = vmatprep.subr.mxu0 0.0
  %2558 = vmatpush1.msra.mxu0 0.0
  %2559 = vmatprep.subr.mxu0 0.0
  %2560 = vmatpush1.msra.mxu0 0.0
  %2561 = vmatprep.subr.mxu0 0.0
  %2562 = vmatpush1.msra.mxu0 0.0
  %2563 = vmatprep.subr.mxu0 0.0
  %2564 = vmatpush1.msra.mxu0 0.0
  %2565 = vmatprep.subr.mxu0 0.0
  %2566 = vmatpush1.msra.mxu0 0.0
  %2567 = vmatprep.subr.mxu0 0.0
  %2568 = vmatpush1.msra.mxu0 0.0
  %2569 = vmatprep.subr.mxu0 0.0
  %2570 = vmatpush1.msra.mxu0 0.0
  %2571 = vmatprep.subr.mxu0 0.0
  %2572 = vmatpush1.msra.mxu0 0.0
  %2573 = vmatprep.subr.mxu0 0.0
  %2574 = vmatpush1.msra.mxu0 0.0
  %2575 = vmatprep.mubr.f32.mxu0 0.0
  %2576 = vmatmul.mubr.f32.gmra.mrb[0].mxu0 %v2506
  %v2577 = vpop.f32.mrb[0].mxu0
  %v2578 = vadd.f32 0.0, %v2577
  %v2579 = vpop.f32.mrb[0].mxu0
  %2580 = vmatprep.mubr.f32.mxu0 0.0
  %2581 = vmatmul.mubr.f32.gmra.mrb[0].mxu0 %v2509
  %v2582 = vpop.f32.mrb[0].mxu0
  %v2583 = vadd.f32 0.0, %v2582
  %v2584 = vpop.f32.mrb[0].mxu0
  %2585 = vdwg.mxu0
  %2586 = vrot.lane.b32.xlu0 %v141, 104
  %v2587 = vpop.permute.xlu0 %2586
  %2588 = vrot.lane.b32.xlu0 %v146, 104
  %v2589 = vpop.permute.xlu0 %2588
  %v2590 = vsel %vm310, %v2587, 0
  %v2592 = vsel %vm310, %v2589, 0
  %2594 = vmatprep.subr.mxu0 0.0
  %2595 = vmatpush1.msra.mxu0 %v307
  %2596 = vmatprep.subr.mxu0 0.0
  %2597 = vmatpush1.msra.mxu0 0.0
  %2598 = vmatprep.subr.mxu0 0.0
  %2599 = vmatpush1.msra.mxu0 0.0
  %2600 = vmatprep.subr.mxu0 0.0
  %2601 = vmatpush1.msra.mxu0 0.0
  %2602 = vmatprep.subr.mxu0 0.0
  %2603 = vmatpush1.msra.mxu0 0.0
  %2604 = vmatprep.subr.mxu0 0.0
  %2605 = vmatpush1.msra.mxu0 0.0
  %2606 = vmatprep.subr.mxu0 0.0
  %2607 = vmatpush1.msra.mxu0 0.0
  %2608 = vmatprep.subr.mxu0 0.0
  %2609 = vmatpush1.msra.mxu0 0.0
  %2610 = vmatprep.subr.mxu0 0.0
  %2611 = vmatpush1.msra.mxu0 0.0
  %2612 = vmatprep.subr.mxu0 0.0
  %2613 = vmatpush1.msra.mxu0 0.0
  %2614 = vmatprep.subr.mxu0 0.0
  %2615 = vmatpush1.msra.mxu0 0.0
  %2616 = vmatprep.subr.mxu0 0.0
  %2617 = vmatpush1.msra.mxu0 0.0
  %2618 = vmatprep.subr.mxu0 0.0
  %2619 = vmatpush1.msra.mxu0 0.0
  %2620 = vmatprep.subr.mxu0 0.0
  %2621 = vmatpush1.msra.mxu0 0.0
  %2622 = vmatprep.subr.mxu0 0.0
  %2623 = vmatpush1.msra.mxu0 0.0
  %2624 = vmatprep.subr.mxu0 0.0
  %2625 = vmatpush1.msra.mxu0 0.0
  %2626 = vmatprep.subr.mxu0 0.0
  %2627 = vmatpush1.msra.mxu0 0.0
  %2628 = vmatprep.subr.mxu0 0.0
  %2629 = vmatpush1.msra.mxu0 0.0
  %2630 = vmatprep.subr.mxu0 0.0
  %2631 = vmatpush1.msra.mxu0 0.0
  %2632 = vmatprep.subr.mxu0 0.0
  %2633 = vmatpush1.msra.mxu0 0.0
  %2634 = vmatprep.subr.mxu0 0.0
  %2635 = vmatpush1.msra.mxu0 0.0
  %2636 = vmatprep.subr.mxu0 0.0
  %2637 = vmatpush1.msra.mxu0 0.0
  %2638 = vmatprep.subr.mxu0 0.0
  %2639 = vmatpush1.msra.mxu0 0.0
  %2640 = vmatprep.subr.mxu0 0.0
  %2641 = vmatpush1.msra.mxu0 0.0
  %2642 = vmatprep.subr.mxu0 0.0
  %2643 = vmatpush1.msra.mxu0 0.0
  %2644 = vmatprep.subr.mxu0 0.0
  %2645 = vmatpush1.msra.mxu0 0.0
  %2646 = vmatprep.subr.mxu0 0.0
  %2647 = vmatpush1.msra.mxu0 0.0
  %2648 = vmatprep.subr.mxu0 0.0
  %2649 = vmatpush1.msra.mxu0 0.0
  %2650 = vmatprep.subr.mxu0 0.0
  %2651 = vmatpush1.msra.mxu0 0.0
  %2652 = vmatprep.subr.mxu0 0.0
  %2653 = vmatpush1.msra.mxu0 0.0
  %2654 = vmatprep.subr.mxu0 0.0
  %2655 = vmatpush1.msra.mxu0 0.0
  %2656 = vmatprep.subr.mxu0 0.0
  %2657 = vmatpush1.msra.mxu0 0.0
  %2658 = vmatprep.mubr.f32.mxu0 0.0
  %2659 = vmatmul.mubr.f32.gmra.mrb[0].mxu0 %v2590
  %v2660 = vpop.f32.mrb[0].mxu0
  %v2661 = vadd.f32 0.0, %v2660
  %v2662 = vpop.f32.mrb[0].mxu0
  %2663 = vmatprep.mubr.f32.mxu0 0.0
  %2664 = vmatmul.mubr.f32.gmra.mrb[0].mxu0 %v2592
  %v2665 = vpop.f32.mrb[0].mxu0
  %v2666 = vadd.f32 0.0, %v2665
  %v2667 = vpop.f32.mrb[0].mxu0
  %2668 = vdwg.mxu0
  %v2669 = vmul.f32 %v2578, %v2661
  %v2670 = vmul.f32 %v2583, %v2666
  %2673 = vrot.lane.b32.xlu0 %v2496, 112
  %v2674 = vpop.permute.xlu0 %2673
  %2675 = vrot.lane.b32.xlu0 %v2497, 112
  %v2676 = vpop.permute.xlu0 %2675
  %v2677 = vsel %vm51, %v2674, 0
  %v2679 = vsel %vm51, %v2676, 0
  %2681 = vmatprep.subr.mxu0 0.0
  %2682 = vmatpush1.msra.mxu0 %v2669
  %2683 = vmatprep.subr.mxu0 0.0
  %2684 = vmatpush1.msra.mxu0 %v2670
  %2685 = vmatprep.subr.mxu0 0.0
  %2686 = vmatpush1.msra.mxu0 0.0
  %2687 = vmatprep.subr.mxu0 0.0
  %2688 = vmatpush1.msra.mxu0 0.0
  %2689 = vmatprep.subr.mxu0 0.0
  %2690 = vmatpush1.msra.mxu0 0.0
  %2691 = vmatprep.subr.mxu0 0.0
  %2692 = vmatpush1.msra.mxu0 0.0
  %2693 = vmatprep.subr.mxu0 0.0
  %2694 = vmatpush1.msra.mxu0 0.0
  %2695 = vmatprep.subr.mxu0 0.0
  %2696 = vmatpush1.msra.mxu0 0.0
  %2697 = vmatprep.subr.mxu0 0.0
  %2698 = vmatpush1.msra.mxu0 0.0
  %2699 = vmatprep.subr.mxu0 0.0
  %2700 = vmatpush1.msra.mxu0 0.0
  %2701 = vmatprep.subr.mxu0 0.0
  %2702 = vmatpush1.msra.mxu0 0.0
  %2703 = vmatprep.subr.mxu0 0.0
  %2704 = vmatpush1.msra.mxu0 0.0
  %2705 = vmatprep.subr.mxu0 0.0
  %2706 = vmatpush1.msra.mxu0 0.0
  %2707 = vmatprep.subr.mxu0 0.0
  %2708 = vmatpush1.msra.mxu0 0.0
  %2709 = vmatprep.subr.mxu0 0.0
  %2710 = vmatpush1.msra.mxu0 0.0
  %2711 = vmatprep.subr.mxu0 0.0
  %2712 = vmatpush1.msra.mxu0 0.0
  %2713 = vmatprep.subr.mxu0 0.0
  %2714 = vmatpush1.msra.mxu0 0.0
  %2715 = vmatprep.subr.mxu0 0.0
  %2716 = vmatpush1.msra.mxu0 0.0
  %2717 = vmatprep.subr.mxu0 0.0
  %2718 = vmatpush1.msra.mxu0 0.0
  %2719 = vmatprep.subr.mxu0 0.0
  %2720 = vmatpush1.msra.mxu0 0.0
  %2721 = vmatprep.subr.mxu0 0.0
  %2722 = vmatpush1.msra.mxu0 0.0
  %2723 = vmatprep.subr.mxu0 0.0
  %2724 = vmatpush1.msra.mxu0 0.0
  %2725 = vmatprep.subr.mxu0 0.0
  %2726 = vmatpush1.msra.mxu0 0.0
  %2727 = vmatprep.subr.mxu0 0.0
  %2728 = vmatpush1.msra.mxu0 0.0
  %2729 = vmatprep.subr.mxu0 0.0
  %2730 = vmatpush1.msra.mxu0 0.0
  %2731 = vmatprep.subr.mxu0 0.0
  %2732 = vmatpush1.msra.mxu0 0.0
  %2733 = vmatprep.subr.mxu0 0.0
  %2734 = vmatpush1.msra.mxu0 0.0
  %2735 = vmatprep.subr.mxu0 0.0
  %2736 = vmatpush1.msra.mxu0 0.0
  %2737 = vmatprep.subr.mxu0 0.0
  %2738 = vmatpush1.msra.mxu0 0.0
  %2739 = vmatprep.subr.mxu0 0.0
  %2740 = vmatpush1.msra.mxu0 0.0
  %2741 = vmatprep.subr.mxu0 0.0
  %2742 = vmatpush1.msra.mxu0 0.0
  %2743 = vmatprep.subr.mxu0 0.0
  %2744 = vmatpush1.msra.mxu0 0.0
  %2745 = vmatprep.mubr.f32.mxu0 0.0
  %2746 = vmatmul.mubr.f32.gmra.mrb[0].mxu0 %v2677
  %v2747 = vpop.f32.mrb[0].mxu0
  %v2748 = vadd.f32 0.0, %v2747
  %v2749 = vpop.f32.mrb[0].mxu0
  %2750 = vmatprep.mubr.f32.mxu0 0.0
  %2751 = vmatmul.mubr.f32.gmra.mrb[0].mxu0 %v2679
  %v2752 = vpop.f32.mrb[0].mxu0
  %v2753 = vadd.f32 0.0, %v2752
  %v2754 = vpop.f32.mrb[0].mxu0
  %2755 = vdwg.mxu0
  %2756 = vmatprep.subr.mxu0 0.0
  %2757 = vmatpush1.msra.mxu0 %v2502
  %2758 = vmatprep.subr.mxu0 0.0
  %2759 = vmatpush1.msra.mxu0 %v2504
  %2760 = vmatprep.subr.mxu0 0.0
  %2761 = vmatpush1.msra.mxu0 0.0
  %2762 = vmatprep.subr.mxu0 0.0
  %2763 = vmatpush1.msra.mxu0 0.0
  %2764 = vmatprep.subr.mxu0 0.0
  %2765 = vmatpush1.msra.mxu0 0.0
  %2766 = vmatprep.subr.mxu0 0.0
  %2767 = vmatpush1.msra.mxu0 0.0
  %2768 = vmatprep.subr.mxu0 0.0
  %2769 = vmatpush1.msra.mxu0 0.0
  %2770 = vmatprep.subr.mxu0 0.0
  %2771 = vmatpush1.msra.mxu0 0.0
  %2772 = vmatprep.subr.mxu0 0.0
  %2773 = vmatpush1.msra.mxu0 0.0
  %2774 = vmatprep.subr.mxu0 0.0
  %2775 = vmatpush1.msra.mxu0 0.0
  %2776 = vmatprep.subr.mxu0 0.0
  %2777 = vmatpush1.msra.mxu0 0.0
  %2778 = vmatprep.subr.mxu0 0.0
  %2779 = vmatpush1.msra.mxu0 0.0
  %2780 = vmatprep.subr.mxu0 0.0
  %2781 = vmatpush1.msra.mxu0 0.0
  %2782 = vmatprep.subr.mxu0 0.0
  %2783 = vmatpush1.msra.mxu0 0.0
  %2784 = vmatprep.subr.mxu0 0.0
  %2785 = vmatpush1.msra.mxu0 0.0
  %2786 = vmatprep.subr.mxu0 0.0
  %2787 = vmatpush1.msra.mxu0 0.0
  %2788 = vmatprep.subr.mxu0 0.0
  %2789 = vmatpush1.msra.mxu0 0.0
  %2790 = vmatprep.subr.mxu0 0.0
  %2791 = vmatpush1.msra.mxu0 0.0
  %2792 = vmatprep.subr.mxu0 0.0
  %2793 = vmatpush1.msra.mxu0 0.0
  %2794 = vmatprep.subr.mxu0 0.0
  %2795 = vmatpush1.msra.mxu0 0.0
  %2796 = vmatprep.subr.mxu0 0.0
  %2797 = vmatpush1.msra.mxu0 0.0
  %2798 = vmatprep.subr.mxu0 0.0
  %2799 = vmatpush1.msra.mxu0 0.0
  %2800 = vmatprep.subr.mxu0 0.0
  %2801 = vmatpush1.msra.mxu0 0.0
  %2802 = vmatprep.subr.mxu0 0.0
  %2803 = vmatpush1.msra.mxu0 0.0
  %2804 = vmatprep.subr.mxu0 0.0
  %2805 = vmatpush1.msra.mxu0 0.0
  %2806 = vmatprep.subr.mxu0 0.0
  %2807 = vmatpush1.msra.mxu0 0.0
  %2808 = vmatprep.subr.mxu0 0.0
  %2809 = vmatpush1.msra.mxu0 0.0
  %2810 = vmatprep.subr.mxu0 0.0
  %2811 = vmatpush1.msra.mxu0 0.0
  %2812 = vmatprep.subr.mxu0 0.0
  %2813 = vmatpush1.msra.mxu0 0.0
  %2814 = vmatprep.subr.mxu0 0.0
  %2815 = vmatpush1.msra.mxu0 0.0
  %2816 = vmatprep.subr.mxu0 0.0
  %2817 = vmatpush1.msra.mxu0 0.0
  %2818 = vmatprep.subr.mxu0 0.0
  %2819 = vmatpush1.msra.mxu0 0.0
  %2820 = vmatprep.mubr.f32.mxu0 0.0
  %2821 = vmatmul.mubr.f32.gmra.mrb[0].mxu0 %v2677
  %v2822 = vpop.f32.mrb[0].mxu0
  %v2823 = vadd.f32 0.0, %v2822
  %v2824 = vpop.f32.mrb[0].mxu0
  %2825 = vmatprep.mubr.f32.mxu0 0.0
  %2826 = vmatmul.mubr.f32.gmra.mrb[0].mxu0 %v2679
  %v2827 = vpop.f32.mrb[0].mxu0
  %v2828 = vadd.f32 0.0, %v2827
  %v2829 = vpop.f32.mrb[0].mxu0
  %2830 = vdwg.mxu0
  %2833 = vrot.lane.b32.xlu0 %v2471, 80
  %v2834 = vpop.permute.xlu0 %2833
  %2835 = vrot.lane.b32.xlu0 %v2472, 80
  %v2836 = vpop.permute.xlu0 %2835
  %v2837 = vsel %vm51, %v2834, 0
  %v2839 = vsel %vm51, %v2836, 0
  %2841 = vmatprep.subr.mxu0 0.0
  %2842 = vmatpush1.msra.mxu0 %v2748
  %2843 = vmatprep.subr.mxu0 0.0
  %2844 = vmatpush1.msra.mxu0 %v2753
  %2845 = vmatprep.subr.mxu0 0.0
  %2846 = vmatpush1.msra.mxu0 0.0
  %2847 = vmatprep.subr.mxu0 0.0
  %2848 = vmatpush1.msra.mxu0 0.0
  %2849 = vmatprep.subr.mxu0 0.0
  %2850 = vmatpush1.msra.mxu0 0.0
  %2851 = vmatprep.subr.mxu0 0.0
  %2852 = vmatpush1.msra.mxu0 0.0
  %2853 = vmatprep.subr.mxu0 0.0
  %2854 = vmatpush1.msra.mxu0 0.0
  %2855 = vmatprep.subr.mxu0 0.0
  %2856 = vmatpush1.msra.mxu0 0.0
  %2857 = vmatprep.subr.mxu0 0.0
  %2858 = vmatpush1.msra.mxu0 0.0
  %2859 = vmatprep.subr.mxu0 0.0
  %2860 = vmatpush1.msra.mxu0 0.0
  %2861 = vmatprep.subr.mxu0 0.0
  %2862 = vmatpush1.msra.mxu0 0.0
  %2863 = vmatprep.subr.mxu0 0.0
  %2864 = vmatpush1.msra.mxu0 0.0
  %2865 = vmatprep.subr.mxu0 0.0
  %2866 = vmatpush1.msra.mxu0 0.0
  %2867 = vmatprep.subr.mxu0 0.0
  %2868 = vmatpush1.msra.mxu0 0.0
  %2869 = vmatprep.subr.mxu0 0.0
  %2870 = vmatpush1.msra.mxu0 0.0
  %2871 = vmatprep.subr.mxu0 0.0
  %2872 = vmatpush1.msra.mxu0 0.0
  %2873 = vmatprep.subr.mxu0 0.0
  %2874 = vmatpush1.msra.mxu0 0.0
  %2875 = vmatprep.subr.mxu0 0.0
  %2876 = vmatpush1.msra.mxu0 0.0
  %2877 = vmatprep.subr.mxu0 0.0
  %2878 = vmatpush1.msra.mxu0 0.0
  %2879 = vmatprep.subr.mxu0 0.0
  %2880 = vmatpush1.msra.mxu0 0.0
  %2881 = vmatprep.subr.mxu0 0.0
  %2882 = vmatpush1.msra.mxu0 0.0
  %2883 = vmatprep.subr.mxu0 0.0
  %2884 = vmatpush1.msra.mxu0 0.0
  %2885 = vmatprep.subr.mxu0 0.0
  %2886 = vmatpush1.msra.mxu0 0.0
  %2887 = vmatprep.subr.mxu0 0.0
  %2888 = vmatpush1.msra.mxu0 0.0
  %2889 = vmatprep.subr.mxu0 0.0
  %2890 = vmatpush1.msra.mxu0 0.0
  %2891 = vmatprep.subr.mxu0 0.0
  %2892 = vmatpush1.msra.mxu0 0.0
  %2893 = vmatprep.subr.mxu0 0.0
  %2894 = vmatpush1.msra.mxu0 0.0
  %2895 = vmatprep.subr.mxu0 0.0
  %2896 = vmatpush1.msra.mxu0 0.0
  %2897 = vmatprep.subr.mxu0 0.0
  %2898 = vmatpush1.msra.mxu0 0.0
  %2899 = vmatprep.subr.mxu0 0.0
  %2900 = vmatpush1.msra.mxu0 0.0
  %2901 = vmatprep.subr.mxu0 0.0
  %2902 = vmatpush1.msra.mxu0 0.0
  %2903 = vmatprep.subr.mxu0 0.0
  %2904 = vmatpush1.msra.mxu0 0.0
  %2905 = vmatprep.mubr.f32.mxu0 0.0
  %2906 = vmatmul.mubr.f32.gmra.mrb[0].mxu0 %v2837
  %v2907 = vpop.f32.mrb[0].mxu0
  %v2908 = vadd.f32 0.0, %v2907
  %v2909 = vpop.f32.mrb[0].mxu0
  %2910 = vmatprep.mubr.f32.mxu0 0.0
  %2911 = vmatmul.mubr.f32.gmra.mrb[0].mxu0 %v2839
  %v2912 = vpop.f32.mrb[0].mxu0
  %v2913 = vadd.f32 0.0, %v2912
  %v2914 = vpop.f32.mrb[0].mxu0
  %2915 = vdwg.mxu0
  %2916 = vmatprep.subr.mxu0 0.0
  %2917 = vmatpush1.msra.mxu0 %v2823
  %2918 = vmatprep.subr.mxu0 0.0
  %2919 = vmatpush1.msra.mxu0 %v2828
  %2920 = vmatprep.subr.mxu0 0.0
  %2921 = vmatpush1.msra.mxu0 0.0
  %2922 = vmatprep.subr.mxu0 0.0
  %2923 = vmatpush1.msra.mxu0 0.0
  %2924 = vmatprep.subr.mxu0 0.0
  %2925 = vmatpush1.msra.mxu0 0.0
  %2926 = vmatprep.subr.mxu0 0.0
  %2927 = vmatpush1.msra.mxu0 0.0
  %2928 = vmatprep.subr.mxu0 0.0
  %2929 = vmatpush1.msra.mxu0 0.0
  %2930 = vmatprep.subr.mxu0 0.0
  %2931 = vmatpush1.msra.mxu0 0.0
  %2932 = vmatprep.subr.mxu0 0.0
  %2933 = vmatpush1.msra.mxu0 0.0
  %2934 = vmatprep.subr.mxu0 0.0
  %2935 = vmatpush1.msra.mxu0 0.0
  %2936 = vmatprep.subr.mxu0 0.0
  %2937 = vmatpush1.msra.mxu0 0.0
  %2938 = vmatprep.subr.mxu0 0.0
  %2939 = vmatpush1.msra.mxu0 0.0
  %2940 = vmatprep.subr.mxu0 0.0
  %2941 = vmatpush1.msra.mxu0 0.0
  %2942 = vmatprep.subr.mxu0 0.0
  %2943 = vmatpush1.msra.mxu0 0.0
  %2944 = vmatprep.subr.mxu0 0.0
  %2945 = vmatpush1.msra.mxu0 0.0
  %2946 = vmatprep.subr.mxu0 0.0
  %2947 = vmatpush1.msra.mxu0 0.0
  %2948 = vmatprep.subr.mxu0 0.0
  %2949 = vmatpush1.msra.mxu0 0.0
  %2950 = vmatprep.subr.mxu0 0.0
  %2951 = vmatpush1.msra.mxu0 0.0
  %2952 = vmatprep.subr.mxu0 0.0
  %2953 = vmatpush1.msra.mxu0 0.0
  %2954 = vmatprep.subr.mxu0 0.0
  %2955 = vmatpush1.msra.mxu0 0.0
  %2956 = vmatprep.subr.mxu0 0.0
  %2957 = vmatpush1.msra.mxu0 0.0
  %2958 = vmatprep.subr.mxu0 0.0
  %2959 = vmatpush1.msra.mxu0 0.0
  %2960 = vmatprep.subr.mxu0 0.0
  %2961 = vmatpush1.msra.mxu0 0.0
  %2962 = vmatprep.subr.mxu0 0.0
  %2963 = vmatpush1.msra.mxu0 0.0
  %2964 = vmatprep.subr.mxu0 0.0
  %2965 = vmatpush1.msra.mxu0 0.0
  %2966 = vmatprep.subr.mxu0 0.0
  %2967 = vmatpush1.msra.mxu0 0.0
  %2968 = vmatprep.subr.mxu0 0.0
  %2969 = vmatpush1.msra.mxu0 0.0
  %2970 = vmatprep.subr.mxu0 0.0
  %2971 = vmatpush1.msra.mxu0 0.0
  %2972 = vmatprep.subr.mxu0 0.0
  %2973 = vmatpush1.msra.mxu0 0.0
  %2974 = vmatprep.subr.mxu0 0.0
  %2975 = vmatpush1.msra.mxu0 0.0
  %2976 = vmatprep.subr.mxu0 0.0
  %2977 = vmatpush1.msra.mxu0 0.0
  %2978 = vmatprep.subr.mxu0 0.0
  %2979 = vmatpush1.msra.mxu0 0.0
  %2980 = vmatprep.mubr.f32.mxu0 0.0
  %2981 = vmatmul.mubr.f32.gmra.mrb[0].mxu0 %v2837
  %v2982 = vpop.f32.mrb[0].mxu0
  %v2983 = vadd.f32 0.0, %v2982
  %v2984 = vpop.f32.mrb[0].mxu0
  %2985 = vmatprep.mubr.f32.mxu0 0.0
  %2986 = vmatmul.mubr.f32.gmra.mrb[0].mxu0 %v2839
  %v2987 = vpop.f32.mrb[0].mxu0
  %v2988 = vadd.f32 0.0, %v2987
  %v2989 = vpop.f32.mrb[0].mxu0
  %2990 = vdwg.mxu0
  %v2991 = vrcp.pop %v2983
  %v2992 = vrcp.pop %v2988
  %v2994 = vsel %vm310, %v2991, 0
  %v2997 = vsel %vm310, %v2992, 0
  %2999 = vmatprep.subr.mxu0 0.0
  %3000 = vmatpush1.msra.mxu0 %v306
  %3001 = vmatprep.subr.mxu0 0.0
  %3002 = vmatpush1.msra.mxu0 0.0
  %3003 = vmatprep.subr.mxu0 0.0
  %3004 = vmatpush1.msra.mxu0 0.0
  %3005 = vmatprep.subr.mxu0 0.0
  %3006 = vmatpush1.msra.mxu0 0.0
  %3007 = vmatprep.subr.mxu0 0.0
  %3008 = vmatpush1.msra.mxu0 0.0
  %3009 = vmatprep.subr.mxu0 0.0
  %3010 = vmatpush1.msra.mxu0 0.0
  %3011 = vmatprep.subr.mxu0 0.0
  %3012 = vmatpush1.msra.mxu0 0.0
  %3013 = vmatprep.subr.mxu0 0.0
  %3014 = vmatpush1.msra.mxu0 0.0
  %3015 = vmatprep.subr.mxu0 0.0
  %3016 = vmatpush1.msra.mxu0 0.0
  %3017 = vmatprep.subr.mxu0 0.0
  %3018 = vmatpush1.msra.mxu0 0.0
  %3019 = vmatprep.subr.mxu0 0.0
  %3020 = vmatpush1.msra.mxu0 0.0
  %3021 = vmatprep.subr.mxu0 0.0
  %3022 = vmatpush1.msra.mxu0 0.0
  %3023 = vmatprep.subr.mxu0 0.0
  %3024 = vmatpush1.msra.mxu0 0.0
  %3025 = vmatprep.subr.mxu0 0.0
  %3026 = vmatpush1.msra.mxu0 0.0
  %3027 = vmatprep.subr.mxu0 0.0
  %3028 = vmatpush1.msra.mxu0 0.0
  %3029 = vmatprep.subr.mxu0 0.0
  %3030 = vmatpush1.msra.mxu0 0.0
  %3031 = vmatprep.subr.mxu0 0.0
  %3032 = vmatpush1.msra.mxu0 0.0
  %3033 = vmatprep.subr.mxu0 0.0
  %3034 = vmatpush1.msra.mxu0 0.0
  %3035 = vmatprep.subr.mxu0 0.0
  %3036 = vmatpush1.msra.mxu0 0.0
  %3037 = vmatprep.subr.mxu0 0.0
  %3038 = vmatpush1.msra.mxu0 0.0
  %3039 = vmatprep.subr.mxu0 0.0
  %3040 = vmatpush1.msra.mxu0 0.0
  %3041 = vmatprep.subr.mxu0 0.0
  %3042 = vmatpush1.msra.mxu0 0.0
  %3043 = vmatprep.subr.mxu0 0.0
  %3044 = vmatpush1.msra.mxu0 0.0
  %3045 = vmatprep.subr.mxu0 0.0
  %3046 = vmatpush1.msra.mxu0 0.0
  %3047 = vmatprep.subr.mxu0 0.0
  %3048 = vmatpush1.msra.mxu0 0.0
  %3049 = vmatprep.subr.mxu0 0.0
  %3050 = vmatpush1.msra.mxu0 0.0
  %3051 = vmatprep.subr.mxu0 0.0
  %3052 = vmatpush1.msra.mxu0 0.0
  %3053 = vmatprep.subr.mxu0 0.0
  %3054 = vmatpush1.msra.mxu0 0.0
  %3055 = vmatprep.subr.mxu0 0.0
  %3056 = vmatpush1.msra.mxu0 0.0
  %3057 = vmatprep.subr.mxu0 0.0
  %3058 = vmatpush1.msra.mxu0 0.0
  %3059 = vmatprep.subr.mxu0 0.0
  %3060 = vmatpush1.msra.mxu0 0.0
  %3061 = vmatprep.subr.mxu0 0.0
  %3062 = vmatpush1.msra.mxu0 0.0
  %3063 = vmatprep.mubr.f32.mxu0 0.0
  %3064 = vmatmul.mubr.f32.gmra.mrb[0].mxu0 %v2994
  %v3065 = vpop.f32.mrb[0].mxu0
  %v3066 = vadd.f32 0.0, %v3065
  %v3067 = vpop.f32.mrb[0].mxu0
  %3068 = vmatprep.mubr.f32.mxu0 0.0
  %3069 = vmatmul.mubr.f32.gmra.mrb[0].mxu0 %v2997
  %v3070 = vpop.f32.mrb[0].mxu0
  %v3071 = vadd.f32 0.0, %v3070
  %v3072 = vpop.f32.mrb[0].mxu0
  %3073 = vdwg.mxu0
  %v3074 = vmul.f32 %v2908, %v3066
  %v3075 = vmul.f32 %v2913, %v3071
  %v3076 = vld [vmem:[%s1598] sm:$0xff]
  %v3077 = vld [vmem:[%s1598 + $0x8] sm:$0xff]
  %v3078 = vld [vmem:[%s1598 + $0x10] sm:$0xff]
  %v3079 = vld [vmem:[%s1598 + $0x18] sm:$0xff]
  %v3080 = vld [vmem:[%s1598 + $0x20] sm:$0xff]
  %v3081 = vld [vmem:[%s1598 + $0x28] sm:$0xff]
  %v3082 = vld [vmem:[%s1598 + $0x30] sm:$0xff]
  %v3083 = vld [vmem:[%s1598 + $0x38] sm:$0xff]
  %v3085 = vsel %vm1607, %v3074, 0
  %v3088 = vsel %vm1607, %v3075, 0
  %3090 = vmatprep.subr.mxu0 0.0
  %3091 = vmatpush1.msra.mxu0 %v3076
  %3092 = vmatprep.subr.mxu0 0.0
  %3093 = vmatpush1.msra.mxu0 %v3077
  %3094 = vmatprep.subr.mxu0 0.0
  %3095 = vmatpush1.msra.mxu0 %v3078
  %3096 = vmatprep.subr.mxu0 0.0
  %3097 = vmatpush1.msra.mxu0 %v3079
  %3098 = vmatprep.subr.mxu0 0.0
  %3099 = vmatpush1.msra.mxu0 %v3080
  %3100 = vmatprep.subr.mxu0 0.0
  %3101 = vmatpush1.msra.mxu0 %v3081
  %3102 = vmatprep.subr.mxu0 0.0
  %3103 = vmatpush1.msra.mxu0 %v3082
  %3104 = vmatprep.subr.mxu0 0.0
  %3105 = vmatpush1.msra.mxu0 %v3083
  %3106 = vmatprep.subr.mxu0 0.0
  %3107 = vmatpush1.msra.mxu0 0.0
  %3108 = vmatprep.subr.mxu0 0.0
  %3109 = vmatpush1.msra.mxu0 0.0
  %3110 = vmatprep.subr.mxu0 0.0
  %3111 = vmatpush1.msra.mxu0 0.0
  %3112 = vmatprep.subr.mxu0 0.0
  %3113 = vmatpush1.msra.mxu0 0.0
  %3114 = vmatprep.subr.mxu0 0.0
  %3115 = vmatpush1.msra.mxu0 0.0
  %3116 = vmatprep.subr.mxu0 0.0
  %3117 = vmatpush1.msra.mxu0 0.0
  %3118 = vmatprep.subr.mxu0 0.0
  %3119 = vmatpush1.msra.mxu0 0.0
  %3120 = vmatprep.subr.mxu0 0.0
  %3121 = vmatpush1.msra.mxu0 0.0
  %3122 = vmatprep.subr.mxu0 0.0
  %3123 = vmatpush1.msra.mxu0 0.0
  %3124 = vmatprep.subr.mxu0 0.0
  %3125 = vmatpush1.msra.mxu0 0.0
  %3126 = vmatprep.subr.mxu0 0.0
  %3127 = vmatpush1.msra.mxu0 0.0
  %3128 = vmatprep.subr.mxu0 0.0
  %3129 = vmatpush1.msra.mxu0 0.0
  %3130 = vmatprep.subr.mxu0 0.0
  %3131 = vmatpush1.msra.mxu0 0.0
  %3132 = vmatprep.subr.mxu0 0.0
  %3133 = vmatpush1.msra.mxu0 0.0
  %3134 = vmatprep.subr.mxu0 0.0
  %3135 = vmatpush1.msra.mxu0 0.0
  %3136 = vmatprep.subr.mxu0 0.0
  %3137 = vmatpush1.msra.mxu0 0.0
  %3138 = vmatprep.subr.mxu0 0.0
  %3139 = vmatpush1.msra.mxu0 0.0
  %3140 = vmatprep.subr.mxu0 0.0
  %3141 = vmatpush1.msra.mxu0 0.0
  %3142 = vmatprep.subr.mxu0 0.0
  %3143 = vmatpush1.msra.mxu0 0.0
  %3144 = vmatprep.subr.mxu0 0.0
  %3145 = vmatpush1.msra.mxu0 0.0
  %3146 = vmatprep.subr.mxu0 0.0
  %3147 = vmatpush1.msra.mxu0 0.0
  %3148 = vmatprep.subr.mxu0 0.0
  %3149 = vmatpush1.msra.mxu0 0.0
  %3150 = vmatprep.subr.mxu0 0.0
  %3151 = vmatpush1.msra.mxu0 0.0
  %3152 = vmatprep.subr.mxu0 0.0
  %3153 = vmatpush1.msra.mxu0 0.0
  %3154 = vmatprep.mubr.f32.mxu0 0.0
  %3155 = vmatmul.mubr.f32.gmra.mrb[0].mxu0 %v3085
  %v3156 = vpop.f32.mrb[0].mxu0
  %v3157 = vadd.f32 0.0, %v3156
  %v3158 = vpop.f32.mrb[0].mxu0
  %3159 = vmatprep.mubr.f32.mxu0 0.0
  %3160 = vmatmul.mubr.f32.gmra.mrb[0].mxu0 %v3088
  %v3161 = vpop.f32.mrb[0].mxu0
  %v3162 = vadd.f32 0.0, %v3161
  %v3163 = vpop.f32.mrb[0].mxu0
  %3164 = vdwg.mxu0
  %v3166 = vsel %vm1607, %v2421, 0
  %v3169 = vsel %vm1607, %v2422, 0
  %3171 = vmatprep.subr.mxu0 0.0
  %3172 = vmatpush1.msra.mxu0 %v2423
  %3173 = vmatprep.subr.mxu0 0.0
  %3174 = vmatpush1.msra.mxu0 %v2424
  %3175 = vmatprep.subr.mxu0 0.0
  %3176 = vmatpush1.msra.mxu0 %v2425
  %3177 = vmatprep.subr.mxu0 0.0
  %3178 = vmatpush1.msra.mxu0 %v2426
  %3179 = vmatprep.subr.mxu0 0.0
  %3180 = vmatpush1.msra.mxu0 %v2427
  %3181 = vmatprep.subr.mxu0 0.0
  %3182 = vmatpush1.msra.mxu0 %v2428
  %3183 = vmatprep.subr.mxu0 0.0
  %3184 = vmatpush1.msra.mxu0 %v2429
  %3185 = vmatprep.subr.mxu0 0.0
  %3186 = vmatpush1.msra.mxu0 %v2430
  %3187 = vmatprep.subr.mxu0 0.0
  %3188 = vmatpush1.msra.mxu0 0.0
  %3189 = vmatprep.subr.mxu0 0.0
  %3190 = vmatpush1.msra.mxu0 0.0
  %3191 = vmatprep.subr.mxu0 0.0
  %3192 = vmatpush1.msra.mxu0 0.0
  %3193 = vmatprep.subr.mxu0 0.0
  %3194 = vmatpush1.msra.mxu0 0.0
  %3195 = vmatprep.subr.mxu0 0.0
  %3196 = vmatpush1.msra.mxu0 0.0
  %3197 = vmatprep.subr.mxu0 0.0
  %3198 = vmatpush1.msra.mxu0 0.0
  %3199 = vmatprep.subr.mxu0 0.0
  %3200 = vmatpush1.msra.mxu0 0.0
  %3201 = vmatprep.subr.mxu0 0.0
  %3202 = vmatpush1.msra.mxu0 0.0
  %3203 = vmatprep.subr.mxu0 0.0
  %3204 = vmatpush1.msra.mxu0 0.0
  %3205 = vmatprep.subr.mxu0 0.0
  %3206 = vmatpush1.msra.mxu0 0.0
  %3207 = vmatprep.subr.mxu0 0.0
  %3208 = vmatpush1.msra.mxu0 0.0
  %3209 = vmatprep.subr.mxu0 0.0
  %3210 = vmatpush1.msra.mxu0 0.0
  %3211 = vmatprep.subr.mxu0 0.0
  %3212 = vmatpush1.msra.mxu0 0.0
  %3213 = vmatprep.subr.mxu0 0.0
  %3214 = vmatpush1.msra.mxu0 0.0
  %3215 = vmatprep.subr.mxu0 0.0
  %3216 = vmatpush1.msra.mxu0 0.0
  %3217 = vmatprep.subr.mxu0 0.0
  %3218 = vmatpush1.msra.mxu0 0.0
  %3219 = vmatprep.subr.mxu0 0.0
  %3220 = vmatpush1.msra.mxu0 0.0
  %3221 = vmatprep.subr.mxu0 0.0
  %3222 = vmatpush1.msra.mxu0 0.0
  %3223 = vmatprep.subr.mxu0 0.0
  %3224 = vmatpush1.msra.mxu0 0.0
  %3225 = vmatprep.subr.mxu0 0.0
  %3226 = vmatpush1.msra.mxu0 0.0
  %3227 = vmatprep.subr.mxu0 0.0
  %3228 = vmatpush1.msra.mxu0 0.0
  %3229 = vmatprep.subr.mxu0 0.0
  %3230 = vmatpush1.msra.mxu0 0.0
  %3231 = vmatprep.subr.mxu0 0.0
  %3232 = vmatpush1.msra.mxu0 0.0
  %3233 = vmatprep.subr.mxu0 0.0
  %3234 = vmatpush1.msra.mxu0 0.0
  %3235 = vmatprep.mubr.f32.mxu0 0.0
  %3236 = vmatmul.mubr.f32.gmra.mrb[0].mxu0 %v3166
  %v3237 = vpop.f32.mrb[0].mxu0
  %v3238 = vadd.f32 %v3157, %v3237
  %v3239 = vpop.f32.mrb[0].mxu0
  %3240 = vmatprep.mubr.f32.mxu0 0.0
  %3241 = vmatmul.mubr.f32.gmra.mrb[0].mxu0 %v3169
  %v3242 = vpop.f32.mrb[0].mxu0
  %v3243 = vadd.f32 %v3162, %v3242
  %v3244 = vpop.f32.mrb[0].mxu0
  %3245 = vdwg.mxu0
  %v3246 = vld [vmem:[%s10] sm:$0x1]
  %v3248 = vlaneseq
  %v3249 = vshrl.u32 %v3248, 7
  %v3250 = vsub.s32 0, %v3249
  %v3251 = vrot.slane %v3246, %v3250
  %v3253 = vadd.f32 %v3238, %v3251
  %v3254 = vadd.f32 %v3243, %v3251
  %3255 = vst.msk [vmem:[%s11 + $0x10] sm:$0xff] %vm310, %v3253
  %3256 = vst.msk [vmem:[%s11 + $0x18] sm:$0xff] %vm310, %v3254
  // Predicated region
  $region46: #{tpu_custom_call.1} parent=0 // pred_check
    _
  $region47: #{tpu_custom_call.1} parent=0 // pred_check_branch
    %3258 = sbr.rel (0) target = $region49
  $region48: #{tpu_custom_call.1} parent=0 // pred_region
    _
  $region49: #{tpu_custom_call.1} parent=0 // pred_fallthru
    _
  // Predicated region
  $region50: #{tpu_custom_call.1} parent=0 // pred_check
    _
  $region51: #{tpu_custom_call.1} parent=0 // pred_check_branch
    %3260 = sbr.rel (0) target = $region53
  $region52: #{tpu_custom_call.1} parent=0 // pred_region
    _
  $region53: #{tpu_custom_call.1} parent=0 // pred_fallthru
    _

</llo_original>
